<compile_context>
chip_gen: v7x
topology: tpu7x:2x2x1
jax: 0.10.0
libtpu: 0.0.40
codegen_flags: <defaults>
</compile_context>

<pallas_src>
import jax
import jax.numpy as jnp
from jax import lax
from jax.experimental import pallas as pl
from jax.experimental.pallas import tpu as pltpu

_EPS = 1e-5    # PyTorch BatchNorm2d default eps
_LANE = 128    # TPU lane width: channel dim is padded to a multiple of this


def _basic_block_kernel(xpad_ref, w1_ref, w2_ref, b1_ref, b2_ref,
                        out_ref, acc_ref, midpad_ref):
    """One grid step = one batch image (NHWC, channels padded to Cp).

    xpad_ref  : (1, H+2, W+2, Cp)  zero-padded input tile (compute dtype)
    w1_ref    : (3, 3*Cp, Cp)      conv1 weights (BN1 scale folded in),
                                   dx-major; the 3 dy taps stacked along K
    w2_ref    : (3, 3*Cp, Cp)      conv2 weights (BN2 scale folded in)
    b*_ref    : (1, Cp) f32        folded BN bias   beta - mean * scale
    out_ref   : (1, H, W, Cp)      block output
    acc_ref   : (H*W, Cp) f32      VMEM matmul accumulator (shared by both convs)
    midpad_ref: (H+2, W+2, Cp)     padded canvas for relu(bn1(conv1(x)))
    """
    _, Hp, Wp, Cp = xpad_ref.shape
    H, W = Hp - 2, Wp - 2
    M = H * W
    K = 3 * Cp
    cdtype = midpad_ref.dtype

    # ---- conv1 (+ folded bn1 scale): 3 column-grouped MXU matmuls.
    #      For each horizontal tap dx, the 3 vertical taps are concatenated
    #      along the (lane-aligned) channel axis -> (M, 3*Cp) @ (3*Cp, Cp).
    residual = None
    for dx in range(3):
        slab = xpad_ref[:, :, dx:dx + W, :]                      # (1, Hp, W, Cp)
        if dx == 1:
            # centre tap (dy=1, dx=1) doubles as the identity residual
            residual = slab[:, 1:1 + H].reshape(M, Cp).astype(jnp.float32)
        patch = jnp.concatenate([slab[:, dy:dy + H] for dy in range(3)],
                                axis=-1).reshape(M, K)           # (M, 3*Cp)
        contrib = jnp.dot(patch, w1_ref[dx], preferred_element_type=jnp.float32)
        if dx == 0:
            acc_ref[...] = contrib       # first tap initializes (no zero-fill)
        else:
            acc_ref[...] += contrib

    # ---- bn1 bias + relu; stage onto the padded canvas: zero ONLY the
    #      1-pixel border rings, write the interior exactly once.
    mid = jnp.maximum(acc_ref[...] + b1_ref[...], 0.0)
    zrow = jnp.zeros((1, Wp, Cp), cdtype)
    zcol = jnp.zeros((Hp, 1, Cp), cdtype)
    midpad_ref[0:1, :, :] = zrow
    midpad_ref[H + 1:H + 2, :, :] = zrow
    midpad_ref[:, 0:1, :] = zcol
    midpad_ref[:, W + 1:W + 2, :] = zcol
    midpad_ref[1:H + 1, 1:W + 1, :] = mid.reshape(H, W, Cp).astype(cdtype)

    # ---- conv2 (+ folded bn2 scale): same 3 column-grouped matmuls.
    for dx in range(3):
        slab = midpad_ref[:, dx:dx + W, :]                       # (Hp, W, Cp)
        patch = jnp.concatenate([slab[dy:dy + H] for dy in range(3)],
                                axis=-1).reshape(M, K)           # (M, 3*Cp)
        contrib = jnp.dot(patch, w2_ref[dx], preferred_element_type=jnp.float32)
        if dx == 0:
            acc_ref[...] = contrib
        else:
            acc_ref[...] += contrib

    # ---- bn2 bias + identity residual + relu (lane-dense store: Cp % 128 == 0)
    out = jnp.maximum(acc_ref[...] + b2_ref[...] + residual, 0.0)
    out_ref[...] = out.reshape(1, H, W, Cp).astype(out_ref.dtype)


def _fold_bn(gamma, beta, mean, var, cp):
    """Return (scale (C,), bias (1, Cp)); scale gets folded into the conv weight."""
    scale = gamma / jnp.sqrt(var + _EPS)
    bias = beta - mean * scale
    bias = jnp.pad(bias, (0, cp - bias.shape[0])).reshape(1, cp).astype(jnp.float32)
    return scale.astype(jnp.float32), bias


def _prep_weight(w_oihw, out_scale, cp, dtype):
    """OIHW -> HWIO, fold BN scale into output channels, pad both channel dims
    to cp, then regroup dx-major with the 3 dy taps stacked along the input
    (contraction) axis: result shape (3, 3*cp, cp)."""
    o, i, kh, kw = w_oihw.shape
    w = jnp.transpose(w_oihw, (2, 3, 1, 0)).astype(jnp.float32)   # (kh, kw, I, O)
    w = w * out_scale[None, None, None, :]
    w = jnp.pad(w, ((0, 0), (0, 0), (0, cp - i), (0, cp - o)))    # (kh, kw, cp, cp)
    w = jnp.transpose(w, (1, 0, 2, 3)).reshape(kw, kh * cp, cp)   # (dx, dy*cp, cp)
    return w.astype(dtype)


def basic_block_pallas(x_nchw, w1_oihw, w2_oihw, bn1, bn2,
                       compute_dtype=jnp.float32):
    """BasicBlock forward.  x_nchw: (N, C, H, W); w*: (planes, C, 3, 3);
    bn*: (gamma, beta, running_mean, running_var).

    compute_dtype=jnp.bfloat16 feeds the MXU in bf16 (f32 accumulation) on
    v6e/v7x; the default f32 matches the PyTorch reference bit-for-bit-ish.
    """
    N, C, H, W = x_nchw.shape
    P = w1_oihw.shape[0]
    assert P == C, "identity residual requires planes == inplanes (downsample=None)"

    Cp = -(-C // _LANE) * _LANE              # channels padded to lane width

    # NCHW -> NHWC, one fused pad: +1 spatial halo and channel pad to Cp.
    x_nhwc = jnp.transpose(x_nchw, (0, 2, 3, 1)).astype(jnp.float32)
    xpad = jnp.pad(x_nhwc, ((0, 0), (1, 1), (1, 1), (0, Cp - C))).astype(compute_dtype)

    s1, b1 = _fold_bn(*(jnp.asarray(a, jnp.float32) for a in bn1), Cp)
    s2, b2 = _fold_bn(*(jnp.asarray(a, jnp.float32) for a in bn2), Cp)
    w1 = _prep_weight(jnp.asarray(w1_oihw), s1, Cp, compute_dtype)
    w2 = _prep_weight(jnp.asarray(w2_oihw), s2, Cp, compute_dtype)

    Hp, Wp = H + 2, W + 2

    out_nhwc = pl.pallas_call(
        _basic_block_kernel,
        out_shape=jax.ShapeDtypeStruct((N, H, W, Cp), jnp.float32),
        grid_spec=pltpu.PrefetchScalarGridSpec(
            num_scalar_prefetch=0,
            grid=(N,),
            in_specs=[
                pl.BlockSpec((1, Hp, Wp, Cp), lambda n: (n, 0, 0, 0)),   # xpad
                pl.BlockSpec((3, 3 * Cp, Cp), lambda n: (0, 0, 0)),      # w1 (bn1-folded)
                pl.BlockSpec((3, 3 * Cp, Cp), lambda n: (0, 0, 0)),      # w2 (bn2-folded)
                pl.BlockSpec((1, Cp), lambda n: (0, 0)),                 # b1
                pl.BlockSpec((1, Cp), lambda n: (0, 0)),                 # b2
            ],
            out_specs=pl.BlockSpec((1, H, W, Cp), lambda n: (n, 0, 0, 0)),
            scratch_shapes=[
                pltpu.VMEM((H * W, Cp), jnp.float32),        # matmul accumulator
                pltpu.VMEM((Hp, Wp, Cp), compute_dtype),     # padded mid canvas
            ],
        ),
        compiler_params=pltpu.CompilerParams(
            dimension_semantics=("parallel",),
            vmem_limit_bytes=48 * 1024 * 1024,
        ),
    )(xpad, w1, w2, b1, b2)

    return jnp.transpose(out_nhwc[..., :C], (0, 3, 1, 2))


def basic_block_reference(x_nchw, w1_oihw, w2_oihw, bn1, bn2):
    """Plain-JAX reference (NCHW), matching PyTorch BasicBlock (eval-mode BN)."""
    x = x_nchw.astype(jnp.float32)

    def conv(inp, w):
        return lax.conv_general_dilated(
            inp, w.astype(jnp.float32), window_strides=(1, 1),
            padding=((1, 1), (1, 1)),
            dimension_numbers=("NCHW", "OIHW", "NCHW"))

    def bn(inp, p):
        g, b, m, v = (a.astype(jnp.float32) for a in p)
        return (inp - m[None, :, None, None]) / jnp.sqrt(v[None, :, None, None] + _EPS) \
            * g[None, :, None, None] + b[None, :, None, None]

    out = jax.nn.relu(bn(conv(x, w1_oihw), bn1))
    out = bn(conv(out, w2_oihw), bn2)
    return jax.nn.relu(out + x)


if __name__ == "__main__":
    key = jax.random.PRNGKey(0)
    k_x, k_w1, k_w2, k_g1, k_b1, k_m1, k_v1, k_g2, k_b2, k_m2, k_v2 = jax.random.split(key, 11)

    N, C, H, W = 2, 4, 16, 16      # inplanes = planes = 4, stride = 1
    P = C

    x = jax.random.normal(k_x, (N, C, H, W), jnp.float32)
    w1 = 0.2 * jax.random.normal(k_w1, (P, C, 3, 3), jnp.float32)   # conv1 (OIHW)
    w2 = 0.2 * jax.random.normal(k_w2, (P, P, 3, 3), jnp.float32)   # conv2 (OIHW)

    bn1 = (jax.random.uniform(k_g1, (P,), jnp.float32, 0.5, 1.5),
           0.1 * jax.random.normal(k_b1, (P,), jnp.float32),
           0.1 * jax.random.normal(k_m1, (P,), jnp.float32),
           jax.random.uniform(k_v1, (P,), jnp.float32, 0.5, 1.5))
    bn2 = (jax.random.uniform(k_g2, (P,), jnp.float32, 0.5, 1.5),
           0.1 * jax.random.normal(k_b2, (P,), jnp.float32),
           0.1 * jax.random.normal(k_m2, (P,), jnp.float32),
           jax.random.uniform(k_v2, (P,), jnp.float32, 0.5, 1.5))

    out = jax.block_until_ready(basic_block_pallas(x, w1, w2, bn1, bn2))
    ref = jax.block_until_ready(basic_block_reference(x, w1, w2, bn1, bn2))

    assert out.shape == (N, P, H, W)
    assert jnp.allclose(out, ref, rtol=1e-4, atol=1e-4), \
        f"max abs diff = {jnp.max(jnp.abs(out - ref))}"
    print("KERNEL_OK")
</pallas_src>

<mosaic_0001>
module attributes {stable_mosaic.version = 11 : i64} {
  func.func @_basic_block_kernel(%arg0: i32, %arg1: memref<1x18x18x128xf32, #tpu.memory_space<vmem>>, %arg2: memref<3x384x128xf32, #tpu.memory_space<vmem>>, %arg3: memref<3x384x128xf32, #tpu.memory_space<vmem>>, %arg4: memref<1x128xf32, #tpu.memory_space<vmem>>, %arg5: memref<1x128xf32, #tpu.memory_space<vmem>>, %arg6: memref<1x16x16x128xf32, #tpu.memory_space<vmem>>, %arg7: memref<256x128xf32, #tpu.memory_space<vmem>>, %arg8: memref<18x18x128xf32, #tpu.memory_space<vmem>>) attributes {dimension_semantics = [#tpu.dimension_semantics<parallel>], iteration_bounds = array<i64: 2>, scalar_prefetch = 0 : i64, scratch_operands = 2 : i64, tpu.core_type = #tpu.core_type<tc>, window_params = [{transform_indices = @transform_0, window_bounds = array<i64: 1, 18, 18, 128>}, {pipeline_mode = #tpu.pipeline_mode<synchronous>, transform_indices = @transform_1, window_bounds = array<i64: 3, 384, 128>}, {pipeline_mode = #tpu.pipeline_mode<synchronous>, transform_indices = @transform_2, window_bounds = array<i64: 3, 384, 128>}, {pipeline_mode = #tpu.pipeline_mode<synchronous>, transform_indices = @transform_3, window_bounds = array<i64: 1, 128>}, {pipeline_mode = #tpu.pipeline_mode<synchronous>, transform_indices = @transform_4, window_bounds = array<i64: 1, 128>}, {transform_indices = @transform_5, window_bounds = array<i64: 1, 16, 16, 128>}]} {
    %c0 = arith.constant 0 : index
    %c0_0 = arith.constant 0 : index
    %c0_1 = arith.constant 0 : index
    %c0_2 = arith.constant 0 : index
    %0 = vector.load %arg1[%c0, %c0_0, %c0_1, %c0_2] : memref<1x18x18x128xf32, #tpu.memory_space<vmem>>, vector<1x18x16x128xf32>
    %1 = vector.extract_strided_slice %0 {offsets = [0, 0, 0, 0], sizes = [1, 16, 16, 128], strides = [1, 1, 1, 1]} : vector<1x18x16x128xf32> to vector<1x16x16x128xf32>
    %2 = vector.extract_strided_slice %0 {offsets = [0, 1, 0, 0], sizes = [1, 16, 16, 128], strides = [1, 1, 1, 1]} : vector<1x18x16x128xf32> to vector<1x16x16x128xf32>
    %3 = vector.extract_strided_slice %0 {offsets = [0, 2, 0, 0], sizes = [1, 16, 16, 128], strides = [1, 1, 1, 1]} : vector<1x18x16x128xf32> to vector<1x16x16x128xf32>
    %4 = tpu.concatenate %1, %2, %3 in 3 : vector<1x16x16x128xf32>, vector<1x16x16x128xf32>, vector<1x16x16x128xf32> -> vector<1x16x16x384xf32>
    %5 = vector.shape_cast %4 : vector<1x16x16x384xf32> to vector<256x384xf32>
    %c0_3 = arith.constant 0 : index
    %c0_4 = arith.constant 0 : index
    %c0_5 = arith.constant 0 : index
    %6 = vector.load %arg2[%c0_3, %c0_4, %c0_5] : memref<3x384x128xf32, #tpu.memory_space<vmem>>, vector<1x384x128xf32>
    %7 = vector.shape_cast %6 : vector<1x384x128xf32> to vector<384x128xf32>
    %cst = arith.constant dense<0.000000e+00> : vector<256x128xf32>
    %8 = tpu.matmul %5, %7, %cst {dimension_numbers = #tpu.dot_dimension_numbers<[1], [0], [0], [1], [0, 0, 1, 1], [], []>} : vector<256x384xf32>, vector<384x128xf32>, vector<256x128xf32> -> vector<256x128xf32>
    %c0_6 = arith.constant 0 : index
    %c0_7 = arith.constant 0 : index
    %9 = vector.load %arg7[%c0_6, %c0_7] : memref<256x128xf32, #tpu.memory_space<vmem>>, vector<256x128xf32>
    tpu.vector_store %arg7[%c0_6, %c0_7], %8 {strides = array<i32>} : memref<256x128xf32, #tpu.memory_space<vmem>>, vector<256x128xf32>,
    %c0_8 = arith.constant 0 : index
    %c0_9 = arith.constant 0 : index
    %c1 = arith.constant 1 : index
    %c0_10 = arith.constant 0 : index
    %10 = vector.load %arg1[%c0_8, %c0_9, %c1, %c0_10] : memref<1x18x18x128xf32, #tpu.memory_space<vmem>>, vector<1x18x16x128xf32>
    %11 = vector.extract_strided_slice %10 {offsets = [0, 1, 0, 0], sizes = [1, 16, 16, 128], strides = [1, 1, 1, 1]} : vector<1x18x16x128xf32> to vector<1x16x16x128xf32>
    %12 = vector.shape_cast %11 : vector<1x16x16x128xf32> to vector<256x128xf32>
    %13 = vector.extract_strided_slice %10 {offsets = [0, 0, 0, 0], sizes = [1, 16, 16, 128], strides = [1, 1, 1, 1]} : vector<1x18x16x128xf32> to vector<1x16x16x128xf32>
    %14 = vector.extract_strided_slice %10 {offsets = [0, 1, 0, 0], sizes = [1, 16, 16, 128], strides = [1, 1, 1, 1]} : vector<1x18x16x128xf32> to vector<1x16x16x128xf32>
    %15 = vector.extract_strided_slice %10 {offsets = [0, 2, 0, 0], sizes = [1, 16, 16, 128], strides = [1, 1, 1, 1]} : vector<1x18x16x128xf32> to vector<1x16x16x128xf32>
    %16 = tpu.concatenate %13, %14, %15 in 3 : vector<1x16x16x128xf32>, vector<1x16x16x128xf32>, vector<1x16x16x128xf32> -> vector<1x16x16x384xf32>
    %17 = vector.shape_cast %16 : vector<1x16x16x384xf32> to vector<256x384xf32>
    %c1_11 = arith.constant 1 : index
    %c0_12 = arith.constant 0 : index
    %c0_13 = arith.constant 0 : index
    %18 = vector.load %arg2[%c1_11, %c0_12, %c0_13] : memref<3x384x128xf32, #tpu.memory_space<vmem>>, vector<1x384x128xf32>
    %19 = vector.shape_cast %18 : vector<1x384x128xf32> to vector<384x128xf32>
    %cst_14 = arith.constant dense<0.000000e+00> : vector<256x128xf32>
    %20 = tpu.matmul %17, %19, %cst_14 {dimension_numbers = #tpu.dot_dimension_numbers<[1], [0], [0], [1], [0, 0, 1, 1], [], []>} : vector<256x384xf32>, vector<384x128xf32>, vector<256x128xf32> -> vector<256x128xf32>
    %c0_15 = arith.constant 0 : index
    %c0_16 = arith.constant 0 : index
    %21 = vector.load %arg7[%c0_15, %c0_16] : memref<256x128xf32, #tpu.memory_space<vmem>>, vector<256x128xf32>
    %22 = arith.addf %21, %20 : vector<256x128xf32>
    %c0_17 = arith.constant 0 : index
    %c0_18 = arith.constant 0 : index
    %23 = vector.load %arg7[%c0_17, %c0_18] : memref<256x128xf32, #tpu.memory_space<vmem>>, vector<256x128xf32>
    tpu.vector_store %arg7[%c0_17, %c0_18], %22 {strides = array<i32>} : memref<256x128xf32, #tpu.memory_space<vmem>>, vector<256x128xf32>,
    %c0_19 = arith.constant 0 : index
    %c0_20 = arith.constant 0 : index
    %c2 = arith.constant 2 : index
    %c0_21 = arith.constant 0 : index
    %24 = vector.load %arg1[%c0_19, %c0_20, %c2, %c0_21] : memref<1x18x18x128xf32, #tpu.memory_space<vmem>>, vector<1x18x16x128xf32>
    %25 = vector.extract_strided_slice %24 {offsets = [0, 0, 0, 0], sizes = [1, 16, 16, 128], strides = [1, 1, 1, 1]} : vector<1x18x16x128xf32> to vector<1x16x16x128xf32>
    %26 = vector.extract_strided_slice %24 {offsets = [0, 1, 0, 0], sizes = [1, 16, 16, 128], strides = [1, 1, 1, 1]} : vector<1x18x16x128xf32> to vector<1x16x16x128xf32>
    %27 = vector.extract_strided_slice %24 {offsets = [0, 2, 0, 0], sizes = [1, 16, 16, 128], strides = [1, 1, 1, 1]} : vector<1x18x16x128xf32> to vector<1x16x16x128xf32>
    %28 = tpu.concatenate %25, %26, %27 in 3 : vector<1x16x16x128xf32>, vector<1x16x16x128xf32>, vector<1x16x16x128xf32> -> vector<1x16x16x384xf32>
    %29 = vector.shape_cast %28 : vector<1x16x16x384xf32> to vector<256x384xf32>
    %c2_22 = arith.constant 2 : index
    %c0_23 = arith.constant 0 : index
    %c0_24 = arith.constant 0 : index
    %30 = vector.load %arg2[%c2_22, %c0_23, %c0_24] : memref<3x384x128xf32, #tpu.memory_space<vmem>>, vector<1x384x128xf32>
    %31 = vector.shape_cast %30 : vector<1x384x128xf32> to vector<384x128xf32>
    %cst_25 = arith.constant dense<0.000000e+00> : vector<256x128xf32>
    %32 = tpu.matmul %29, %31, %cst_25 {dimension_numbers = #tpu.dot_dimension_numbers<[1], [0], [0], [1], [0, 0, 1, 1], [], []>} : vector<256x384xf32>, vector<384x128xf32>, vector<256x128xf32> -> vector<256x128xf32>
    %c0_26 = arith.constant 0 : index
    %c0_27 = arith.constant 0 : index
    %33 = vector.load %arg7[%c0_26, %c0_27] : memref<256x128xf32, #tpu.memory_space<vmem>>, vector<256x128xf32>
    %34 = arith.addf %33, %32 : vector<256x128xf32>
    %c0_28 = arith.constant 0 : index
    %c0_29 = arith.constant 0 : index
    %35 = vector.load %arg7[%c0_28, %c0_29] : memref<256x128xf32, #tpu.memory_space<vmem>>, vector<256x128xf32>
    tpu.vector_store %arg7[%c0_28, %c0_29], %34 {strides = array<i32>} : memref<256x128xf32, #tpu.memory_space<vmem>>, vector<256x128xf32>,
    %c0_30 = arith.constant 0 : index
    %c0_31 = arith.constant 0 : index
    %36 = vector.load %arg7[%c0_30, %c0_31] : memref<256x128xf32, #tpu.memory_space<vmem>>, vector<256x128xf32>
    %c0_32 = arith.constant 0 : index
    %c0_33 = arith.constant 0 : index
    %37 = vector.load %arg4[%c0_32, %c0_33] : memref<1x128xf32, #tpu.memory_space<vmem>>, vector<1x128xf32>
    %38 = vector.broadcast %37 : vector<1x128xf32> to vector<256x128xf32>
    %39 = arith.addf %36, %38 : vector<256x128xf32>
    %cst_34 = arith.constant 0.000000e+00 : f32
    %40 = vector.broadcast %cst_34 : f32 to vector<256x128xf32>
    %41 = arith.maximumf %39, %40 : vector<256x128xf32>
    %cst_35 = arith.constant 0.000000e+00 : f32
    %42 = vector.broadcast %cst_35 : f32 to vector<1x18x128xf32>
    %cst_36 = arith.constant 0.000000e+00 : f32
    %43 = vector.broadcast %cst_36 : f32 to vector<18x1x128xf32>
    %c0_37 = arith.constant 0 : index
    %c0_38 = arith.constant 0 : index
    %c0_39 = arith.constant 0 : index
    %44 = vector.load %arg8[%c0_37, %c0_38, %c0_39] : memref<18x18x128xf32, #tpu.memory_space<vmem>>, vector<1x18x128xf32>
    tpu.vector_store %arg8[%c0_37, %c0_38, %c0_39], %42 {strides = array<i32>} : memref<18x18x128xf32, #tpu.memory_space<vmem>>, vector<1x18x128xf32>,
    %c17 = arith.constant 17 : index
    %c0_40 = arith.constant 0 : index
    %c0_41 = arith.constant 0 : index
    %45 = vector.load %arg8[%c17, %c0_40, %c0_41] : memref<18x18x128xf32, #tpu.memory_space<vmem>>, vector<1x18x128xf32>
    tpu.vector_store %arg8[%c17, %c0_40, %c0_41], %42 {strides = array<i32>} : memref<18x18x128xf32, #tpu.memory_space<vmem>>, vector<1x18x128xf32>,
    %c0_42 = arith.constant 0 : index
    %c0_43 = arith.constant 0 : index
    %c0_44 = arith.constant 0 : index
    %46 = vector.load %arg8[%c0_42, %c0_43, %c0_44] : memref<18x18x128xf32, #tpu.memory_space<vmem>>, vector<18x1x128xf32>
    tpu.vector_store %arg8[%c0_42, %c0_43, %c0_44], %43 {strides = array<i32>} : memref<18x18x128xf32, #tpu.memory_space<vmem>>, vector<18x1x128xf32>,
    %c0_45 = arith.constant 0 : index
    %c17_46 = arith.constant 17 : index
    %c0_47 = arith.constant 0 : index
    %47 = vector.load %arg8[%c0_45, %c17_46, %c0_47] : memref<18x18x128xf32, #tpu.memory_space<vmem>>, vector<18x1x128xf32>
    tpu.vector_store %arg8[%c0_45, %c17_46, %c0_47], %43 {strides = array<i32>} : memref<18x18x128xf32, #tpu.memory_space<vmem>>, vector<18x1x128xf32>,
    %48 = vector.shape_cast %41 : vector<256x128xf32> to vector<16x16x128xf32>
    %c1_48 = arith.constant 1 : index
    %c1_49 = arith.constant 1 : index
    %c0_50 = arith.constant 0 : index
    %49 = vector.load %arg8[%c1_48, %c1_49, %c0_50] : memref<18x18x128xf32, #tpu.memory_space<vmem>>, vector<16x16x128xf32>
    tpu.vector_store %arg8[%c1_48, %c1_49, %c0_50], %48 {strides = array<i32>} : memref<18x18x128xf32, #tpu.memory_space<vmem>>, vector<16x16x128xf32>,
    %c0_51 = arith.constant 0 : index
    %c0_52 = arith.constant 0 : index
    %c0_53 = arith.constant 0 : index
    %50 = vector.load %arg8[%c0_51, %c0_52, %c0_53] : memref<18x18x128xf32, #tpu.memory_space<vmem>>, vector<18x16x128xf32>
    %51 = vector.extract_strided_slice %50 {offsets = [0, 0, 0], sizes = [16, 16, 128], strides = [1, 1, 1]} : vector<18x16x128xf32> to vector<16x16x128xf32>
    %52 = vector.extract_strided_slice %50 {offsets = [1, 0, 0], sizes = [16, 16, 128], strides = [1, 1, 1]} : vector<18x16x128xf32> to vector<16x16x128xf32>
    %53 = vector.extract_strided_slice %50 {offsets = [2, 0, 0], sizes = [16, 16, 128], strides = [1, 1, 1]} : vector<18x16x128xf32> to vector<16x16x128xf32>
    %54 = tpu.concatenate %51, %52, %53 in 2 : vector<16x16x128xf32>, vector<16x16x128xf32>, vector<16x16x128xf32> -> vector<16x16x384xf32>
    %55 = vector.shape_cast %54 : vector<16x16x384xf32> to vector<256x384xf32>
    %c0_54 = arith.constant 0 : index
    %c0_55 = arith.constant 0 : index
    %c0_56 = arith.constant 0 : index
    %56 = vector.load %arg3[%c0_54, %c0_55, %c0_56] : memref<3x384x128xf32, #tpu.memory_space<vmem>>, vector<1x384x128xf32>
    %57 = vector.shape_cast %56 : vector<1x384x128xf32> to vector<384x128xf32>
    %cst_57 = arith.constant dense<0.000000e+00> : vector<256x128xf32>
    %58 = tpu.matmul %55, %57, %cst_57 {dimension_numbers = #tpu.dot_dimension_numbers<[1], [0], [0], [1], [0, 0, 1, 1], [], []>} : vector<256x384xf32>, vector<384x128xf32>, vector<256x128xf32> -> vector<256x128xf32>
    %c0_58 = arith.constant 0 : index
    %c0_59 = arith.constant 0 : index
    %59 = vector.load %arg7[%c0_58, %c0_59] : memref<256x128xf32, #tpu.memory_space<vmem>>, vector<256x128xf32>
    tpu.vector_store %arg7[%c0_58, %c0_59], %58 {strides = array<i32>} : memref<256x128xf32, #tpu.memory_space<vmem>>, vector<256x128xf32>,
    %c0_60 = arith.constant 0 : index
    %c1_61 = arith.constant 1 : index
    %c0_62 = arith.constant 0 : index
    %60 = vector.load %arg8[%c0_60, %c1_61, %c0_62] : memref<18x18x128xf32, #tpu.memory_space<vmem>>, vector<18x16x128xf32>
    %61 = vector.extract_strided_slice %60 {offsets = [0, 0, 0], sizes = [16, 16, 128], strides = [1, 1, 1]} : vector<18x16x128xf32> to vector<16x16x128xf32>
    %62 = vector.extract_strided_slice %60 {offsets = [1, 0, 0], sizes = [16, 16, 128], strides = [1, 1, 1]} : vector<18x16x128xf32> to vector<16x16x128xf32>
    %63 = vector.extract_strided_slice %60 {offsets = [2, 0, 0], sizes = [16, 16, 128], strides = [1, 1, 1]} : vector<18x16x128xf32> to vector<16x16x128xf32>
    %64 = tpu.concatenate %61, %62, %63 in 2 : vector<16x16x128xf32>, vector<16x16x128xf32>, vector<16x16x128xf32> -> vector<16x16x384xf32>
    %65 = vector.shape_cast %64 : vector<16x16x384xf32> to vector<256x384xf32>
    %c1_63 = arith.constant 1 : index
    %c0_64 = arith.constant 0 : index
    %c0_65 = arith.constant 0 : index
    %66 = vector.load %arg3[%c1_63, %c0_64, %c0_65] : memref<3x384x128xf32, #tpu.memory_space<vmem>>, vector<1x384x128xf32>
    %67 = vector.shape_cast %66 : vector<1x384x128xf32> to vector<384x128xf32>
    %cst_66 = arith.constant dense<0.000000e+00> : vector<256x128xf32>
    %68 = tpu.matmul %65, %67, %cst_66 {dimension_numbers = #tpu.dot_dimension_numbers<[1], [0], [0], [1], [0, 0, 1, 1], [], []>} : vector<256x384xf32>, vector<384x128xf32>, vector<256x128xf32> -> vector<256x128xf32>
    %c0_67 = arith.constant 0 : index
    %c0_68 = arith.constant 0 : index
    %69 = vector.load %arg7[%c0_67, %c0_68] : memref<256x128xf32, #tpu.memory_space<vmem>>, vector<256x128xf32>
    %70 = arith.addf %69, %68 : vector<256x128xf32>
    %c0_69 = arith.constant 0 : index
    %c0_70 = arith.constant 0 : index
    %71 = vector.load %arg7[%c0_69, %c0_70] : memref<256x128xf32, #tpu.memory_space<vmem>>, vector<256x128xf32>
    tpu.vector_store %arg7[%c0_69, %c0_70], %70 {strides = array<i32>} : memref<256x128xf32, #tpu.memory_space<vmem>>, vector<256x128xf32>,
    %c0_71 = arith.constant 0 : index
    %c2_72 = arith.constant 2 : index
    %c0_73 = arith.constant 0 : index
    %72 = vector.load %arg8[%c0_71, %c2_72, %c0_73] : memref<18x18x128xf32, #tpu.memory_space<vmem>>, vector<18x16x128xf32>
    %73 = vector.extract_strided_slice %72 {offsets = [0, 0, 0], sizes = [16, 16, 128], strides = [1, 1, 1]} : vector<18x16x128xf32> to vector<16x16x128xf32>
    %74 = vector.extract_strided_slice %72 {offsets = [1, 0, 0], sizes = [16, 16, 128], strides = [1, 1, 1]} : vector<18x16x128xf32> to vector<16x16x128xf32>
    %75 = vector.extract_strided_slice %72 {offsets = [2, 0, 0], sizes = [16, 16, 128], strides = [1, 1, 1]} : vector<18x16x128xf32> to vector<16x16x128xf32>
    %76 = tpu.concatenate %73, %74, %75 in 2 : vector<16x16x128xf32>, vector<16x16x128xf32>, vector<16x16x128xf32> -> vector<16x16x384xf32>
    %77 = vector.shape_cast %76 : vector<16x16x384xf32> to vector<256x384xf32>
    %c2_74 = arith.constant 2 : index
    %c0_75 = arith.constant 0 : index
    %c0_76 = arith.constant 0 : index
    %78 = vector.load %arg3[%c2_74, %c0_75, %c0_76] : memref<3x384x128xf32, #tpu.memory_space<vmem>>, vector<1x384x128xf32>
    %79 = vector.shape_cast %78 : vector<1x384x128xf32> to vector<384x128xf32>
    %cst_77 = arith.constant dense<0.000000e+00> : vector<256x128xf32>
    %80 = tpu.matmul %77, %79, %cst_77 {dimension_numbers = #tpu.dot_dimension_numbers<[1], [0], [0], [1], [0, 0, 1, 1], [], []>} : vector<256x384xf32>, vector<384x128xf32>, vector<256x128xf32> -> vector<256x128xf32>
    %c0_78 = arith.constant 0 : index
    %c0_79 = arith.constant 0 : index
    %81 = vector.load %arg7[%c0_78, %c0_79] : memref<256x128xf32, #tpu.memory_space<vmem>>, vector<256x128xf32>
    %82 = arith.addf %81, %80 : vector<256x128xf32>
    %c0_80 = arith.constant 0 : index
    %c0_81 = arith.constant 0 : index
    %83 = vector.load %arg7[%c0_80, %c0_81] : memref<256x128xf32, #tpu.memory_space<vmem>>, vector<256x128xf32>
    tpu.vector_store %arg7[%c0_80, %c0_81], %82 {strides = array<i32>} : memref<256x128xf32, #tpu.memory_space<vmem>>, vector<256x128xf32>,
    %c0_82 = arith.constant 0 : index
    %c0_83 = arith.constant 0 : index
    %84 = vector.load %arg7[%c0_82, %c0_83] : memref<256x128xf32, #tpu.memory_space<vmem>>, vector<256x128xf32>
    %c0_84 = arith.constant 0 : index
    %c0_85 = arith.constant 0 : index
    %85 = vector.load %arg5[%c0_84, %c0_85] : memref<1x128xf32, #tpu.memory_space<vmem>>, vector<1x128xf32>
    %86 = vector.broadcast %85 : vector<1x128xf32> to vector<256x128xf32>
    %87 = arith.addf %84, %86 : vector<256x128xf32>
    %88 = arith.addf %87, %12 : vector<256x128xf32>
    %cst_86 = arith.constant 0.000000e+00 : f32
    %89 = vector.broadcast %cst_86 : f32 to vector<256x128xf32>
    %90 = arith.maximumf %88, %89 : vector<256x128xf32>
    %91 = vector.shape_cast %90 : vector<256x128xf32> to vector<1x16x16x128xf32>
    %c0_87 = arith.constant 0 : index
    %c0_88 = arith.constant 0 : index
    %c0_89 = arith.constant 0 : index
    %c0_90 = arith.constant 0 : index
    %92 = vector.load %arg6[%c0_87, %c0_88, %c0_89, %c0_90] : memref<1x16x16x128xf32, #tpu.memory_space<vmem>>, vector<1x16x16x128xf32>
    tpu.vector_store %arg6[%c0_87, %c0_88, %c0_89, %c0_90], %91 {strides = array<i32>} : memref<1x16x16x128xf32, #tpu.memory_space<vmem>>, vector<1x16x16x128xf32>,
    return
  }
  func.func @transform_0(%arg0: i32) -> (i32, i32, i32, i32) {
    %c0_i32 = arith.constant 0 : i32
    %c0_i32_0 = arith.constant 0 : i32
    %c0_i32_1 = arith.constant 0 : i32
    %c0_i32_2 = arith.constant 0 : i32
    return %arg0, %c0_i32, %c0_i32_0, %c0_i32_1 : i32, i32, i32, i32
  }
  func.func @transform_1(%arg0: i32) -> (i32, i32, i32) {
    %c0_i32 = arith.constant 0 : i32
    %c0_i32_0 = arith.constant 0 : i32
    %c0_i32_1 = arith.constant 0 : i32
    %c0_i32_2 = arith.constant 0 : i32
    return %c0_i32, %c0_i32_0, %c0_i32_1 : i32, i32, i32
  }
  func.func @transform_2(%arg0: i32) -> (i32, i32, i32) {
    %c0_i32 = arith.constant 0 : i32
    %c0_i32_0 = arith.constant 0 : i32
    %c0_i32_1 = arith.constant 0 : i32
    %c0_i32_2 = arith.constant 0 : i32
    return %c0_i32, %c0_i32_0, %c0_i32_1 : i32, i32, i32
  }
  func.func @transform_3(%arg0: i32) -> (i32, i32) {
    %c0_i32 = arith.constant 0 : i32
    %c0_i32_0 = arith.constant 0 : i32
    %c0_i32_1 = arith.constant 0 : i32
    return %c0_i32, %c0_i32_0 : i32, i32
  }
  func.func @transform_4(%arg0: i32) -> (i32, i32) {
    %c0_i32 = arith.constant 0 : i32
    %c0_i32_0 = arith.constant 0 : i32
    %c0_i32_1 = arith.constant 0 : i32
    return %c0_i32, %c0_i32_0 : i32, i32
  }
  func.func @transform_5(%arg0: i32) -> (i32, i32, i32, i32) {
    %c0_i32 = arith.constant 0 : i32
    %c0_i32_0 = arith.constant 0 : i32
    %c0_i32_1 = arith.constant 0 : i32
    %c0_i32_2 = arith.constant 0 : i32
    return %arg0, %c0_i32, %c0_i32_0, %c0_i32_1 : i32, i32, i32, i32
  }
}

</mosaic_0001>

<llo_original>
// kernel: tpu_custom_call.1
$region0: #{tpu_custom_call.1}
  #allocation0 [shape = 'u32[]', space=smem, size = 0x4, offset = 0x4, fixed_abs, tag = 'smem constant byte address 0x4 - core index']
  #allocation1 [shape = 'u32[144,128]{1,0:T(1,128)}', space=vmem, size = 0x12000, scoped, tag = 'internal scratch']
  #allocation2 [shape = 'f32[256,128]{1,0:T(8,128)}', space=vmem, size = 0x20000, scoped, tag = 'scratch operand']
  #allocation3 [shape = 'f32[18,18,128]{2,1,0:T(8,128)}', space=vmem, size = 0x36000, scoped, tag = 'scratch operand']
  %s0 = inlined_call_operand.vmem [shape: f32[2,18,18,128], index: 0, kind: input, shape index: {}]
  %s1 = inlined_call_operand.vmem [shape: f32[3,384,128], index: 1, kind: input, shape index: {}]
  %s2 = inlined_call_operand.hbm [shape: f32[3,384,128], index: 2, kind: input, shape index: {}]
  %s3 = inlined_call_operand.vmem [shape: f32[1,128], index: 3, kind: input, shape index: {}]
  %s4 = inlined_call_operand.vmem [shape: f32[1,128], index: 4, kind: input, shape index: {}]
  %s5 = inlined_call_operand.hbm [shape: f32[2,16,16,128], index: 5, kind: output, shape index: {}]
  %s6 = sld [smem:[#allocation0]]
  $region57: #{tpu_custom_call.1} parent=0
    _
  %s8 = ssub.s32 1, %s6
  %s9 = scalar_select 0, %s8, %s6
  $region1: #{tpu_custom_call.1} parent=0
    #allocation4 [shape = 'u8[589824]{0}', space=vmem, size = 0x90000, scoped, tag = 'input window, operand 2, single buffered']
    #allocation5 [shape = 's32[2]{0}', space=sflag, size = 0x8, scoped, tag = 'scoped memory for tpu_custom_call.1']
    #allocation6 [shape = 's32[2]{0}', space=sflag, size = 0x8, scoped, tag = 'scoped memory for tpu_custom_call.1']
    #allocation7 [shape = 'u8[262144]{0}', space=vmem, size = 0x40000, scoped, tag = 'output window, operand 0']
    %10 = vsyncpa [#allocation5], 0
    %11 = vsyncpa [#allocation6], 0
    %s12 = scalar_lea.sflag [#allocation6], 1
    %13 = vsyncpa %s12, 0
    loop: start=0, step=1, limit=4
    $region2: #{tpu_custom_call.1} parent=1 // loop_pre_header
      _
    $region3: #{tpu_custom_call.1} parent=1 // loop_header
      %s15 = sphi 0, %s19
      %p16 = scmp.ge.s32.totalorder %s15, 4
      %s25 = sphi 0, %s27
      %s28 = sphi 0, %s25
      %s29 = sphi 0, %s28
      %s45 = sphi 0, %s29
      %s49 = sphi 0, %s49
      %s51 = sphi 0, %s49
      %s52 = sphi 0, %s51
      %s66 = sphi 0, %s52
      %s70 = sphi 0, %s70
      %s72 = sphi 0, %s70
      %s73 = sphi 0, %s72
      %s87 = sphi 0, %s73
      %s91 = sphi 0, %s91
      %s93 = sphi 0, %s91
      %s94 = sphi 0, %s93
      %s108 = sphi 0, %s94
      %s112 = sphi 0, %s112
      %s114 = sphi 0, %s112
      %s115 = sphi 0, %s114
      %s129 = sphi 0, %s115
      %s135 = sphi 0, %s137
      %s138 = sphi 0, %s135
      %s139 = sphi 0, %s138
      %s155 = sphi 0, %s139
    $region4: #{tpu_custom_call.1} parent=1 // loop_header_branch
      %18 = sbr.rel (%p16) target = $region8
    $region5: #{tpu_custom_call.1} parent=1 // loop_body
      %s20 = ssub.s32 %s15, 1
      %s21 = ssub.s32 %s15, 2
      %s22 = sadd.s32 %s15, 1
      %s23 = ssub.s32 %s15, %s22
      %p24 = scmp.eq.s32.totalorder %s23, 0
      %s26 = sadd.s32 %s25, 1
      %s27 = scalar_select %p24, %s25, %s26
      %p30 = pneg %p24
      %p31 = scmp.eq.s32.totalorder %s15, 1
      %p32 = por %p30, %p31
      %p33 = scmp.ne.s32.totalorder %s25, %s28
      %p34 = scmp.eq.s32.totalorder %s15, 0
      %p35 = por %p33, %p34
      %p36 = scmp.ne.s32.totalorder %s25, %s28
      %p37 = scmp.eq.s32.totalorder %s20, 1
      %p38 = por %p36, %p37
      %p39 = scmp.ne.s32.totalorder %s28, %s29
      %p40 = scmp.eq.s32.totalorder %s20, 0
      %p41 = por %p39, %p40
      %p42 = scmp.ne.s32.totalorder %s28, %s29
      %p43 = scmp.eq.s32.totalorder %s21, 1
      %p44 = por %p42, %p43
      %p46 = scmp.ne.s32.totalorder %s29, %s45
      %p47 = scmp.eq.s32.totalorder %s21, 0
      %p48 = por %p46, %p47
      %s50 = sadd.s32 %s49, 1
      %p53 = scmp.eq.s32.totalorder %s15, 1
      %p54 = scmp.ne.s32.totalorder %s49, %s51
      %p55 = scmp.eq.s32.totalorder %s15, 0
      %p56 = por %p54, %p55
      %p57 = scmp.ne.s32.totalorder %s49, %s51
      %p58 = scmp.eq.s32.totalorder %s20, 1
      %p59 = por %p57, %p58
      %p60 = scmp.ne.s32.totalorder %s51, %s52
      %p61 = scmp.eq.s32.totalorder %s20, 0
      %p62 = por %p60, %p61
      %p63 = scmp.ne.s32.totalorder %s51, %s52
      %p64 = scmp.eq.s32.totalorder %s21, 1
      %p65 = por %p63, %p64
      %p67 = scmp.ne.s32.totalorder %s52, %s66
      %p68 = scmp.eq.s32.totalorder %s21, 0
      %p69 = por %p67, %p68
      %s71 = sadd.s32 %s70, 1
      %p74 = scmp.eq.s32.totalorder %s15, 1
      %p75 = scmp.ne.s32.totalorder %s70, %s72
      %p76 = scmp.eq.s32.totalorder %s15, 0
      %p77 = por %p75, %p76
      %p78 = scmp.ne.s32.totalorder %s70, %s72
      %p79 = scmp.eq.s32.totalorder %s20, 1
      %p80 = por %p78, %p79
      %p81 = scmp.ne.s32.totalorder %s72, %s73
      %p82 = scmp.eq.s32.totalorder %s20, 0
      %p83 = por %p81, %p82
      %p84 = scmp.ne.s32.totalorder %s72, %s73
      %p85 = scmp.eq.s32.totalorder %s21, 1
      %p86 = por %p84, %p85
      %p88 = scmp.ne.s32.totalorder %s73, %s87
      %p89 = scmp.eq.s32.totalorder %s21, 0
      %p90 = por %p88, %p89
      %s92 = sadd.s32 %s91, 1
      %p95 = scmp.eq.s32.totalorder %s15, 1
      %p96 = scmp.ne.s32.totalorder %s91, %s93
      %p97 = scmp.eq.s32.totalorder %s15, 0
      %p98 = por %p96, %p97
      %p99 = scmp.ne.s32.totalorder %s91, %s93
      %p100 = scmp.eq.s32.totalorder %s20, 1
      %p101 = por %p99, %p100
      %p102 = scmp.ne.s32.totalorder %s93, %s94
      %p103 = scmp.eq.s32.totalorder %s20, 0
      %p104 = por %p102, %p103
      %p105 = scmp.ne.s32.totalorder %s93, %s94
      %p106 = scmp.eq.s32.totalorder %s21, 1
      %p107 = por %p105, %p106
      %p109 = scmp.ne.s32.totalorder %s94, %s108
      %p110 = scmp.eq.s32.totalorder %s21, 0
      %p111 = por %p109, %p110
      %s113 = sadd.s32 %s112, 1
      %p116 = scmp.eq.s32.totalorder %s15, 1
      %p117 = scmp.ne.s32.totalorder %s112, %s114
      %p118 = scmp.eq.s32.totalorder %s15, 0
      %p119 = por %p117, %p118
      %p120 = scmp.ne.s32.totalorder %s112, %s114
      %p121 = scmp.eq.s32.totalorder %s20, 1
      %p122 = por %p120, %p121
      %p123 = scmp.ne.s32.totalorder %s114, %s115
      %p124 = scmp.eq.s32.totalorder %s20, 0
      %p125 = por %p123, %p124
      %p126 = scmp.ne.s32.totalorder %s114, %s115
      %p127 = scmp.eq.s32.totalorder %s21, 1
      %p128 = por %p126, %p127
      %p130 = scmp.ne.s32.totalorder %s115, %s129
      %p131 = scmp.eq.s32.totalorder %s21, 0
      %p132 = por %p130, %p131
      %s133 = ssub.s32 %s15, %s22
      %p134 = scmp.eq.s32.totalorder %s133, 0
      %s136 = sadd.s32 %s135, 1
      %s137 = scalar_select %p134, %s135, %s136
      %p140 = pneg %p134
      %p141 = scmp.eq.s32.totalorder %s15, 1
      %p142 = por %p140, %p141
      %p143 = scmp.ne.s32.totalorder %s135, %s138
      %p144 = scmp.eq.s32.totalorder %s15, 0
      %p145 = por %p143, %p144
      %p146 = scmp.ne.s32.totalorder %s135, %s138
      %p147 = scmp.eq.s32.totalorder %s20, 1
      %p148 = por %p146, %p147
      %p149 = scmp.ne.s32.totalorder %s138, %s139
      %p150 = scmp.eq.s32.totalorder %s20, 0
      %p151 = por %p149, %p150
      %p152 = scmp.ne.s32.totalorder %s138, %s139
      %p153 = scmp.eq.s32.totalorder %s21, 1
      %p154 = por %p152, %p153
      %p156 = scmp.ne.s32.totalorder %s139, %s155
      %p157 = scmp.eq.s32.totalorder %s21, 0
      %p158 = por %p156, %p157
      %p159 = scmp.le.s32.totalorder 1, %s15
      %p160 = scmp.lt.s32.totalorder %s15, 3
      %p161 = pnand %p159, %p160
      %p162 = pneg %p161
      // Predicated region
      $region9: #{tpu_custom_call.1} parent=5 // pred_check
        _
      $region10: #{tpu_custom_call.1} parent=5 // pred_check_branch
        %164 = sbr.rel (%p161) target = $region12
      $region11: #{tpu_custom_call.1} parent=5 // pred_region
        %s165 = ssub.s32 %s15, 1
        // Predicated region
        $region13: #{tpu_custom_call.1} parent=11 // pred_check
          %p166 = pneg %p62
        $region14: #{tpu_custom_call.1} parent=11 // pred_check_branch
          %168 = sbr.rel (%p166) target = $region16
        $region15: #{tpu_custom_call.1} parent=11 // pred_region
          _
        $region16: #{tpu_custom_call.1} parent=11 // pred_fallthru
          _
        // Predicated region
        $region17: #{tpu_custom_call.1} parent=11 // pred_check
          %p169 = pneg %p83
        $region18: #{tpu_custom_call.1} parent=11 // pred_check_branch
          %171 = sbr.rel (%p169) target = $region20
        $region19: #{tpu_custom_call.1} parent=11 // pred_region
          %s173 = ssub.s32 18432, 18432
          %174 = vsyncadd [#allocation5], %s173
          %s175 = sshll.u32 [#allocation4], 4
          %s176 = int_to_ptr.vmem [resolvable:$true] %s175
          %181 = dma.hbm_to_vmem [thread:$0]  %s2, 18432, %s176, [#allocation5], 128, 128, 8
        $region20: #{tpu_custom_call.1} parent=11 // pred_fallthru
          _
        // Predicated region
        $region21: #{tpu_custom_call.1} parent=11 // pred_check
          %p182 = pneg %p104
        $region22: #{tpu_custom_call.1} parent=11 // pred_check_branch
          %184 = sbr.rel (%p182) target = $region24
        $region23: #{tpu_custom_call.1} parent=11 // pred_region
          _
        $region24: #{tpu_custom_call.1} parent=11 // pred_fallthru
          _
        // Predicated region
        $region25: #{tpu_custom_call.1} parent=11 // pred_check
          %p185 = pneg %p125
        $region26: #{tpu_custom_call.1} parent=11 // pred_check_branch
          %187 = sbr.rel (%p185) target = $region28
        $region27: #{tpu_custom_call.1} parent=11 // pred_region
          _
        $region28: #{tpu_custom_call.1} parent=11 // pred_fallthru
          _
      $region12: #{tpu_custom_call.1} parent=5 // pred_fallthru
        _
      %p188 = scmp.lt.s32.totalorder %s15, 2
      // Predicated region
      $region29: #{tpu_custom_call.1} parent=5 // pred_check
        %p189 = pneg %p188
      $region30: #{tpu_custom_call.1} parent=5 // pred_check_branch
        %191 = sbr.rel (%p189) target = $region32
      $region31: #{tpu_custom_call.1} parent=5 // pred_region
        // Predicated region
        $region33: #{tpu_custom_call.1} parent=31 // pred_check
          %p192 = pneg %p35
        $region34: #{tpu_custom_call.1} parent=31 // pred_check_branch
          %194 = sbr.rel (%p192) target = $region36
        $region35: #{tpu_custom_call.1} parent=31 // pred_region
          %p195 = scmp.lt.s32.totalorder %s15, 1
          %s196 = scalar_select %p195, %s15, 1
          %s197 = smul.addr %s196, 54
          %s198 = smul.addr %s197, 8
          %s199 = scalar_lea.vmem %s0, %s198
        $region36: #{tpu_custom_call.1} parent=31 // pred_fallthru
          _
      $region32: #{tpu_custom_call.1} parent=5 // pred_fallthru
        _
      %p200 = scmp.le.s32.totalorder 1, %s15
      %p201 = scmp.lt.s32.totalorder %s15, 3
      %p202 = pnand %p200, %p201
      %p203 = pneg %p202
      // Predicated region
      $region37: #{tpu_custom_call.1} parent=5 // pred_check
        _
      $region38: #{tpu_custom_call.1} parent=5 // pred_check_branch
        %205 = sbr.rel (%p202) target = $region40
      $region39: #{tpu_custom_call.1} parent=5 // pred_region
        %s206 = ssub.s32 %s15, 1
        // Predicated region
        $region41: #{tpu_custom_call.1} parent=39 // pred_check
          %p207 = pneg %p83
        $region42: #{tpu_custom_call.1} parent=39 // pred_check_branch
          %209 = sbr.rel (%p207) target = $region44
        $region43: #{tpu_custom_call.1} parent=39 // pred_region
          %210 = dma.done [#allocation5], 18432
        $region44: #{tpu_custom_call.1} parent=39 // pred_fallthru
          _
        %p211 = scmp.lt.s32.totalorder %s20, 1
        %s212 = scalar_select %p211, %s20, 1
        %s213 = smul.addr %s212, 54
        %s214 = smul.addr %s213, 8
        %s215 = scalar_lea.vmem %s0, %s214
        %p216 = pneg %p41
        %p217 = pneg %p38
        %p218 = pneg %p62
        %p219 = pneg %p59
        %p220 = pneg %p83
        %p221 = pneg %p80
        %p222 = pneg %p104
        %p223 = pneg %p101
        %p224 = pneg %p125
        %p225 = pneg %p122
        %p226 = pneg %p151
        %p227 = pneg %p148
        %s228 = sand.u32 %s138, 1
        %s229 = scalar_lea.sflag [#allocation6], %s228
        %s230 = sand.u32 %s138, 1
        %s231 = smul.addr %s230, 256
        %s232 = scalar_lea.vmem [#allocation7], %s231
        %p233 = scmp.lt.s32.totalorder %s20, 1
        %s234 = scalar_select %p233, %s20, 1
        %s235 = smul.addr %s234, 54
        %s236 = smul.addr %s235, 8
        %s237 = scalar_lea.vmem %s0, %s236
        %v238 = vld [vmem:[%s237] sm:$0xff]
        %v239 = vld [vmem:[%s237 + $0x8] sm:$0xff]
        %v240 = vld [vmem:[%s237 + $0x18] sm:$0xff]
        %v241 = vld [vmem:[%s237 + $0x20] sm:$0xff]
        %v242 = vld [vmem:[%s237 + $0x30] sm:$0xff]
        %v243 = vld [vmem:[%s237 + $0x38] sm:$0xff]
        %v244 = vld [vmem:[%s237 + $0x48] sm:$0xff]
        %v245 = vld [vmem:[%s237 + $0x50] sm:$0xff]
        %v246 = vld [vmem:[%s237 + $0x60] sm:$0xff]
        %v247 = vld [vmem:[%s237 + $0x68] sm:$0xff]
        %v248 = vld [vmem:[%s237 + $0x78] sm:$0xff]
        %v249 = vld [vmem:[%s237 + $0x80] sm:$0xff]
        %v250 = vld [vmem:[%s237 + $0x90] sm:$0xff]
        %v251 = vld [vmem:[%s237 + $0x98] sm:$0xff]
        %v252 = vld [vmem:[%s237 + $0xa8] sm:$0xff]
        %v253 = vld [vmem:[%s237 + $0xb0] sm:$0xff]
        %v254 = vld [vmem:[%s237 + $0xc0] sm:$0xff]
        %v255 = vld [vmem:[%s237 + $0xc8] sm:$0xff]
        %v256 = vld [vmem:[%s237 + $0xd8] sm:$0xff]
        %v257 = vld [vmem:[%s237 + $0xe0] sm:$0xff]
        %v258 = vld [vmem:[%s237 + $0xf0] sm:$0xff]
        %v259 = vld [vmem:[%s237 + $0xf8] sm:$0xff]
        %v260 = vld [vmem:[%s237 + $0x108] sm:$0xff]
        %v261 = vld [vmem:[%s237 + $0x110] sm:$0xff]
        %v262 = vld [vmem:[%s237 + $0x120] sm:$0xff]
        %v263 = vld [vmem:[%s237 + $0x128] sm:$0xff]
        %v264 = vld [vmem:[%s237 + $0x138] sm:$0xff]
        %v265 = vld [vmem:[%s237 + $0x140] sm:$0xff]
        %v266 = vld [vmem:[%s237 + $0x150] sm:$0xff]
        %v267 = vld [vmem:[%s237 + $0x158] sm:$0xff]
        %v268 = vld [vmem:[%s237 + $0x168] sm:$0xff]
        %v269 = vld [vmem:[%s237 + $0x170] sm:$0xff]
        %v270 = vld [vmem:[%s237 + $0x180] sm:$0xff]
        %v271 = vld [vmem:[%s237 + $0x188] sm:$0xff]
        %v272 = vld [vmem:[%s237 + $0x198] sm:$0xff]
        %v273 = vld [vmem:[%s237 + $0x1a0] sm:$0xff]
        %v274 = vld [vmem:[%s1] sm:$0xff]
        %v275 = vld [vmem:[%s1 + $0x8] sm:$0xff]
        %v276 = vld [vmem:[%s1 + $0x10] sm:$0xff]
        %v277 = vld [vmem:[%s1 + $0x18] sm:$0xff]
        %v278 = vld [vmem:[%s1 + $0x20] sm:$0xff]
        %v279 = vld [vmem:[%s1 + $0x28] sm:$0xff]
        %v280 = vld [vmem:[%s1 + $0x30] sm:$0xff]
        %v281 = vld [vmem:[%s1 + $0x38] sm:$0xff]
        %v282 = vld [vmem:[%s1 + $0x40] sm:$0xff]
        %v283 = vld [vmem:[%s1 + $0x48] sm:$0xff]
        %v284 = vld [vmem:[%s1 + $0x50] sm:$0xff]
        %v285 = vld [vmem:[%s1 + $0x58] sm:$0xff]
        %v286 = vld [vmem:[%s1 + $0x60] sm:$0xff]
        %v287 = vld [vmem:[%s1 + $0x68] sm:$0xff]
        %v288 = vld [vmem:[%s1 + $0x70] sm:$0xff]
        %v289 = vld [vmem:[%s1 + $0x78] sm:$0xff]
        %v290 = vld [vmem:[%s1 + $0x80] sm:$0xff]
        %v291 = vld [vmem:[%s1 + $0x88] sm:$0xff]
        %v292 = vld [vmem:[%s1 + $0x90] sm:$0xff]
        %v293 = vld [vmem:[%s1 + $0x98] sm:$0xff]
        %v294 = vld [vmem:[%s1 + $0xa0] sm:$0xff]
        %v295 = vld [vmem:[%s1 + $0xa8] sm:$0xff]
        %v296 = vld [vmem:[%s1 + $0xb0] sm:$0xff]
        %v297 = vld [vmem:[%s1 + $0xb8] sm:$0xff]
        %v298 = vld [vmem:[%s1 + $0xc0] sm:$0xff]
        %v299 = vld [vmem:[%s1 + $0xc8] sm:$0xff]
        %v300 = vld [vmem:[%s1 + $0xd0] sm:$0xff]
        %v301 = vld [vmem:[%s1 + $0xd8] sm:$0xff]
        %v302 = vld [vmem:[%s1 + $0xe0] sm:$0xff]
        %v303 = vld [vmem:[%s1 + $0xe8] sm:$0xff]
        %v304 = vld [vmem:[%s1 + $0xf0] sm:$0xff]
        %v305 = vld [vmem:[%s1 + $0xf8] sm:$0xff]
        %v306 = vld [vmem:[%s1 + $0x100] sm:$0xff]
        %v307 = vld [vmem:[%s1 + $0x108] sm:$0xff]
        %v308 = vld [vmem:[%s1 + $0x110] sm:$0xff]
        %v309 = vld [vmem:[%s1 + $0x118] sm:$0xff]
        %v310 = vld [vmem:[%s1 + $0x120] sm:$0xff]
        %v311 = vld [vmem:[%s1 + $0x128] sm:$0xff]
        %v312 = vld [vmem:[%s1 + $0x130] sm:$0xff]
        %v313 = vld [vmem:[%s1 + $0x138] sm:$0xff]
        %v314 = vld [vmem:[%s1 + $0x140] sm:$0xff]
        %v315 = vld [vmem:[%s1 + $0x148] sm:$0xff]
        %v316 = vld [vmem:[%s1 + $0x150] sm:$0xff]
        %v317 = vld [vmem:[%s1 + $0x158] sm:$0xff]
        %v318 = vld [vmem:[%s1 + $0x160] sm:$0xff]
        %v319 = vld [vmem:[%s1 + $0x168] sm:$0xff]
        %v320 = vld [vmem:[%s1 + $0x170] sm:$0xff]
        %v321 = vld [vmem:[%s1 + $0x178] sm:$0xff]
        %322 = vmatprep.subr.mxu0 0.0
        %323 = vmatpush1.msra.mxu0 %v274
        %324 = vmatprep.subr.mxu0 0.0
        %325 = vmatpush1.msra.mxu0 %v275
        %326 = vmatprep.subr.mxu0 0.0
        %327 = vmatpush1.msra.mxu0 %v276
        %328 = vmatprep.subr.mxu0 0.0
        %329 = vmatpush1.msra.mxu0 %v277
        %330 = vmatprep.subr.mxu0 0.0
        %331 = vmatpush1.msra.mxu0 %v278
        %332 = vmatprep.subr.mxu0 0.0
        %333 = vmatpush1.msra.mxu0 %v279
        %334 = vmatprep.subr.mxu0 0.0
        %335 = vmatpush1.msra.mxu0 %v280
        %336 = vmatprep.subr.mxu0 0.0
        %337 = vmatpush1.msra.mxu0 %v281
        %338 = vmatprep.subr.mxu0 0.0
        %339 = vmatpush1.msra.mxu0 %v282
        %340 = vmatprep.subr.mxu0 0.0
        %341 = vmatpush1.msra.mxu0 %v283
        %342 = vmatprep.subr.mxu0 0.0
        %343 = vmatpush1.msra.mxu0 %v284
        %344 = vmatprep.subr.mxu0 0.0
        %345 = vmatpush1.msra.mxu0 %v285
        %346 = vmatprep.subr.mxu0 0.0
        %347 = vmatpush1.msra.mxu0 %v286
        %348 = vmatprep.subr.mxu0 0.0
        %349 = vmatpush1.msra.mxu0 %v287
        %350 = vmatprep.subr.mxu0 0.0
        %351 = vmatpush1.msra.mxu0 %v288
        %352 = vmatprep.subr.mxu0 0.0
        %353 = vmatpush1.msra.mxu0 %v289
        %354 = vmatprep.subr.mxu0 0.0
        %355 = vmatpush1.msra.mxu0 %v290
        %356 = vmatprep.subr.mxu0 0.0
        %357 = vmatpush1.msra.mxu0 %v291
        %358 = vmatprep.subr.mxu0 0.0
        %359 = vmatpush1.msra.mxu0 %v292
        %360 = vmatprep.subr.mxu0 0.0
        %361 = vmatpush1.msra.mxu0 %v293
        %362 = vmatprep.subr.mxu0 0.0
        %363 = vmatpush1.msra.mxu0 %v294
        %364 = vmatprep.subr.mxu0 0.0
        %365 = vmatpush1.msra.mxu0 %v295
        %366 = vmatprep.subr.mxu0 0.0
        %367 = vmatpush1.msra.mxu0 %v296
        %368 = vmatprep.subr.mxu0 0.0
        %369 = vmatpush1.msra.mxu0 %v297
        %370 = vmatprep.subr.mxu0 0.0
        %371 = vmatpush1.msra.mxu0 %v298
        %372 = vmatprep.subr.mxu0 0.0
        %373 = vmatpush1.msra.mxu0 %v299
        %374 = vmatprep.subr.mxu0 0.0
        %375 = vmatpush1.msra.mxu0 %v300
        %376 = vmatprep.subr.mxu0 0.0
        %377 = vmatpush1.msra.mxu0 %v301
        %378 = vmatprep.subr.mxu0 0.0
        %379 = vmatpush1.msra.mxu0 %v302
        %380 = vmatprep.subr.mxu0 0.0
        %381 = vmatpush1.msra.mxu0 %v303
        %382 = vmatprep.subr.mxu0 0.0
        %383 = vmatpush1.msra.mxu0 %v304
        %384 = vmatprep.subr.mxu0 0.0
        %385 = vmatpush1.msra.mxu0 %v305
        %386 = vmatprep.mubr.f32.mxu0 %v240
        %387 = vmatmul.mubr.f32.gmra.mrb[0].mxu0 %v238
        %v388 = vpop.f32.mrb[0].mxu0
        %v389 = vadd.f32 0.0, %v388
        %v390 = vpop.f32.mrb[0].mxu0
        %391 = vmatprep.mubr.f32.mxu0 %v241
        %392 = vmatmul.mubr.f32.gmra.mrb[0].mxu0 %v239
        %v393 = vpop.f32.mrb[0].mxu0
        %v394 = vadd.f32 0.0, %v393
        %v395 = vpop.f32.mrb[0].mxu0
        %396 = vmatprep.mubr.f32.mxu0 %v242
        %397 = vmatmul.mubr.f32.gmra.mrb[0].mxu0 %v240
        %v398 = vpop.f32.mrb[0].mxu0
        %v399 = vadd.f32 0.0, %v398
        %v400 = vpop.f32.mrb[0].mxu0
        %401 = vmatprep.mubr.f32.mxu0 %v243
        %402 = vmatmul.mubr.f32.gmra.mrb[0].mxu0 %v241
        %v403 = vpop.f32.mrb[0].mxu0
        %v404 = vadd.f32 0.0, %v403
        %v405 = vpop.f32.mrb[0].mxu0
        %406 = vmatprep.mubr.f32.mxu0 %v244
        %407 = vmatmul.mubr.f32.gmra.mrb[0].mxu0 %v242
        %v408 = vpop.f32.mrb[0].mxu0
        %v409 = vadd.f32 0.0, %v408
        %v410 = vpop.f32.mrb[0].mxu0
        %411 = vmatprep.mubr.f32.mxu0 %v245
        %412 = vmatmul.mubr.f32.gmra.mrb[0].mxu0 %v243
        %v413 = vpop.f32.mrb[0].mxu0
        %v414 = vadd.f32 0.0, %v413
        %v415 = vpop.f32.mrb[0].mxu0
        %416 = vmatprep.mubr.f32.mxu0 %v246
        %417 = vmatmul.mubr.f32.gmra.mrb[0].mxu0 %v244
        %v418 = vpop.f32.mrb[0].mxu0
        %v419 = vadd.f32 0.0, %v418
        %v420 = vpop.f32.mrb[0].mxu0
        %421 = vmatprep.mubr.f32.mxu0 %v247
        %422 = vmatmul.mubr.f32.gmra.mrb[0].mxu0 %v245
        %v423 = vpop.f32.mrb[0].mxu0
        %v424 = vadd.f32 0.0, %v423
        %v425 = vpop.f32.mrb[0].mxu0
        %426 = vmatprep.mubr.f32.mxu0 %v248
        %427 = vmatmul.mubr.f32.gmra.mrb[0].mxu0 %v246
        %v428 = vpop.f32.mrb[0].mxu0
        %v429 = vadd.f32 0.0, %v428
        %v430 = vpop.f32.mrb[0].mxu0
        %431 = vmatprep.mubr.f32.mxu0 %v249
        %432 = vmatmul.mubr.f32.gmra.mrb[0].mxu0 %v247
        %v433 = vpop.f32.mrb[0].mxu0
        %v434 = vadd.f32 0.0, %v433
        %v435 = vpop.f32.mrb[0].mxu0
        %436 = vmatprep.mubr.f32.mxu0 %v250
        %437 = vmatmul.mubr.f32.gmra.mrb[0].mxu0 %v248
        %v438 = vpop.f32.mrb[0].mxu0
        %v439 = vadd.f32 0.0, %v438
        %v440 = vpop.f32.mrb[0].mxu0
        %441 = vmatprep.mubr.f32.mxu0 %v251
        %442 = vmatmul.mubr.f32.gmra.mrb[0].mxu0 %v249
        %v443 = vpop.f32.mrb[0].mxu0
        %v444 = vadd.f32 0.0, %v443
        %v445 = vpop.f32.mrb[0].mxu0
        %446 = vmatprep.mubr.f32.mxu0 %v252
        %447 = vmatmul.mubr.f32.gmra.mrb[0].mxu0 %v250
        %v448 = vpop.f32.mrb[0].mxu0
        %v449 = vadd.f32 0.0, %v448
        %v450 = vpop.f32.mrb[0].mxu0
        %451 = vmatprep.mubr.f32.mxu0 %v253
        %452 = vmatmul.mubr.f32.gmra.mrb[0].mxu0 %v251
        %v453 = vpop.f32.mrb[0].mxu0
        %v454 = vadd.f32 0.0, %v453
        %v455 = vpop.f32.mrb[0].mxu0
        %456 = vmatprep.mubr.f32.mxu0 %v254
        %457 = vmatmul.mubr.f32.gmra.mrb[0].mxu0 %v252
        %v458 = vpop.f32.mrb[0].mxu0
        %v459 = vadd.f32 0.0, %v458
        %v460 = vpop.f32.mrb[0].mxu0
        %461 = vmatprep.mubr.f32.mxu0 %v255
        %462 = vmatmul.mubr.f32.gmra.mrb[0].mxu0 %v253
        %v463 = vpop.f32.mrb[0].mxu0
        %v464 = vadd.f32 0.0, %v463
        %v465 = vpop.f32.mrb[0].mxu0
        %466 = vmatprep.mubr.f32.mxu0 %v256
        %467 = vmatmul.mubr.f32.gmra.mrb[0].mxu0 %v254
        %v468 = vpop.f32.mrb[0].mxu0
        %v469 = vadd.f32 0.0, %v468
        %v470 = vpop.f32.mrb[0].mxu0
        %471 = vmatprep.mubr.f32.mxu0 %v257
        %472 = vmatmul.mubr.f32.gmra.mrb[0].mxu0 %v255
        %v473 = vpop.f32.mrb[0].mxu0
        %v474 = vadd.f32 0.0, %v473
        %v475 = vpop.f32.mrb[0].mxu0
        %476 = vmatprep.mubr.f32.mxu0 %v258
        %477 = vmatmul.mubr.f32.gmra.mrb[0].mxu0 %v256
        %v478 = vpop.f32.mrb[0].mxu0
        %v479 = vadd.f32 0.0, %v478
        %v480 = vpop.f32.mrb[0].mxu0
        %481 = vmatprep.mubr.f32.mxu0 %v259
        %482 = vmatmul.mubr.f32.gmra.mrb[0].mxu0 %v257
        %v483 = vpop.f32.mrb[0].mxu0
        %v484 = vadd.f32 0.0, %v483
        %v485 = vpop.f32.mrb[0].mxu0
        %486 = vmatprep.mubr.f32.mxu0 %v260
        %487 = vmatmul.mubr.f32.gmra.mrb[0].mxu0 %v258
        %v488 = vpop.f32.mrb[0].mxu0
        %v489 = vadd.f32 0.0, %v488
        %v490 = vpop.f32.mrb[0].mxu0
        %491 = vmatprep.mubr.f32.mxu0 %v261
        %492 = vmatmul.mubr.f32.gmra.mrb[0].mxu0 %v259
        %v493 = vpop.f32.mrb[0].mxu0
        %v494 = vadd.f32 0.0, %v493
        %v495 = vpop.f32.mrb[0].mxu0
        %496 = vmatprep.mubr.f32.mxu0 %v262
        %497 = vmatmul.mubr.f32.gmra.mrb[0].mxu0 %v260
        %v498 = vpop.f32.mrb[0].mxu0
        %v499 = vadd.f32 0.0, %v498
        %v500 = vpop.f32.mrb[0].mxu0
        %501 = vmatprep.mubr.f32.mxu0 %v263
        %502 = vmatmul.mubr.f32.gmra.mrb[0].mxu0 %v261
        %v503 = vpop.f32.mrb[0].mxu0
        %v504 = vadd.f32 0.0, %v503
        %v505 = vpop.f32.mrb[0].mxu0
        %506 = vmatprep.mubr.f32.mxu0 %v264
        %507 = vmatmul.mubr.f32.gmra.mrb[0].mxu0 %v262
        %v508 = vpop.f32.mrb[0].mxu0
        %v509 = vadd.f32 0.0, %v508
        %v510 = vpop.f32.mrb[0].mxu0
        %511 = vmatprep.mubr.f32.mxu0 %v265
        %512 = vmatmul.mubr.f32.gmra.mrb[0].mxu0 %v263
        %v513 = vpop.f32.mrb[0].mxu0
        %v514 = vadd.f32 0.0, %v513
        %v515 = vpop.f32.mrb[0].mxu0
        %516 = vmatprep.mubr.f32.mxu0 %v266
        %517 = vmatmul.mubr.f32.gmra.mrb[0].mxu0 %v264
        %v518 = vpop.f32.mrb[0].mxu0
        %v519 = vadd.f32 0.0, %v518
        %v520 = vpop.f32.mrb[0].mxu0
        %521 = vmatprep.mubr.f32.mxu0 %v267
        %522 = vmatmul.mubr.f32.gmra.mrb[0].mxu0 %v265
        %v523 = vpop.f32.mrb[0].mxu0
        %v524 = vadd.f32 0.0, %v523
        %v525 = vpop.f32.mrb[0].mxu0
        %526 = vmatprep.mubr.f32.mxu0 %v268
        %527 = vmatmul.mubr.f32.gmra.mrb[0].mxu0 %v266
        %v528 = vpop.f32.mrb[0].mxu0
        %v529 = vadd.f32 0.0, %v528
        %v530 = vpop.f32.mrb[0].mxu0
        %531 = vmatprep.mubr.f32.mxu0 %v269
        %532 = vmatmul.mubr.f32.gmra.mrb[0].mxu0 %v267
        %v533 = vpop.f32.mrb[0].mxu0
        %v534 = vadd.f32 0.0, %v533
        %v535 = vpop.f32.mrb[0].mxu0
        %536 = vmatprep.mubr.f32.mxu0 %v270
        %537 = vmatmul.mubr.f32.gmra.mrb[0].mxu0 %v268
        %v538 = vpop.f32.mrb[0].mxu0
        %v539 = vadd.f32 0.0, %v538
        %v540 = vpop.f32.mrb[0].mxu0
        %541 = vmatprep.mubr.f32.mxu0 %v271
        %542 = vmatmul.mubr.f32.gmra.mrb[0].mxu0 %v269
        %v543 = vpop.f32.mrb[0].mxu0
        %v544 = vadd.f32 0.0, %v543
        %v545 = vpop.f32.mrb[0].mxu0
        %546 = vdwg.mxu0
        %547 = vmatprep.subr.mxu0 0.0
        %548 = vmatpush1.msra.mxu0 %v306
        %549 = vmatprep.subr.mxu0 0.0
        %550 = vmatpush1.msra.mxu0 %v307
        %551 = vmatprep.subr.mxu0 0.0
        %552 = vmatpush1.msra.mxu0 %v308
        %553 = vmatprep.subr.mxu0 0.0
        %554 = vmatpush1.msra.mxu0 %v309
        %555 = vmatprep.subr.mxu0 0.0
        %556 = vmatpush1.msra.mxu0 %v310
        %557 = vmatprep.subr.mxu0 0.0
        %558 = vmatpush1.msra.mxu0 %v311
        %559 = vmatprep.subr.mxu0 0.0
        %560 = vmatpush1.msra.mxu0 %v312
        %561 = vmatprep.subr.mxu0 0.0
        %562 = vmatpush1.msra.mxu0 %v313
        %563 = vmatprep.subr.mxu0 0.0
        %564 = vmatpush1.msra.mxu0 %v314
        %565 = vmatprep.subr.mxu0 0.0
        %566 = vmatpush1.msra.mxu0 %v315
        %567 = vmatprep.subr.mxu0 0.0
        %568 = vmatpush1.msra.mxu0 %v316
        %569 = vmatprep.subr.mxu0 0.0
        %570 = vmatpush1.msra.mxu0 %v317
        %571 = vmatprep.subr.mxu0 0.0
        %572 = vmatpush1.msra.mxu0 %v318
        %573 = vmatprep.subr.mxu0 0.0
        %574 = vmatpush1.msra.mxu0 %v319
        %575 = vmatprep.subr.mxu0 0.0
        %576 = vmatpush1.msra.mxu0 %v320
        %577 = vmatprep.subr.mxu0 0.0
        %578 = vmatpush1.msra.mxu0 %v321
        %579 = vmatprep.subr.mxu0 0.0
        %580 = vmatpush1.msra.mxu0 0.0
        %581 = vmatprep.subr.mxu0 0.0
        %582 = vmatpush1.msra.mxu0 0.0
        %583 = vmatprep.subr.mxu0 0.0
        %584 = vmatpush1.msra.mxu0 0.0
        %585 = vmatprep.subr.mxu0 0.0
        %586 = vmatpush1.msra.mxu0 0.0
        %587 = vmatprep.subr.mxu0 0.0
        %588 = vmatpush1.msra.mxu0 0.0
        %589 = vmatprep.subr.mxu0 0.0
        %590 = vmatpush1.msra.mxu0 0.0
        %591 = vmatprep.subr.mxu0 0.0
        %592 = vmatpush1.msra.mxu0 0.0
        %593 = vmatprep.subr.mxu0 0.0
        %594 = vmatpush1.msra.mxu0 0.0
        %595 = vmatprep.subr.mxu0 0.0
        %596 = vmatpush1.msra.mxu0 0.0
        %597 = vmatprep.subr.mxu0 0.0
        %598 = vmatpush1.msra.mxu0 0.0
        %599 = vmatprep.subr.mxu0 0.0
        %600 = vmatpush1.msra.mxu0 0.0
        %601 = vmatprep.subr.mxu0 0.0
        %602 = vmatpush1.msra.mxu0 0.0
        %603 = vmatprep.subr.mxu0 0.0
        %604 = vmatpush1.msra.mxu0 0.0
        %605 = vmatprep.subr.mxu0 0.0
        %606 = vmatpush1.msra.mxu0 0.0
        %607 = vmatprep.subr.mxu0 0.0
        %608 = vmatpush1.msra.mxu0 0.0
        %609 = vmatprep.subr.mxu0 0.0
        %610 = vmatpush1.msra.mxu0 0.0
        %611 = vmatprep.mubr.f32.mxu0 0.0
        %612 = vmatmul.mubr.f32.gmra.mrb[0].mxu0 %v242
        %v613 = vpop.f32.mrb[0].mxu0
        %v614 = vadd.f32 %v389, %v613
        %v615 = vpop.f32.mrb[0].mxu0
        %616 = vmatprep.mubr.f32.mxu0 0.0
        %617 = vmatmul.mubr.f32.gmra.mrb[0].mxu0 %v243
        %v618 = vpop.f32.mrb[0].mxu0
        %v619 = vadd.f32 %v394, %v618
        %v620 = vpop.f32.mrb[0].mxu0
        %621 = vmatprep.mubr.f32.mxu0 0.0
        %622 = vmatmul.mubr.f32.gmra.mrb[0].mxu0 %v244
        %v623 = vpop.f32.mrb[0].mxu0
        %v624 = vadd.f32 %v399, %v623
        %v625 = vpop.f32.mrb[0].mxu0
        %626 = vmatprep.mubr.f32.mxu0 0.0
        %627 = vmatmul.mubr.f32.gmra.mrb[0].mxu0 %v245
        %v628 = vpop.f32.mrb[0].mxu0
        %v629 = vadd.f32 %v404, %v628
        %v630 = vpop.f32.mrb[0].mxu0
        %631 = vmatprep.mubr.f32.mxu0 0.0
        %632 = vmatmul.mubr.f32.gmra.mrb[0].mxu0 %v246
        %v633 = vpop.f32.mrb[0].mxu0
        %v634 = vadd.f32 %v409, %v633
        %v635 = vpop.f32.mrb[0].mxu0
        %636 = vmatprep.mubr.f32.mxu0 0.0
        %637 = vmatmul.mubr.f32.gmra.mrb[0].mxu0 %v247
        %v638 = vpop.f32.mrb[0].mxu0
        %v639 = vadd.f32 %v414, %v638
        %v640 = vpop.f32.mrb[0].mxu0
        %641 = vmatprep.mubr.f32.mxu0 0.0
        %642 = vmatmul.mubr.f32.gmra.mrb[0].mxu0 %v248
        %v643 = vpop.f32.mrb[0].mxu0
        %v644 = vadd.f32 %v419, %v643
        %v645 = vpop.f32.mrb[0].mxu0
        %646 = vmatprep.mubr.f32.mxu0 0.0
        %647 = vmatmul.mubr.f32.gmra.mrb[0].mxu0 %v249
        %v648 = vpop.f32.mrb[0].mxu0
        %v649 = vadd.f32 %v424, %v648
        %v650 = vpop.f32.mrb[0].mxu0
        %651 = vmatprep.mubr.f32.mxu0 0.0
        %652 = vmatmul.mubr.f32.gmra.mrb[0].mxu0 %v250
        %v653 = vpop.f32.mrb[0].mxu0
        %v654 = vadd.f32 %v429, %v653
        %v655 = vpop.f32.mrb[0].mxu0
        %656 = vmatprep.mubr.f32.mxu0 0.0
        %657 = vmatmul.mubr.f32.gmra.mrb[0].mxu0 %v251
        %v658 = vpop.f32.mrb[0].mxu0
        %v659 = vadd.f32 %v434, %v658
        %v660 = vpop.f32.mrb[0].mxu0
        %661 = vmatprep.mubr.f32.mxu0 0.0
        %662 = vmatmul.mubr.f32.gmra.mrb[0].mxu0 %v252
        %v663 = vpop.f32.mrb[0].mxu0
        %v664 = vadd.f32 %v439, %v663
        %v665 = vpop.f32.mrb[0].mxu0
        %666 = vmatprep.mubr.f32.mxu0 0.0
        %667 = vmatmul.mubr.f32.gmra.mrb[0].mxu0 %v253
        %v668 = vpop.f32.mrb[0].mxu0
        %v669 = vadd.f32 %v444, %v668
        %v670 = vpop.f32.mrb[0].mxu0
        %671 = vmatprep.mubr.f32.mxu0 0.0
        %672 = vmatmul.mubr.f32.gmra.mrb[0].mxu0 %v254
        %v673 = vpop.f32.mrb[0].mxu0
        %v674 = vadd.f32 %v449, %v673
        %v675 = vpop.f32.mrb[0].mxu0
        %676 = vmatprep.mubr.f32.mxu0 0.0
        %677 = vmatmul.mubr.f32.gmra.mrb[0].mxu0 %v255
        %v678 = vpop.f32.mrb[0].mxu0
        %v679 = vadd.f32 %v454, %v678
        %v680 = vpop.f32.mrb[0].mxu0
        %681 = vmatprep.mubr.f32.mxu0 0.0
        %682 = vmatmul.mubr.f32.gmra.mrb[0].mxu0 %v256
        %v683 = vpop.f32.mrb[0].mxu0
        %v684 = vadd.f32 %v459, %v683
        %v685 = vpop.f32.mrb[0].mxu0
        %686 = vmatprep.mubr.f32.mxu0 0.0
        %687 = vmatmul.mubr.f32.gmra.mrb[0].mxu0 %v257
        %v688 = vpop.f32.mrb[0].mxu0
        %v689 = vadd.f32 %v464, %v688
        %v690 = vpop.f32.mrb[0].mxu0
        %691 = vmatprep.mubr.f32.mxu0 0.0
        %692 = vmatmul.mubr.f32.gmra.mrb[0].mxu0 %v258
        %v693 = vpop.f32.mrb[0].mxu0
        %v694 = vadd.f32 %v469, %v693
        %v695 = vpop.f32.mrb[0].mxu0
        %696 = vmatprep.mubr.f32.mxu0 0.0
        %697 = vmatmul.mubr.f32.gmra.mrb[0].mxu0 %v259
        %v698 = vpop.f32.mrb[0].mxu0
        %v699 = vadd.f32 %v474, %v698
        %v700 = vpop.f32.mrb[0].mxu0
        %701 = vmatprep.mubr.f32.mxu0 0.0
        %702 = vmatmul.mubr.f32.gmra.mrb[0].mxu0 %v260
        %v703 = vpop.f32.mrb[0].mxu0
        %v704 = vadd.f32 %v479, %v703
        %v705 = vpop.f32.mrb[0].mxu0
        %706 = vmatprep.mubr.f32.mxu0 0.0
        %707 = vmatmul.mubr.f32.gmra.mrb[0].mxu0 %v261
        %v708 = vpop.f32.mrb[0].mxu0
        %v709 = vadd.f32 %v484, %v708
        %v710 = vpop.f32.mrb[0].mxu0
        %711 = vmatprep.mubr.f32.mxu0 0.0
        %712 = vmatmul.mubr.f32.gmra.mrb[0].mxu0 %v262
        %v713 = vpop.f32.mrb[0].mxu0
        %v714 = vadd.f32 %v489, %v713
        %v715 = vpop.f32.mrb[0].mxu0
        %716 = vmatprep.mubr.f32.mxu0 0.0
        %717 = vmatmul.mubr.f32.gmra.mrb[0].mxu0 %v263
        %v718 = vpop.f32.mrb[0].mxu0
        %v719 = vadd.f32 %v494, %v718
        %v720 = vpop.f32.mrb[0].mxu0
        %721 = vmatprep.mubr.f32.mxu0 0.0
        %722 = vmatmul.mubr.f32.gmra.mrb[0].mxu0 %v264
        %v723 = vpop.f32.mrb[0].mxu0
        %v724 = vadd.f32 %v499, %v723
        %v725 = vpop.f32.mrb[0].mxu0
        %726 = vmatprep.mubr.f32.mxu0 0.0
        %727 = vmatmul.mubr.f32.gmra.mrb[0].mxu0 %v265
        %v728 = vpop.f32.mrb[0].mxu0
        %v729 = vadd.f32 %v504, %v728
        %v730 = vpop.f32.mrb[0].mxu0
        %731 = vmatprep.mubr.f32.mxu0 0.0
        %732 = vmatmul.mubr.f32.gmra.mrb[0].mxu0 %v266
        %v733 = vpop.f32.mrb[0].mxu0
        %v734 = vadd.f32 %v509, %v733
        %v735 = vpop.f32.mrb[0].mxu0
        %736 = vmatprep.mubr.f32.mxu0 0.0
        %737 = vmatmul.mubr.f32.gmra.mrb[0].mxu0 %v267
        %v738 = vpop.f32.mrb[0].mxu0
        %v739 = vadd.f32 %v514, %v738
        %v740 = vpop.f32.mrb[0].mxu0
        %741 = vmatprep.mubr.f32.mxu0 0.0
        %742 = vmatmul.mubr.f32.gmra.mrb[0].mxu0 %v268
        %v743 = vpop.f32.mrb[0].mxu0
        %v744 = vadd.f32 %v519, %v743
        %v745 = vpop.f32.mrb[0].mxu0
        %746 = vmatprep.mubr.f32.mxu0 0.0
        %747 = vmatmul.mubr.f32.gmra.mrb[0].mxu0 %v269
        %v748 = vpop.f32.mrb[0].mxu0
        %v749 = vadd.f32 %v524, %v748
        %v750 = vpop.f32.mrb[0].mxu0
        %751 = vmatprep.mubr.f32.mxu0 0.0
        %752 = vmatmul.mubr.f32.gmra.mrb[0].mxu0 %v270
        %v753 = vpop.f32.mrb[0].mxu0
        %v754 = vadd.f32 %v529, %v753
        %v755 = vpop.f32.mrb[0].mxu0
        %756 = vmatprep.mubr.f32.mxu0 0.0
        %757 = vmatmul.mubr.f32.gmra.mrb[0].mxu0 %v271
        %v758 = vpop.f32.mrb[0].mxu0
        %v759 = vadd.f32 %v534, %v758
        %v760 = vpop.f32.mrb[0].mxu0
        %761 = vmatprep.mubr.f32.mxu0 0.0
        %762 = vmatmul.mubr.f32.gmra.mrb[0].mxu0 %v272
        %v763 = vpop.f32.mrb[0].mxu0
        %v764 = vadd.f32 %v539, %v763
        %v765 = vpop.f32.mrb[0].mxu0
        %766 = vmatprep.mubr.f32.mxu0 0.0
        %767 = vmatmul.mubr.f32.gmra.mrb[0].mxu0 %v273
        %v768 = vpop.f32.mrb[0].mxu0
        %v769 = vadd.f32 %v544, %v768
        %v770 = vpop.f32.mrb[0].mxu0
        %771 = vdwg.mxu0
        %772 = vst [vmem:[#allocation2] sm:$0xff] %v614
        %773 = vst [vmem:[#allocation2 + $0x8] sm:$0xff] %v619
        %774 = vst [vmem:[#allocation2 + $0x10] sm:$0xff] %v624
        %775 = vst [vmem:[#allocation2 + $0x18] sm:$0xff] %v629
        %776 = vst [vmem:[#allocation2 + $0x20] sm:$0xff] %v634
        %777 = vst [vmem:[#allocation2 + $0x28] sm:$0xff] %v639
        %778 = vst [vmem:[#allocation2 + $0x30] sm:$0xff] %v644
        %779 = vst [vmem:[#allocation2 + $0x38] sm:$0xff] %v649
        %780 = vst [vmem:[#allocation2 + $0x40] sm:$0xff] %v654
        %781 = vst [vmem:[#allocation2 + $0x48] sm:$0xff] %v659
        %782 = vst [vmem:[#allocation2 + $0x50] sm:$0xff] %v664
        %783 = vst [vmem:[#allocation2 + $0x58] sm:$0xff] %v669
        %784 = vst [vmem:[#allocation2 + $0x60] sm:$0xff] %v674
        %785 = vst [vmem:[#allocation2 + $0x68] sm:$0xff] %v679
        %786 = vst [vmem:[#allocation2 + $0x70] sm:$0xff] %v684
        %787 = vst [vmem:[#allocation2 + $0x78] sm:$0xff] %v689
        %788 = vst [vmem:[#allocation2 + $0x80] sm:$0xff] %v694
        %789 = vst [vmem:[#allocation2 + $0x88] sm:$0xff] %v699
        %790 = vst [vmem:[#allocation2 + $0x90] sm:$0xff] %v704
        %791 = vst [vmem:[#allocation2 + $0x98] sm:$0xff] %v709
        %792 = vst [vmem:[#allocation2 + $0xa0] sm:$0xff] %v714
        %793 = vst [vmem:[#allocation2 + $0xa8] sm:$0xff] %v719
        %794 = vst [vmem:[#allocation2 + $0xb0] sm:$0xff] %v724
        %795 = vst [vmem:[#allocation2 + $0xb8] sm:$0xff] %v729
        %796 = vst [vmem:[#allocation2 + $0xc0] sm:$0xff] %v734
        %797 = vst [vmem:[#allocation2 + $0xc8] sm:$0xff] %v739
        %798 = vst [vmem:[#allocation2 + $0xd0] sm:$0xff] %v744
        %799 = vst [vmem:[#allocation2 + $0xd8] sm:$0xff] %v749
        %800 = vst [vmem:[#allocation2 + $0xe0] sm:$0xff] %v754
        %801 = vst [vmem:[#allocation2 + $0xe8] sm:$0xff] %v759
        %802 = vst [vmem:[#allocation2 + $0xf0] sm:$0xff] %v764
        %803 = vst [vmem:[#allocation2 + $0xf8] sm:$0xff] %v769
        %v804 = vld [vmem:[%s237 + $0x1] sm:$0xff]
        %v805 = vld [vmem:[%s237 + $0x9] sm:$0xff]
        %v806 = vld [vmem:[%s237 + $0x19] sm:$0xff]
        %v807 = vld [vmem:[%s237 + $0x21] sm:$0xff]
        %v808 = vld [vmem:[%s237 + $0x31] sm:$0xff]
        %v809 = vld [vmem:[%s237 + $0x39] sm:$0xff]
        %v810 = vld [vmem:[%s237 + $0x49] sm:$0xff]
        %v811 = vld [vmem:[%s237 + $0x51] sm:$0xff]
        %v812 = vld [vmem:[%s237 + $0x61] sm:$0xff]
        %v813 = vld [vmem:[%s237 + $0x69] sm:$0xff]
        %v814 = vld [vmem:[%s237 + $0x79] sm:$0xff]
        %v815 = vld [vmem:[%s237 + $0x81] sm:$0xff]
        %v816 = vld [vmem:[%s237 + $0x91] sm:$0xff]
        %v817 = vld [vmem:[%s237 + $0x99] sm:$0xff]
        %v818 = vld [vmem:[%s237 + $0xa9] sm:$0xff]
        %v819 = vld [vmem:[%s237 + $0xb1] sm:$0xff]
        %v820 = vld [vmem:[%s237 + $0xc1] sm:$0xff]
        %v821 = vld [vmem:[%s237 + $0xc9] sm:$0xff]
        %v822 = vld [vmem:[%s237 + $0xd9] sm:$0xff]
        %v823 = vld [vmem:[%s237 + $0xe1] sm:$0xff]
        %v824 = vld [vmem:[%s237 + $0xf1] sm:$0xff]
        %v825 = vld [vmem:[%s237 + $0xf9] sm:$0xff]
        %v826 = vld [vmem:[%s237 + $0x109] sm:$0xff]
        %v827 = vld [vmem:[%s237 + $0x111] sm:$0xff]
        %v828 = vld [vmem:[%s237 + $0x121] sm:$0xff]
        %v829 = vld [vmem:[%s237 + $0x129] sm:$0xff]
        %v830 = vld [vmem:[%s237 + $0x139] sm:$0xff]
        %v831 = vld [vmem:[%s237 + $0x141] sm:$0xff]
        %v832 = vld [vmem:[%s237 + $0x151] sm:$0xff]
        %v833 = vld [vmem:[%s237 + $0x159] sm:$0xff]
        %v834 = vld [vmem:[%s237 + $0x169] sm:$0xff]
        %v835 = vld [vmem:[%s237 + $0x171] sm:$0xff]
        %v836 = vld [vmem:[%s237 + $0x181] sm:$0xff]
        %v837 = vld [vmem:[%s237 + $0x189] sm:$0xff]
        %v838 = vld [vmem:[%s237 + $0x199] sm:$0xff]
        %v839 = vld [vmem:[%s237 + $0x1a1] sm:$0xff]
        %s840 = scalar_lea.vmem %s1, 384
        %v841 = vld [vmem:[%s840] sm:$0xff]
        %v842 = vld [vmem:[%s840 + $0x8] sm:$0xff]
        %v843 = vld [vmem:[%s840 + $0x10] sm:$0xff]
        %v844 = vld [vmem:[%s840 + $0x18] sm:$0xff]
        %v845 = vld [vmem:[%s840 + $0x20] sm:$0xff]
        %v846 = vld [vmem:[%s840 + $0x28] sm:$0xff]
        %v847 = vld [vmem:[%s840 + $0x30] sm:$0xff]
        %v848 = vld [vmem:[%s840 + $0x38] sm:$0xff]
        %v849 = vld [vmem:[%s840 + $0x40] sm:$0xff]
        %v850 = vld [vmem:[%s840 + $0x48] sm:$0xff]
        %v851 = vld [vmem:[%s840 + $0x50] sm:$0xff]
        %v852 = vld [vmem:[%s840 + $0x58] sm:$0xff]
        %v853 = vld [vmem:[%s840 + $0x60] sm:$0xff]
        %v854 = vld [vmem:[%s840 + $0x68] sm:$0xff]
        %v855 = vld [vmem:[%s840 + $0x70] sm:$0xff]
        %v856 = vld [vmem:[%s840 + $0x78] sm:$0xff]
        %v857 = vld [vmem:[%s840 + $0x80] sm:$0xff]
        %v858 = vld [vmem:[%s840 + $0x88] sm:$0xff]
        %v859 = vld [vmem:[%s840 + $0x90] sm:$0xff]
        %v860 = vld [vmem:[%s840 + $0x98] sm:$0xff]
        %v861 = vld [vmem:[%s840 + $0xa0] sm:$0xff]
        %v862 = vld [vmem:[%s840 + $0xa8] sm:$0xff]
        %v863 = vld [vmem:[%s840 + $0xb0] sm:$0xff]
        %v864 = vld [vmem:[%s840 + $0xb8] sm:$0xff]
        %v865 = vld [vmem:[%s840 + $0xc0] sm:$0xff]
        %v866 = vld [vmem:[%s840 + $0xc8] sm:$0xff]
        %v867 = vld [vmem:[%s840 + $0xd0] sm:$0xff]
        %v868 = vld [vmem:[%s840 + $0xd8] sm:$0xff]
        %v869 = vld [vmem:[%s840 + $0xe0] sm:$0xff]
        %v870 = vld [vmem:[%s840 + $0xe8] sm:$0xff]
        %v871 = vld [vmem:[%s840 + $0xf0] sm:$0xff]
        %v872 = vld [vmem:[%s840 + $0xf8] sm:$0xff]
        %v873 = vld [vmem:[%s840 + $0x100] sm:$0xff]
        %v874 = vld [vmem:[%s840 + $0x108] sm:$0xff]
        %v875 = vld [vmem:[%s840 + $0x110] sm:$0xff]
        %v876 = vld [vmem:[%s840 + $0x118] sm:$0xff]
        %v877 = vld [vmem:[%s840 + $0x120] sm:$0xff]
        %v878 = vld [vmem:[%s840 + $0x128] sm:$0xff]
        %v879 = vld [vmem:[%s840 + $0x130] sm:$0xff]
        %v880 = vld [vmem:[%s840 + $0x138] sm:$0xff]
        %v881 = vld [vmem:[%s840 + $0x140] sm:$0xff]
        %v882 = vld [vmem:[%s840 + $0x148] sm:$0xff]
        %v883 = vld [vmem:[%s840 + $0x150] sm:$0xff]
        %v884 = vld [vmem:[%s840 + $0x158] sm:$0xff]
        %v885 = vld [vmem:[%s840 + $0x160] sm:$0xff]
        %v886 = vld [vmem:[%s840 + $0x168] sm:$0xff]
        %v887 = vld [vmem:[%s840 + $0x170] sm:$0xff]
        %v888 = vld [vmem:[%s840 + $0x178] sm:$0xff]
        %889 = vmatprep.subr.mxu0 0.0
        %890 = vmatpush1.msra.mxu0 %v841
        %891 = vmatprep.subr.mxu0 0.0
        %892 = vmatpush1.msra.mxu0 %v842
        %893 = vmatprep.subr.mxu0 0.0
        %894 = vmatpush1.msra.mxu0 %v843
        %895 = vmatprep.subr.mxu0 0.0
        %896 = vmatpush1.msra.mxu0 %v844
        %897 = vmatprep.subr.mxu0 0.0
        %898 = vmatpush1.msra.mxu0 %v845
        %899 = vmatprep.subr.mxu0 0.0
        %900 = vmatpush1.msra.mxu0 %v846
        %901 = vmatprep.subr.mxu0 0.0
        %902 = vmatpush1.msra.mxu0 %v847
        %903 = vmatprep.subr.mxu0 0.0
        %904 = vmatpush1.msra.mxu0 %v848
        %905 = vmatprep.subr.mxu0 0.0
        %906 = vmatpush1.msra.mxu0 %v849
        %907 = vmatprep.subr.mxu0 0.0
        %908 = vmatpush1.msra.mxu0 %v850
        %909 = vmatprep.subr.mxu0 0.0
        %910 = vmatpush1.msra.mxu0 %v851
        %911 = vmatprep.subr.mxu0 0.0
        %912 = vmatpush1.msra.mxu0 %v852
        %913 = vmatprep.subr.mxu0 0.0
        %914 = vmatpush1.msra.mxu0 %v853
        %915 = vmatprep.subr.mxu0 0.0
        %916 = vmatpush1.msra.mxu0 %v854
        %917 = vmatprep.subr.mxu0 0.0
        %918 = vmatpush1.msra.mxu0 %v855
        %919 = vmatprep.subr.mxu0 0.0
        %920 = vmatpush1.msra.mxu0 %v856
        %921 = vmatprep.subr.mxu0 0.0
        %922 = vmatpush1.msra.mxu0 %v857
        %923 = vmatprep.subr.mxu0 0.0
        %924 = vmatpush1.msra.mxu0 %v858
        %925 = vmatprep.subr.mxu0 0.0
        %926 = vmatpush1.msra.mxu0 %v859
        %927 = vmatprep.subr.mxu0 0.0
        %928 = vmatpush1.msra.mxu0 %v860
        %929 = vmatprep.subr.mxu0 0.0
        %930 = vmatpush1.msra.mxu0 %v861
        %931 = vmatprep.subr.mxu0 0.0
        %932 = vmatpush1.msra.mxu0 %v862
        %933 = vmatprep.subr.mxu0 0.0
        %934 = vmatpush1.msra.mxu0 %v863
        %935 = vmatprep.subr.mxu0 0.0
        %936 = vmatpush1.msra.mxu0 %v864
        %937 = vmatprep.subr.mxu0 0.0
        %938 = vmatpush1.msra.mxu0 %v865
        %939 = vmatprep.subr.mxu0 0.0
        %940 = vmatpush1.msra.mxu0 %v866
        %941 = vmatprep.subr.mxu0 0.0
        %942 = vmatpush1.msra.mxu0 %v867
        %943 = vmatprep.subr.mxu0 0.0
        %944 = vmatpush1.msra.mxu0 %v868
        %945 = vmatprep.subr.mxu0 0.0
        %946 = vmatpush1.msra.mxu0 %v869
        %947 = vmatprep.subr.mxu0 0.0
        %948 = vmatpush1.msra.mxu0 %v870
        %949 = vmatprep.subr.mxu0 0.0
        %950 = vmatpush1.msra.mxu0 %v871
        %951 = vmatprep.subr.mxu0 0.0
        %952 = vmatpush1.msra.mxu0 %v872
        %953 = vmatprep.mubr.f32.mxu0 %v806
        %954 = vmatmul.mubr.f32.gmra.mrb[0].mxu0 %v804
        %v955 = vpop.f32.mrb[0].mxu0
        %v956 = vadd.f32 0.0, %v955
        %v957 = vpop.f32.mrb[0].mxu0
        %958 = vmatprep.mubr.f32.mxu0 %v807
        %959 = vmatmul.mubr.f32.gmra.mrb[0].mxu0 %v805
        %v960 = vpop.f32.mrb[0].mxu0
        %v961 = vadd.f32 0.0, %v960
        %v962 = vpop.f32.mrb[0].mxu0
        %963 = vmatprep.mubr.f32.mxu0 %v808
        %964 = vmatmul.mubr.f32.gmra.mrb[0].mxu0 %v806
        %v965 = vpop.f32.mrb[0].mxu0
        %v966 = vadd.f32 0.0, %v965
        %v967 = vpop.f32.mrb[0].mxu0
        %968 = vmatprep.mubr.f32.mxu0 %v809
        %969 = vmatmul.mubr.f32.gmra.mrb[0].mxu0 %v807
        %v970 = vpop.f32.mrb[0].mxu0
        %v971 = vadd.f32 0.0, %v970
        %v972 = vpop.f32.mrb[0].mxu0
        %973 = vmatprep.mubr.f32.mxu0 %v810
        %974 = vmatmul.mubr.f32.gmra.mrb[0].mxu0 %v808
        %v975 = vpop.f32.mrb[0].mxu0
        %v976 = vadd.f32 0.0, %v975
        %v977 = vpop.f32.mrb[0].mxu0
        %978 = vmatprep.mubr.f32.mxu0 %v811
        %979 = vmatmul.mubr.f32.gmra.mrb[0].mxu0 %v809
        %v980 = vpop.f32.mrb[0].mxu0
        %v981 = vadd.f32 0.0, %v980
        %v982 = vpop.f32.mrb[0].mxu0
        %983 = vmatprep.mubr.f32.mxu0 %v812
        %984 = vmatmul.mubr.f32.gmra.mrb[0].mxu0 %v810
        %v985 = vpop.f32.mrb[0].mxu0
        %v986 = vadd.f32 0.0, %v985
        %v987 = vpop.f32.mrb[0].mxu0
        %988 = vmatprep.mubr.f32.mxu0 %v813
        %989 = vmatmul.mubr.f32.gmra.mrb[0].mxu0 %v811
        %v990 = vpop.f32.mrb[0].mxu0
        %v991 = vadd.f32 0.0, %v990
        %v992 = vpop.f32.mrb[0].mxu0
        %993 = vmatprep.mubr.f32.mxu0 %v814
        %994 = vmatmul.mubr.f32.gmra.mrb[0].mxu0 %v812
        %v995 = vpop.f32.mrb[0].mxu0
        %v996 = vadd.f32 0.0, %v995
        %v997 = vpop.f32.mrb[0].mxu0
        %998 = vmatprep.mubr.f32.mxu0 %v815
        %999 = vmatmul.mubr.f32.gmra.mrb[0].mxu0 %v813
        %v1000 = vpop.f32.mrb[0].mxu0
        %v1001 = vadd.f32 0.0, %v1000
        %v1002 = vpop.f32.mrb[0].mxu0
        %1003 = vmatprep.mubr.f32.mxu0 %v816
        %1004 = vmatmul.mubr.f32.gmra.mrb[0].mxu0 %v814
        %v1005 = vpop.f32.mrb[0].mxu0
        %v1006 = vadd.f32 0.0, %v1005
        %v1007 = vpop.f32.mrb[0].mxu0
        %1008 = vmatprep.mubr.f32.mxu0 %v817
        %1009 = vmatmul.mubr.f32.gmra.mrb[0].mxu0 %v815
        %v1010 = vpop.f32.mrb[0].mxu0
        %v1011 = vadd.f32 0.0, %v1010
        %v1012 = vpop.f32.mrb[0].mxu0
        %1013 = vmatprep.mubr.f32.mxu0 %v818
        %1014 = vmatmul.mubr.f32.gmra.mrb[0].mxu0 %v816
        %v1015 = vpop.f32.mrb[0].mxu0
        %v1016 = vadd.f32 0.0, %v1015
        %v1017 = vpop.f32.mrb[0].mxu0
        %1018 = vmatprep.mubr.f32.mxu0 %v819
        %1019 = vmatmul.mubr.f32.gmra.mrb[0].mxu0 %v817
        %v1020 = vpop.f32.mrb[0].mxu0
        %v1021 = vadd.f32 0.0, %v1020
        %v1022 = vpop.f32.mrb[0].mxu0
        %1023 = vmatprep.mubr.f32.mxu0 %v820
        %1024 = vmatmul.mubr.f32.gmra.mrb[0].mxu0 %v818
        %v1025 = vpop.f32.mrb[0].mxu0
        %v1026 = vadd.f32 0.0, %v1025
        %v1027 = vpop.f32.mrb[0].mxu0
        %1028 = vmatprep.mubr.f32.mxu0 %v821
        %1029 = vmatmul.mubr.f32.gmra.mrb[0].mxu0 %v819
        %v1030 = vpop.f32.mrb[0].mxu0
        %v1031 = vadd.f32 0.0, %v1030
        %v1032 = vpop.f32.mrb[0].mxu0
        %1033 = vmatprep.mubr.f32.mxu0 %v822
        %1034 = vmatmul.mubr.f32.gmra.mrb[0].mxu0 %v820
        %v1035 = vpop.f32.mrb[0].mxu0
        %v1036 = vadd.f32 0.0, %v1035
        %v1037 = vpop.f32.mrb[0].mxu0
        %1038 = vmatprep.mubr.f32.mxu0 %v823
        %1039 = vmatmul.mubr.f32.gmra.mrb[0].mxu0 %v821
        %v1040 = vpop.f32.mrb[0].mxu0
        %v1041 = vadd.f32 0.0, %v1040
        %v1042 = vpop.f32.mrb[0].mxu0
        %1043 = vmatprep.mubr.f32.mxu0 %v824
        %1044 = vmatmul.mubr.f32.gmra.mrb[0].mxu0 %v822
        %v1045 = vpop.f32.mrb[0].mxu0
        %v1046 = vadd.f32 0.0, %v1045
        %v1047 = vpop.f32.mrb[0].mxu0
        %1048 = vmatprep.mubr.f32.mxu0 %v825
        %1049 = vmatmul.mubr.f32.gmra.mrb[0].mxu0 %v823
        %v1050 = vpop.f32.mrb[0].mxu0
        %v1051 = vadd.f32 0.0, %v1050
        %v1052 = vpop.f32.mrb[0].mxu0
        %1053 = vmatprep.mubr.f32.mxu0 %v826
        %1054 = vmatmul.mubr.f32.gmra.mrb[0].mxu0 %v824
        %v1055 = vpop.f32.mrb[0].mxu0
        %v1056 = vadd.f32 0.0, %v1055
        %v1057 = vpop.f32.mrb[0].mxu0
        %1058 = vmatprep.mubr.f32.mxu0 %v827
        %1059 = vmatmul.mubr.f32.gmra.mrb[0].mxu0 %v825
        %v1060 = vpop.f32.mrb[0].mxu0
        %v1061 = vadd.f32 0.0, %v1060
        %v1062 = vpop.f32.mrb[0].mxu0
        %1063 = vmatprep.mubr.f32.mxu0 %v828
        %1064 = vmatmul.mubr.f32.gmra.mrb[0].mxu0 %v826
        %v1065 = vpop.f32.mrb[0].mxu0
        %v1066 = vadd.f32 0.0, %v1065
        %v1067 = vpop.f32.mrb[0].mxu0
        %1068 = vmatprep.mubr.f32.mxu0 %v829
        %1069 = vmatmul.mubr.f32.gmra.mrb[0].mxu0 %v827
        %v1070 = vpop.f32.mrb[0].mxu0
        %v1071 = vadd.f32 0.0, %v1070
        %v1072 = vpop.f32.mrb[0].mxu0
        %1073 = vmatprep.mubr.f32.mxu0 %v830
        %1074 = vmatmul.mubr.f32.gmra.mrb[0].mxu0 %v828
        %v1075 = vpop.f32.mrb[0].mxu0
        %v1076 = vadd.f32 0.0, %v1075
        %v1077 = vpop.f32.mrb[0].mxu0
        %1078 = vmatprep.mubr.f32.mxu0 %v831
        %1079 = vmatmul.mubr.f32.gmra.mrb[0].mxu0 %v829
        %v1080 = vpop.f32.mrb[0].mxu0
        %v1081 = vadd.f32 0.0, %v1080
        %v1082 = vpop.f32.mrb[0].mxu0
        %1083 = vmatprep.mubr.f32.mxu0 %v832
        %1084 = vmatmul.mubr.f32.gmra.mrb[0].mxu0 %v830
        %v1085 = vpop.f32.mrb[0].mxu0
        %v1086 = vadd.f32 0.0, %v1085
        %v1087 = vpop.f32.mrb[0].mxu0
        %1088 = vmatprep.mubr.f32.mxu0 %v833
        %1089 = vmatmul.mubr.f32.gmra.mrb[0].mxu0 %v831
        %v1090 = vpop.f32.mrb[0].mxu0
        %v1091 = vadd.f32 0.0, %v1090
        %v1092 = vpop.f32.mrb[0].mxu0
        %1093 = vmatprep.mubr.f32.mxu0 %v834
        %1094 = vmatmul.mubr.f32.gmra.mrb[0].mxu0 %v832
        %v1095 = vpop.f32.mrb[0].mxu0
        %v1096 = vadd.f32 0.0, %v1095
        %v1097 = vpop.f32.mrb[0].mxu0
        %1098 = vmatprep.mubr.f32.mxu0 %v835
        %1099 = vmatmul.mubr.f32.gmra.mrb[0].mxu0 %v833
        %v1100 = vpop.f32.mrb[0].mxu0
        %v1101 = vadd.f32 0.0, %v1100
        %v1102 = vpop.f32.mrb[0].mxu0
        %1103 = vmatprep.mubr.f32.mxu0 %v836
        %1104 = vmatmul.mubr.f32.gmra.mrb[0].mxu0 %v834
        %v1105 = vpop.f32.mrb[0].mxu0
        %v1106 = vadd.f32 0.0, %v1105
        %v1107 = vpop.f32.mrb[0].mxu0
        %1108 = vmatprep.mubr.f32.mxu0 %v837
        %1109 = vmatmul.mubr.f32.gmra.mrb[0].mxu0 %v835
        %v1110 = vpop.f32.mrb[0].mxu0
        %v1111 = vadd.f32 0.0, %v1110
        %v1112 = vpop.f32.mrb[0].mxu0
        %1113 = vdwg.mxu0
        %1114 = vmatprep.subr.mxu0 0.0
        %1115 = vmatpush1.msra.mxu0 %v873
        %1116 = vmatprep.subr.mxu0 0.0
        %1117 = vmatpush1.msra.mxu0 %v874
        %1118 = vmatprep.subr.mxu0 0.0
        %1119 = vmatpush1.msra.mxu0 %v875
        %1120 = vmatprep.subr.mxu0 0.0
        %1121 = vmatpush1.msra.mxu0 %v876
        %1122 = vmatprep.subr.mxu0 0.0
        %1123 = vmatpush1.msra.mxu0 %v877
        %1124 = vmatprep.subr.mxu0 0.0
        %1125 = vmatpush1.msra.mxu0 %v878
        %1126 = vmatprep.subr.mxu0 0.0
        %1127 = vmatpush1.msra.mxu0 %v879
        %1128 = vmatprep.subr.mxu0 0.0
        %1129 = vmatpush1.msra.mxu0 %v880
        %1130 = vmatprep.subr.mxu0 0.0
        %1131 = vmatpush1.msra.mxu0 %v881
        %1132 = vmatprep.subr.mxu0 0.0
        %1133 = vmatpush1.msra.mxu0 %v882
        %1134 = vmatprep.subr.mxu0 0.0
        %1135 = vmatpush1.msra.mxu0 %v883
        %1136 = vmatprep.subr.mxu0 0.0
        %1137 = vmatpush1.msra.mxu0 %v884
        %1138 = vmatprep.subr.mxu0 0.0
        %1139 = vmatpush1.msra.mxu0 %v885
        %1140 = vmatprep.subr.mxu0 0.0
        %1141 = vmatpush1.msra.mxu0 %v886
        %1142 = vmatprep.subr.mxu0 0.0
        %1143 = vmatpush1.msra.mxu0 %v887
        %1144 = vmatprep.subr.mxu0 0.0
        %1145 = vmatpush1.msra.mxu0 %v888
        %1146 = vmatprep.subr.mxu0 0.0
        %1147 = vmatpush1.msra.mxu0 0.0
        %1148 = vmatprep.subr.mxu0 0.0
        %1149 = vmatpush1.msra.mxu0 0.0
        %1150 = vmatprep.subr.mxu0 0.0
        %1151 = vmatpush1.msra.mxu0 0.0
        %1152 = vmatprep.subr.mxu0 0.0
        %1153 = vmatpush1.msra.mxu0 0.0
        %1154 = vmatprep.subr.mxu0 0.0
        %1155 = vmatpush1.msra.mxu0 0.0
        %1156 = vmatprep.subr.mxu0 0.0
        %1157 = vmatpush1.msra.mxu0 0.0
        %1158 = vmatprep.subr.mxu0 0.0
        %1159 = vmatpush1.msra.mxu0 0.0
        %1160 = vmatprep.subr.mxu0 0.0
        %1161 = vmatpush1.msra.mxu0 0.0
        %1162 = vmatprep.subr.mxu0 0.0
        %1163 = vmatpush1.msra.mxu0 0.0
        %1164 = vmatprep.subr.mxu0 0.0
        %1165 = vmatpush1.msra.mxu0 0.0
        %1166 = vmatprep.subr.mxu0 0.0
        %1167 = vmatpush1.msra.mxu0 0.0
        %1168 = vmatprep.subr.mxu0 0.0
        %1169 = vmatpush1.msra.mxu0 0.0
        %1170 = vmatprep.subr.mxu0 0.0
        %1171 = vmatpush1.msra.mxu0 0.0
        %1172 = vmatprep.subr.mxu0 0.0
        %1173 = vmatpush1.msra.mxu0 0.0
        %1174 = vmatprep.subr.mxu0 0.0
        %1175 = vmatpush1.msra.mxu0 0.0
        %1176 = vmatprep.subr.mxu0 0.0
        %1177 = vmatpush1.msra.mxu0 0.0
        %1178 = vmatprep.mubr.f32.mxu0 0.0
        %1179 = vmatmul.mubr.f32.gmra.mrb[0].mxu0 %v808
        %v1180 = vpop.f32.mrb[0].mxu0
        %v1181 = vadd.f32 %v956, %v1180
        %v1182 = vpop.f32.mrb[0].mxu0
        %1183 = vmatprep.mubr.f32.mxu0 0.0
        %1184 = vmatmul.mubr.f32.gmra.mrb[0].mxu0 %v809
        %v1185 = vpop.f32.mrb[0].mxu0
        %v1186 = vadd.f32 %v961, %v1185
        %v1187 = vpop.f32.mrb[0].mxu0
        %1188 = vmatprep.mubr.f32.mxu0 0.0
        %1189 = vmatmul.mubr.f32.gmra.mrb[0].mxu0 %v810
        %v1190 = vpop.f32.mrb[0].mxu0
        %v1191 = vadd.f32 %v966, %v1190
        %v1192 = vpop.f32.mrb[0].mxu0
        %1193 = vmatprep.mubr.f32.mxu0 0.0
        %1194 = vmatmul.mubr.f32.gmra.mrb[0].mxu0 %v811
        %v1195 = vpop.f32.mrb[0].mxu0
        %v1196 = vadd.f32 %v971, %v1195
        %v1197 = vpop.f32.mrb[0].mxu0
        %1198 = vmatprep.mubr.f32.mxu0 0.0
        %1199 = vmatmul.mubr.f32.gmra.mrb[0].mxu0 %v812
        %v1200 = vpop.f32.mrb[0].mxu0
        %v1201 = vadd.f32 %v976, %v1200
        %v1202 = vpop.f32.mrb[0].mxu0
        %1203 = vmatprep.mubr.f32.mxu0 0.0
        %1204 = vmatmul.mubr.f32.gmra.mrb[0].mxu0 %v813
        %v1205 = vpop.f32.mrb[0].mxu0
        %v1206 = vadd.f32 %v981, %v1205
        %v1207 = vpop.f32.mrb[0].mxu0
        %1208 = vmatprep.mubr.f32.mxu0 0.0
        %1209 = vmatmul.mubr.f32.gmra.mrb[0].mxu0 %v814
        %v1210 = vpop.f32.mrb[0].mxu0
        %v1211 = vadd.f32 %v986, %v1210
        %v1212 = vpop.f32.mrb[0].mxu0
        %1213 = vmatprep.mubr.f32.mxu0 0.0
        %1214 = vmatmul.mubr.f32.gmra.mrb[0].mxu0 %v815
        %v1215 = vpop.f32.mrb[0].mxu0
        %v1216 = vadd.f32 %v991, %v1215
        %v1217 = vpop.f32.mrb[0].mxu0
        %1218 = vmatprep.mubr.f32.mxu0 0.0
        %1219 = vmatmul.mubr.f32.gmra.mrb[0].mxu0 %v816
        %v1220 = vpop.f32.mrb[0].mxu0
        %v1221 = vadd.f32 %v996, %v1220
        %v1222 = vpop.f32.mrb[0].mxu0
        %1223 = vmatprep.mubr.f32.mxu0 0.0
        %1224 = vmatmul.mubr.f32.gmra.mrb[0].mxu0 %v817
        %v1225 = vpop.f32.mrb[0].mxu0
        %v1226 = vadd.f32 %v1001, %v1225
        %v1227 = vpop.f32.mrb[0].mxu0
        %1228 = vmatprep.mubr.f32.mxu0 0.0
        %1229 = vmatmul.mubr.f32.gmra.mrb[0].mxu0 %v818
        %v1230 = vpop.f32.mrb[0].mxu0
        %v1231 = vadd.f32 %v1006, %v1230
        %v1232 = vpop.f32.mrb[0].mxu0
        %1233 = vmatprep.mubr.f32.mxu0 0.0
        %1234 = vmatmul.mubr.f32.gmra.mrb[0].mxu0 %v819
        %v1235 = vpop.f32.mrb[0].mxu0
        %v1236 = vadd.f32 %v1011, %v1235
        %v1237 = vpop.f32.mrb[0].mxu0
        %1238 = vmatprep.mubr.f32.mxu0 0.0
        %1239 = vmatmul.mubr.f32.gmra.mrb[0].mxu0 %v820
        %v1240 = vpop.f32.mrb[0].mxu0
        %v1241 = vadd.f32 %v1016, %v1240
        %v1242 = vpop.f32.mrb[0].mxu0
        %1243 = vmatprep.mubr.f32.mxu0 0.0
        %1244 = vmatmul.mubr.f32.gmra.mrb[0].mxu0 %v821
        %v1245 = vpop.f32.mrb[0].mxu0
        %v1246 = vadd.f32 %v1021, %v1245
        %v1247 = vpop.f32.mrb[0].mxu0
        %1248 = vmatprep.mubr.f32.mxu0 0.0
        %1249 = vmatmul.mubr.f32.gmra.mrb[0].mxu0 %v822
        %v1250 = vpop.f32.mrb[0].mxu0
        %v1251 = vadd.f32 %v1026, %v1250
        %v1252 = vpop.f32.mrb[0].mxu0
        %1253 = vmatprep.mubr.f32.mxu0 0.0
        %1254 = vmatmul.mubr.f32.gmra.mrb[0].mxu0 %v823
        %v1255 = vpop.f32.mrb[0].mxu0
        %v1256 = vadd.f32 %v1031, %v1255
        %v1257 = vpop.f32.mrb[0].mxu0
        %1258 = vmatprep.mubr.f32.mxu0 0.0
        %1259 = vmatmul.mubr.f32.gmra.mrb[0].mxu0 %v824
        %v1260 = vpop.f32.mrb[0].mxu0
        %v1261 = vadd.f32 %v1036, %v1260
        %v1262 = vpop.f32.mrb[0].mxu0
        %1263 = vmatprep.mubr.f32.mxu0 0.0
        %1264 = vmatmul.mubr.f32.gmra.mrb[0].mxu0 %v825
        %v1265 = vpop.f32.mrb[0].mxu0
        %v1266 = vadd.f32 %v1041, %v1265
        %v1267 = vpop.f32.mrb[0].mxu0
        %1268 = vmatprep.mubr.f32.mxu0 0.0
        %1269 = vmatmul.mubr.f32.gmra.mrb[0].mxu0 %v826
        %v1270 = vpop.f32.mrb[0].mxu0
        %v1271 = vadd.f32 %v1046, %v1270
        %v1272 = vpop.f32.mrb[0].mxu0
        %1273 = vmatprep.mubr.f32.mxu0 0.0
        %1274 = vmatmul.mubr.f32.gmra.mrb[0].mxu0 %v827
        %v1275 = vpop.f32.mrb[0].mxu0
        %v1276 = vadd.f32 %v1051, %v1275
        %v1277 = vpop.f32.mrb[0].mxu0
        %1278 = vmatprep.mubr.f32.mxu0 0.0
        %1279 = vmatmul.mubr.f32.gmra.mrb[0].mxu0 %v828
        %v1280 = vpop.f32.mrb[0].mxu0
        %v1281 = vadd.f32 %v1056, %v1280
        %v1282 = vpop.f32.mrb[0].mxu0
        %1283 = vmatprep.mubr.f32.mxu0 0.0
        %1284 = vmatmul.mubr.f32.gmra.mrb[0].mxu0 %v829
        %v1285 = vpop.f32.mrb[0].mxu0
        %v1286 = vadd.f32 %v1061, %v1285
        %v1287 = vpop.f32.mrb[0].mxu0
        %1288 = vmatprep.mubr.f32.mxu0 0.0
        %1289 = vmatmul.mubr.f32.gmra.mrb[0].mxu0 %v830
        %v1290 = vpop.f32.mrb[0].mxu0
        %v1291 = vadd.f32 %v1066, %v1290
        %v1292 = vpop.f32.mrb[0].mxu0
        %1293 = vmatprep.mubr.f32.mxu0 0.0
        %1294 = vmatmul.mubr.f32.gmra.mrb[0].mxu0 %v831
        %v1295 = vpop.f32.mrb[0].mxu0
        %v1296 = vadd.f32 %v1071, %v1295
        %v1297 = vpop.f32.mrb[0].mxu0
        %1298 = vmatprep.mubr.f32.mxu0 0.0
        %1299 = vmatmul.mubr.f32.gmra.mrb[0].mxu0 %v832
        %v1300 = vpop.f32.mrb[0].mxu0
        %v1301 = vadd.f32 %v1076, %v1300
        %v1302 = vpop.f32.mrb[0].mxu0
        %1303 = vmatprep.mubr.f32.mxu0 0.0
        %1304 = vmatmul.mubr.f32.gmra.mrb[0].mxu0 %v833
        %v1305 = vpop.f32.mrb[0].mxu0
        %v1306 = vadd.f32 %v1081, %v1305
        %v1307 = vpop.f32.mrb[0].mxu0
        %1308 = vmatprep.mubr.f32.mxu0 0.0
        %1309 = vmatmul.mubr.f32.gmra.mrb[0].mxu0 %v834
        %v1310 = vpop.f32.mrb[0].mxu0
        %v1311 = vadd.f32 %v1086, %v1310
        %v1312 = vpop.f32.mrb[0].mxu0
        %1313 = vmatprep.mubr.f32.mxu0 0.0
        %1314 = vmatmul.mubr.f32.gmra.mrb[0].mxu0 %v835
        %v1315 = vpop.f32.mrb[0].mxu0
        %v1316 = vadd.f32 %v1091, %v1315
        %v1317 = vpop.f32.mrb[0].mxu0
        %1318 = vmatprep.mubr.f32.mxu0 0.0
        %1319 = vmatmul.mubr.f32.gmra.mrb[0].mxu0 %v836
        %v1320 = vpop.f32.mrb[0].mxu0
        %v1321 = vadd.f32 %v1096, %v1320
        %v1322 = vpop.f32.mrb[0].mxu0
        %1323 = vmatprep.mubr.f32.mxu0 0.0
        %1324 = vmatmul.mubr.f32.gmra.mrb[0].mxu0 %v837
        %v1325 = vpop.f32.mrb[0].mxu0
        %v1326 = vadd.f32 %v1101, %v1325
        %v1327 = vpop.f32.mrb[0].mxu0
        %1328 = vmatprep.mubr.f32.mxu0 0.0
        %1329 = vmatmul.mubr.f32.gmra.mrb[0].mxu0 %v838
        %v1330 = vpop.f32.mrb[0].mxu0
        %v1331 = vadd.f32 %v1106, %v1330
        %v1332 = vpop.f32.mrb[0].mxu0
        %1333 = vmatprep.mubr.f32.mxu0 0.0
        %1334 = vmatmul.mubr.f32.gmra.mrb[0].mxu0 %v839
        %v1335 = vpop.f32.mrb[0].mxu0
        %v1336 = vadd.f32 %v1111, %v1335
        %v1337 = vpop.f32.mrb[0].mxu0
        %1338 = vdwg.mxu0
        %v1339 = vld [vmem:[#allocation2] sm:$0xff]
        %v1340 = vld [vmem:[#allocation2 + $0x8] sm:$0xff]
        %v1341 = vld [vmem:[#allocation2 + $0x10] sm:$0xff]
        %v1342 = vld [vmem:[#allocation2 + $0x18] sm:$0xff]
        %v1343 = vld [vmem:[#allocation2 + $0x20] sm:$0xff]
        %v1344 = vld [vmem:[#allocation2 + $0x28] sm:$0xff]
        %v1345 = vld [vmem:[#allocation2 + $0x30] sm:$0xff]
        %v1346 = vld [vmem:[#allocation2 + $0x38] sm:$0xff]
        %v1347 = vld [vmem:[#allocation2 + $0x40] sm:$0xff]
        %v1348 = vld [vmem:[#allocation2 + $0x48] sm:$0xff]
        %v1349 = vld [vmem:[#allocation2 + $0x50] sm:$0xff]
        %v1350 = vld [vmem:[#allocation2 + $0x58] sm:$0xff]
        %v1351 = vld [vmem:[#allocation2 + $0x60] sm:$0xff]
        %v1352 = vld [vmem:[#allocation2 + $0x68] sm:$0xff]
        %v1353 = vld [vmem:[#allocation2 + $0x70] sm:$0xff]
        %v1354 = vld [vmem:[#allocation2 + $0x78] sm:$0xff]
        %v1355 = vld [vmem:[#allocation2 + $0x80] sm:$0xff]
        %v1356 = vld [vmem:[#allocation2 + $0x88] sm:$0xff]
        %v1357 = vld [vmem:[#allocation2 + $0x90] sm:$0xff]
        %v1358 = vld [vmem:[#allocation2 + $0x98] sm:$0xff]
        %v1359 = vld [vmem:[#allocation2 + $0xa0] sm:$0xff]
        %v1360 = vld [vmem:[#allocation2 + $0xa8] sm:$0xff]
        %v1361 = vld [vmem:[#allocation2 + $0xb0] sm:$0xff]
        %v1362 = vld [vmem:[#allocation2 + $0xb8] sm:$0xff]
        %v1363 = vld [vmem:[#allocation2 + $0xc0] sm:$0xff]
        %v1364 = vld [vmem:[#allocation2 + $0xc8] sm:$0xff]
        %v1365 = vld [vmem:[#allocation2 + $0xd0] sm:$0xff]
        %v1366 = vld [vmem:[#allocation2 + $0xd8] sm:$0xff]
        %v1367 = vld [vmem:[#allocation2 + $0xe0] sm:$0xff]
        %v1368 = vld [vmem:[#allocation2 + $0xe8] sm:$0xff]
        %v1369 = vld [vmem:[#allocation2 + $0xf0] sm:$0xff]
        %v1370 = vld [vmem:[#allocation2 + $0xf8] sm:$0xff]
        %v1371 = vadd.f32 %v1339, %v1181
        %v1372 = vadd.f32 %v1340, %v1186
        %v1373 = vadd.f32 %v1341, %v1191
        %v1374 = vadd.f32 %v1342, %v1196
        %v1375 = vadd.f32 %v1343, %v1201
        %v1376 = vadd.f32 %v1344, %v1206
        %v1377 = vadd.f32 %v1345, %v1211
        %v1378 = vadd.f32 %v1346, %v1216
        %v1379 = vadd.f32 %v1347, %v1221
        %v1380 = vadd.f32 %v1348, %v1226
        %v1381 = vadd.f32 %v1349, %v1231
        %v1382 = vadd.f32 %v1350, %v1236
        %v1383 = vadd.f32 %v1351, %v1241
        %v1384 = vadd.f32 %v1352, %v1246
        %v1385 = vadd.f32 %v1353, %v1251
        %v1386 = vadd.f32 %v1354, %v1256
        %v1387 = vadd.f32 %v1355, %v1261
        %v1388 = vadd.f32 %v1356, %v1266
        %v1389 = vadd.f32 %v1357, %v1271
        %v1390 = vadd.f32 %v1358, %v1276
        %v1391 = vadd.f32 %v1359, %v1281
        %v1392 = vadd.f32 %v1360, %v1286
        %v1393 = vadd.f32 %v1361, %v1291
        %v1394 = vadd.f32 %v1362, %v1296
        %v1395 = vadd.f32 %v1363, %v1301
        %v1396 = vadd.f32 %v1364, %v1306
        %v1397 = vadd.f32 %v1365, %v1311
        %v1398 = vadd.f32 %v1366, %v1316
        %v1399 = vadd.f32 %v1367, %v1321
        %v1400 = vadd.f32 %v1368, %v1326
        %v1401 = vadd.f32 %v1369, %v1331
        %v1402 = vadd.f32 %v1370, %v1336
        %1403 = vst [vmem:[#allocation2] sm:$0xff] %v1371
        %1404 = vst [vmem:[#allocation2 + $0x8] sm:$0xff] %v1372
        %1405 = vst [vmem:[#allocation2 + $0x10] sm:$0xff] %v1373
        %1406 = vst [vmem:[#allocation2 + $0x18] sm:$0xff] %v1374
        %1407 = vst [vmem:[#allocation2 + $0x20] sm:$0xff] %v1375
        %1408 = vst [vmem:[#allocation2 + $0x28] sm:$0xff] %v1376
        %1409 = vst [vmem:[#allocation2 + $0x30] sm:$0xff] %v1377
        %1410 = vst [vmem:[#allocation2 + $0x38] sm:$0xff] %v1378
        %1411 = vst [vmem:[#allocation2 + $0x40] sm:$0xff] %v1379
        %1412 = vst [vmem:[#allocation2 + $0x48] sm:$0xff] %v1380
        %1413 = vst [vmem:[#allocation2 + $0x50] sm:$0xff] %v1381
        %1414 = vst [vmem:[#allocation2 + $0x58] sm:$0xff] %v1382
        %1415 = vst [vmem:[#allocation2 + $0x60] sm:$0xff] %v1383
        %1416 = vst [vmem:[#allocation2 + $0x68] sm:$0xff] %v1384
        %1417 = vst [vmem:[#allocation2 + $0x70] sm:$0xff] %v1385
        %1418 = vst [vmem:[#allocation2 + $0x78] sm:$0xff] %v1386
        %1419 = vst [vmem:[#allocation2 + $0x80] sm:$0xff] %v1387
        %1420 = vst [vmem:[#allocation2 + $0x88] sm:$0xff] %v1388
        %1421 = vst [vmem:[#allocation2 + $0x90] sm:$0xff] %v1389
        %1422 = vst [vmem:[#allocation2 + $0x98] sm:$0xff] %v1390
        %1423 = vst [vmem:[#allocation2 + $0xa0] sm:$0xff] %v1391
        %1424 = vst [vmem:[#allocation2 + $0xa8] sm:$0xff] %v1392
        %1425 = vst [vmem:[#allocation2 + $0xb0] sm:$0xff] %v1393
        %1426 = vst [vmem:[#allocation2 + $0xb8] sm:$0xff] %v1394
        %1427 = vst [vmem:[#allocation2 + $0xc0] sm:$0xff] %v1395
        %1428 = vst [vmem:[#allocation2 + $0xc8] sm:$0xff] %v1396
        %1429 = vst [vmem:[#allocation2 + $0xd0] sm:$0xff] %v1397
        %1430 = vst [vmem:[#allocation2 + $0xd8] sm:$0xff] %v1398
        %1431 = vst [vmem:[#allocation2 + $0xe0] sm:$0xff] %v1399
        %1432 = vst [vmem:[#allocation2 + $0xe8] sm:$0xff] %v1400
        %1433 = vst [vmem:[#allocation2 + $0xf0] sm:$0xff] %v1401
        %1434 = vst [vmem:[#allocation2 + $0xf8] sm:$0xff] %v1402
        %v1435 = vld [vmem:[%s237 + $0x2] sm:$0xff]
        %v1436 = vld [vmem:[%s237 + $0xa] sm:$0xff]
        %v1437 = vld [vmem:[%s237 + $0x1a] sm:$0xff]
        %v1438 = vld [vmem:[%s237 + $0x22] sm:$0xff]
        %v1439 = vld [vmem:[%s237 + $0x32] sm:$0xff]
        %v1440 = vld [vmem:[%s237 + $0x3a] sm:$0xff]
        %v1441 = vld [vmem:[%s237 + $0x4a] sm:$0xff]
        %v1442 = vld [vmem:[%s237 + $0x52] sm:$0xff]
        %v1443 = vld [vmem:[%s237 + $0x62] sm:$0xff]
        %v1444 = vld [vmem:[%s237 + $0x6a] sm:$0xff]
        %v1445 = vld [vmem:[%s237 + $0x7a] sm:$0xff]
        %v1446 = vld [vmem:[%s237 + $0x82] sm:$0xff]
        %v1447 = vld [vmem:[%s237 + $0x92] sm:$0xff]
        %v1448 = vld [vmem:[%s237 + $0x9a] sm:$0xff]
        %v1449 = vld [vmem:[%s237 + $0xaa] sm:$0xff]
        %v1450 = vld [vmem:[%s237 + $0xb2] sm:$0xff]
        %v1451 = vld [vmem:[%s237 + $0xc2] sm:$0xff]
        %v1452 = vld [vmem:[%s237 + $0xca] sm:$0xff]
        %v1453 = vld [vmem:[%s237 + $0xda] sm:$0xff]
        %v1454 = vld [vmem:[%s237 + $0xe2] sm:$0xff]
        %v1455 = vld [vmem:[%s237 + $0xf2] sm:$0xff]
        %v1456 = vld [vmem:[%s237 + $0xfa] sm:$0xff]
        %v1457 = vld [vmem:[%s237 + $0x10a] sm:$0xff]
        %v1458 = vld [vmem:[%s237 + $0x112] sm:$0xff]
        %v1459 = vld [vmem:[%s237 + $0x122] sm:$0xff]
        %v1460 = vld [vmem:[%s237 + $0x12a] sm:$0xff]
        %v1461 = vld [vmem:[%s237 + $0x13a] sm:$0xff]
        %v1462 = vld [vmem:[%s237 + $0x142] sm:$0xff]
        %v1463 = vld [vmem:[%s237 + $0x152] sm:$0xff]
        %v1464 = vld [vmem:[%s237 + $0x15a] sm:$0xff]
        %v1465 = vld [vmem:[%s237 + $0x16a] sm:$0xff]
        %v1466 = vld [vmem:[%s237 + $0x172] sm:$0xff]
        %v1467 = vld [vmem:[%s237 + $0x182] sm:$0xff]
        %v1468 = vld [vmem:[%s237 + $0x18a] sm:$0xff]
        %v1469 = vld [vmem:[%s237 + $0x19a] sm:$0xff]
        %v1470 = vld [vmem:[%s237 + $0x1a2] sm:$0xff]
        %s1471 = scalar_lea.vmem %s1, 768
        %v1472 = vld [vmem:[%s1471] sm:$0xff]
        %v1473 = vld [vmem:[%s1471 + $0x8] sm:$0xff]
        %v1474 = vld [vmem:[%s1471 + $0x10] sm:$0xff]
        %v1475 = vld [vmem:[%s1471 + $0x18] sm:$0xff]
        %v1476 = vld [vmem:[%s1471 + $0x20] sm:$0xff]
        %v1477 = vld [vmem:[%s1471 + $0x28] sm:$0xff]
        %v1478 = vld [vmem:[%s1471 + $0x30] sm:$0xff]
        %v1479 = vld [vmem:[%s1471 + $0x38] sm:$0xff]
        %v1480 = vld [vmem:[%s1471 + $0x40] sm:$0xff]
        %v1481 = vld [vmem:[%s1471 + $0x48] sm:$0xff]
        %v1482 = vld [vmem:[%s1471 + $0x50] sm:$0xff]
        %v1483 = vld [vmem:[%s1471 + $0x58] sm:$0xff]
        %v1484 = vld [vmem:[%s1471 + $0x60] sm:$0xff]
        %v1485 = vld [vmem:[%s1471 + $0x68] sm:$0xff]
        %v1486 = vld [vmem:[%s1471 + $0x70] sm:$0xff]
        %v1487 = vld [vmem:[%s1471 + $0x78] sm:$0xff]
        %v1488 = vld [vmem:[%s1471 + $0x80] sm:$0xff]
        %v1489 = vld [vmem:[%s1471 + $0x88] sm:$0xff]
        %v1490 = vld [vmem:[%s1471 + $0x90] sm:$0xff]
        %v1491 = vld [vmem:[%s1471 + $0x98] sm:$0xff]
        %v1492 = vld [vmem:[%s1471 + $0xa0] sm:$0xff]
        %v1493 = vld [vmem:[%s1471 + $0xa8] sm:$0xff]
        %v1494 = vld [vmem:[%s1471 + $0xb0] sm:$0xff]
        %v1495 = vld [vmem:[%s1471 + $0xb8] sm:$0xff]
        %v1496 = vld [vmem:[%s1471 + $0xc0] sm:$0xff]
        %v1497 = vld [vmem:[%s1471 + $0xc8] sm:$0xff]
        %v1498 = vld [vmem:[%s1471 + $0xd0] sm:$0xff]
        %v1499 = vld [vmem:[%s1471 + $0xd8] sm:$0xff]
        %v1500 = vld [vmem:[%s1471 + $0xe0] sm:$0xff]
        %v1501 = vld [vmem:[%s1471 + $0xe8] sm:$0xff]
        %v1502 = vld [vmem:[%s1471 + $0xf0] sm:$0xff]
        %v1503 = vld [vmem:[%s1471 + $0xf8] sm:$0xff]
        %v1504 = vld [vmem:[%s1471 + $0x100] sm:$0xff]
        %v1505 = vld [vmem:[%s1471 + $0x108] sm:$0xff]
        %v1506 = vld [vmem:[%s1471 + $0x110] sm:$0xff]
        %v1507 = vld [vmem:[%s1471 + $0x118] sm:$0xff]
        %v1508 = vld [vmem:[%s1471 + $0x120] sm:$0xff]
        %v1509 = vld [vmem:[%s1471 + $0x128] sm:$0xff]
        %v1510 = vld [vmem:[%s1471 + $0x130] sm:$0xff]
        %v1511 = vld [vmem:[%s1471 + $0x138] sm:$0xff]
        %v1512 = vld [vmem:[%s1471 + $0x140] sm:$0xff]
        %v1513 = vld [vmem:[%s1471 + $0x148] sm:$0xff]
        %v1514 = vld [vmem:[%s1471 + $0x150] sm:$0xff]
        %v1515 = vld [vmem:[%s1471 + $0x158] sm:$0xff]
        %v1516 = vld [vmem:[%s1471 + $0x160] sm:$0xff]
        %v1517 = vld [vmem:[%s1471 + $0x168] sm:$0xff]
        %v1518 = vld [vmem:[%s1471 + $0x170] sm:$0xff]
        %v1519 = vld [vmem:[%s1471 + $0x178] sm:$0xff]
        %1520 = vmatprep.subr.mxu0 0.0
        %1521 = vmatpush1.msra.mxu0 %v1472
        %1522 = vmatprep.subr.mxu0 0.0
        %1523 = vmatpush1.msra.mxu0 %v1473
        %1524 = vmatprep.subr.mxu0 0.0
        %1525 = vmatpush1.msra.mxu0 %v1474
        %1526 = vmatprep.subr.mxu0 0.0
        %1527 = vmatpush1.msra.mxu0 %v1475
        %1528 = vmatprep.subr.mxu0 0.0
        %1529 = vmatpush1.msra.mxu0 %v1476
        %1530 = vmatprep.subr.mxu0 0.0
        %1531 = vmatpush1.msra.mxu0 %v1477
        %1532 = vmatprep.subr.mxu0 0.0
        %1533 = vmatpush1.msra.mxu0 %v1478
        %1534 = vmatprep.subr.mxu0 0.0
        %1535 = vmatpush1.msra.mxu0 %v1479
        %1536 = vmatprep.subr.mxu0 0.0
        %1537 = vmatpush1.msra.mxu0 %v1480
        %1538 = vmatprep.subr.mxu0 0.0
        %1539 = vmatpush1.msra.mxu0 %v1481
        %1540 = vmatprep.subr.mxu0 0.0
        %1541 = vmatpush1.msra.mxu0 %v1482
        %1542 = vmatprep.subr.mxu0 0.0
        %1543 = vmatpush1.msra.mxu0 %v1483
        %1544 = vmatprep.subr.mxu0 0.0
        %1545 = vmatpush1.msra.mxu0 %v1484
        %1546 = vmatprep.subr.mxu0 0.0
        %1547 = vmatpush1.msra.mxu0 %v1485
        %1548 = vmatprep.subr.mxu0 0.0
        %1549 = vmatpush1.msra.mxu0 %v1486
        %1550 = vmatprep.subr.mxu0 0.0
        %1551 = vmatpush1.msra.mxu0 %v1487
        %1552 = vmatprep.subr.mxu0 0.0
        %1553 = vmatpush1.msra.mxu0 %v1488
        %1554 = vmatprep.subr.mxu0 0.0
        %1555 = vmatpush1.msra.mxu0 %v1489
        %1556 = vmatprep.subr.mxu0 0.0
        %1557 = vmatpush1.msra.mxu0 %v1490
        %1558 = vmatprep.subr.mxu0 0.0
        %1559 = vmatpush1.msra.mxu0 %v1491
        %1560 = vmatprep.subr.mxu0 0.0
        %1561 = vmatpush1.msra.mxu0 %v1492
        %1562 = vmatprep.subr.mxu0 0.0
        %1563 = vmatpush1.msra.mxu0 %v1493
        %1564 = vmatprep.subr.mxu0 0.0
        %1565 = vmatpush1.msra.mxu0 %v1494
        %1566 = vmatprep.subr.mxu0 0.0
        %1567 = vmatpush1.msra.mxu0 %v1495
        %1568 = vmatprep.subr.mxu0 0.0
        %1569 = vmatpush1.msra.mxu0 %v1496
        %1570 = vmatprep.subr.mxu0 0.0
        %1571 = vmatpush1.msra.mxu0 %v1497
        %1572 = vmatprep.subr.mxu0 0.0
        %1573 = vmatpush1.msra.mxu0 %v1498
        %1574 = vmatprep.subr.mxu0 0.0
        %1575 = vmatpush1.msra.mxu0 %v1499
        %1576 = vmatprep.subr.mxu0 0.0
        %1577 = vmatpush1.msra.mxu0 %v1500
        %1578 = vmatprep.subr.mxu0 0.0
        %1579 = vmatpush1.msra.mxu0 %v1501
        %1580 = vmatprep.subr.mxu0 0.0
        %1581 = vmatpush1.msra.mxu0 %v1502
        %1582 = vmatprep.subr.mxu0 0.0
        %1583 = vmatpush1.msra.mxu0 %v1503
        %1584 = vmatprep.mubr.f32.mxu0 %v1437
        %1585 = vmatmul.mubr.f32.gmra.mrb[0].mxu0 %v1435
        %v1586 = vpop.f32.mrb[0].mxu0
        %v1587 = vadd.f32 0.0, %v1586
        %v1588 = vpop.f32.mrb[0].mxu0
        %1589 = vmatprep.mubr.f32.mxu0 %v1438
        %1590 = vmatmul.mubr.f32.gmra.mrb[0].mxu0 %v1436
        %v1591 = vpop.f32.mrb[0].mxu0
        %v1592 = vadd.f32 0.0, %v1591
        %v1593 = vpop.f32.mrb[0].mxu0
        %1594 = vmatprep.mubr.f32.mxu0 %v1439
        %1595 = vmatmul.mubr.f32.gmra.mrb[0].mxu0 %v1437
        %v1596 = vpop.f32.mrb[0].mxu0
        %v1597 = vadd.f32 0.0, %v1596
        %v1598 = vpop.f32.mrb[0].mxu0
        %1599 = vmatprep.mubr.f32.mxu0 %v1440
        %1600 = vmatmul.mubr.f32.gmra.mrb[0].mxu0 %v1438
        %v1601 = vpop.f32.mrb[0].mxu0
        %v1602 = vadd.f32 0.0, %v1601
        %v1603 = vpop.f32.mrb[0].mxu0
        %1604 = vmatprep.mubr.f32.mxu0 %v1441
        %1605 = vmatmul.mubr.f32.gmra.mrb[0].mxu0 %v1439
        %v1606 = vpop.f32.mrb[0].mxu0
        %v1607 = vadd.f32 0.0, %v1606
        %v1608 = vpop.f32.mrb[0].mxu0
        %1609 = vmatprep.mubr.f32.mxu0 %v1442
        %1610 = vmatmul.mubr.f32.gmra.mrb[0].mxu0 %v1440
        %v1611 = vpop.f32.mrb[0].mxu0
        %v1612 = vadd.f32 0.0, %v1611
        %v1613 = vpop.f32.mrb[0].mxu0
        %1614 = vmatprep.mubr.f32.mxu0 %v1443
        %1615 = vmatmul.mubr.f32.gmra.mrb[0].mxu0 %v1441
        %v1616 = vpop.f32.mrb[0].mxu0
        %v1617 = vadd.f32 0.0, %v1616
        %v1618 = vpop.f32.mrb[0].mxu0
        %1619 = vmatprep.mubr.f32.mxu0 %v1444
        %1620 = vmatmul.mubr.f32.gmra.mrb[0].mxu0 %v1442
        %v1621 = vpop.f32.mrb[0].mxu0
        %v1622 = vadd.f32 0.0, %v1621
        %v1623 = vpop.f32.mrb[0].mxu0
        %1624 = vmatprep.mubr.f32.mxu0 %v1445
        %1625 = vmatmul.mubr.f32.gmra.mrb[0].mxu0 %v1443
        %v1626 = vpop.f32.mrb[0].mxu0
        %v1627 = vadd.f32 0.0, %v1626
        %v1628 = vpop.f32.mrb[0].mxu0
        %1629 = vmatprep.mubr.f32.mxu0 %v1446
        %1630 = vmatmul.mubr.f32.gmra.mrb[0].mxu0 %v1444
        %v1631 = vpop.f32.mrb[0].mxu0
        %v1632 = vadd.f32 0.0, %v1631
        %v1633 = vpop.f32.mrb[0].mxu0
        %1634 = vmatprep.mubr.f32.mxu0 %v1447
        %1635 = vmatmul.mubr.f32.gmra.mrb[0].mxu0 %v1445
        %v1636 = vpop.f32.mrb[0].mxu0
        %v1637 = vadd.f32 0.0, %v1636
        %v1638 = vpop.f32.mrb[0].mxu0
        %1639 = vmatprep.mubr.f32.mxu0 %v1448
        %1640 = vmatmul.mubr.f32.gmra.mrb[0].mxu0 %v1446
        %v1641 = vpop.f32.mrb[0].mxu0
        %v1642 = vadd.f32 0.0, %v1641
        %v1643 = vpop.f32.mrb[0].mxu0
        %1644 = vmatprep.mubr.f32.mxu0 %v1449
        %1645 = vmatmul.mubr.f32.gmra.mrb[0].mxu0 %v1447
        %v1646 = vpop.f32.mrb[0].mxu0
        %v1647 = vadd.f32 0.0, %v1646
        %v1648 = vpop.f32.mrb[0].mxu0
        %1649 = vmatprep.mubr.f32.mxu0 %v1450
        %1650 = vmatmul.mubr.f32.gmra.mrb[0].mxu0 %v1448
        %v1651 = vpop.f32.mrb[0].mxu0
        %v1652 = vadd.f32 0.0, %v1651
        %v1653 = vpop.f32.mrb[0].mxu0
        %1654 = vmatprep.mubr.f32.mxu0 %v1451
        %1655 = vmatmul.mubr.f32.gmra.mrb[0].mxu0 %v1449
        %v1656 = vpop.f32.mrb[0].mxu0
        %v1657 = vadd.f32 0.0, %v1656
        %v1658 = vpop.f32.mrb[0].mxu0
        %1659 = vmatprep.mubr.f32.mxu0 %v1452
        %1660 = vmatmul.mubr.f32.gmra.mrb[0].mxu0 %v1450
        %v1661 = vpop.f32.mrb[0].mxu0
        %v1662 = vadd.f32 0.0, %v1661
        %v1663 = vpop.f32.mrb[0].mxu0
        %1664 = vmatprep.mubr.f32.mxu0 %v1453
        %1665 = vmatmul.mubr.f32.gmra.mrb[0].mxu0 %v1451
        %v1666 = vpop.f32.mrb[0].mxu0
        %v1667 = vadd.f32 0.0, %v1666
        %v1668 = vpop.f32.mrb[0].mxu0
        %1669 = vmatprep.mubr.f32.mxu0 %v1454
        %1670 = vmatmul.mubr.f32.gmra.mrb[0].mxu0 %v1452
        %v1671 = vpop.f32.mrb[0].mxu0
        %v1672 = vadd.f32 0.0, %v1671
        %v1673 = vpop.f32.mrb[0].mxu0
        %1674 = vmatprep.mubr.f32.mxu0 %v1455
        %1675 = vmatmul.mubr.f32.gmra.mrb[0].mxu0 %v1453
        %v1676 = vpop.f32.mrb[0].mxu0
        %v1677 = vadd.f32 0.0, %v1676
        %v1678 = vpop.f32.mrb[0].mxu0
        %1679 = vmatprep.mubr.f32.mxu0 %v1456
        %1680 = vmatmul.mubr.f32.gmra.mrb[0].mxu0 %v1454
        %v1681 = vpop.f32.mrb[0].mxu0
        %v1682 = vadd.f32 0.0, %v1681
        %v1683 = vpop.f32.mrb[0].mxu0
        %1684 = vmatprep.mubr.f32.mxu0 %v1457
        %1685 = vmatmul.mubr.f32.gmra.mrb[0].mxu0 %v1455
        %v1686 = vpop.f32.mrb[0].mxu0
        %v1687 = vadd.f32 0.0, %v1686
        %v1688 = vpop.f32.mrb[0].mxu0
        %1689 = vmatprep.mubr.f32.mxu0 %v1458
        %1690 = vmatmul.mubr.f32.gmra.mrb[0].mxu0 %v1456
        %v1691 = vpop.f32.mrb[0].mxu0
        %v1692 = vadd.f32 0.0, %v1691
        %v1693 = vpop.f32.mrb[0].mxu0
        %1694 = vmatprep.mubr.f32.mxu0 %v1459
        %1695 = vmatmul.mubr.f32.gmra.mrb[0].mxu0 %v1457
        %v1696 = vpop.f32.mrb[0].mxu0
        %v1697 = vadd.f32 0.0, %v1696
        %v1698 = vpop.f32.mrb[0].mxu0
        %1699 = vmatprep.mubr.f32.mxu0 %v1460
        %1700 = vmatmul.mubr.f32.gmra.mrb[0].mxu0 %v1458
        %v1701 = vpop.f32.mrb[0].mxu0
        %v1702 = vadd.f32 0.0, %v1701
        %v1703 = vpop.f32.mrb[0].mxu0
        %1704 = vmatprep.mubr.f32.mxu0 %v1461
        %1705 = vmatmul.mubr.f32.gmra.mrb[0].mxu0 %v1459
        %v1706 = vpop.f32.mrb[0].mxu0
        %v1707 = vadd.f32 0.0, %v1706
        %v1708 = vpop.f32.mrb[0].mxu0
        %1709 = vmatprep.mubr.f32.mxu0 %v1462
        %1710 = vmatmul.mubr.f32.gmra.mrb[0].mxu0 %v1460
        %v1711 = vpop.f32.mrb[0].mxu0
        %v1712 = vadd.f32 0.0, %v1711
        %v1713 = vpop.f32.mrb[0].mxu0
        %1714 = vmatprep.mubr.f32.mxu0 %v1463
        %1715 = vmatmul.mubr.f32.gmra.mrb[0].mxu0 %v1461
        %v1716 = vpop.f32.mrb[0].mxu0
        %v1717 = vadd.f32 0.0, %v1716
        %v1718 = vpop.f32.mrb[0].mxu0
        %1719 = vmatprep.mubr.f32.mxu0 %v1464
        %1720 = vmatmul.mubr.f32.gmra.mrb[0].mxu0 %v1462
        %v1721 = vpop.f32.mrb[0].mxu0
        %v1722 = vadd.f32 0.0, %v1721
        %v1723 = vpop.f32.mrb[0].mxu0
        %1724 = vmatprep.mubr.f32.mxu0 %v1465
        %1725 = vmatmul.mubr.f32.gmra.mrb[0].mxu0 %v1463
        %v1726 = vpop.f32.mrb[0].mxu0
        %v1727 = vadd.f32 0.0, %v1726
        %v1728 = vpop.f32.mrb[0].mxu0
        %1729 = vmatprep.mubr.f32.mxu0 %v1466
        %1730 = vmatmul.mubr.f32.gmra.mrb[0].mxu0 %v1464
        %v1731 = vpop.f32.mrb[0].mxu0
        %v1732 = vadd.f32 0.0, %v1731
        %v1733 = vpop.f32.mrb[0].mxu0
        %1734 = vmatprep.mubr.f32.mxu0 %v1467
        %1735 = vmatmul.mubr.f32.gmra.mrb[0].mxu0 %v1465
        %v1736 = vpop.f32.mrb[0].mxu0
        %v1737 = vadd.f32 0.0, %v1736
        %v1738 = vpop.f32.mrb[0].mxu0
        %1739 = vmatprep.mubr.f32.mxu0 %v1468
        %1740 = vmatmul.mubr.f32.gmra.mrb[0].mxu0 %v1466
        %v1741 = vpop.f32.mrb[0].mxu0
        %v1742 = vadd.f32 0.0, %v1741
        %v1743 = vpop.f32.mrb[0].mxu0
        %1744 = vdwg.mxu0
        %1745 = vmatprep.subr.mxu0 0.0
        %1746 = vmatpush1.msra.mxu0 %v1504
        %1747 = vmatprep.subr.mxu0 0.0
        %1748 = vmatpush1.msra.mxu0 %v1505
        %1749 = vmatprep.subr.mxu0 0.0
        %1750 = vmatpush1.msra.mxu0 %v1506
        %1751 = vmatprep.subr.mxu0 0.0
        %1752 = vmatpush1.msra.mxu0 %v1507
        %1753 = vmatprep.subr.mxu0 0.0
        %1754 = vmatpush1.msra.mxu0 %v1508
        %1755 = vmatprep.subr.mxu0 0.0
        %1756 = vmatpush1.msra.mxu0 %v1509
        %1757 = vmatprep.subr.mxu0 0.0
        %1758 = vmatpush1.msra.mxu0 %v1510
        %1759 = vmatprep.subr.mxu0 0.0
        %1760 = vmatpush1.msra.mxu0 %v1511
        %1761 = vmatprep.subr.mxu0 0.0
        %1762 = vmatpush1.msra.mxu0 %v1512
        %1763 = vmatprep.subr.mxu0 0.0
        %1764 = vmatpush1.msra.mxu0 %v1513
        %1765 = vmatprep.subr.mxu0 0.0
        %1766 = vmatpush1.msra.mxu0 %v1514
        %1767 = vmatprep.subr.mxu0 0.0
        %1768 = vmatpush1.msra.mxu0 %v1515
        %1769 = vmatprep.subr.mxu0 0.0
        %1770 = vmatpush1.msra.mxu0 %v1516
        %1771 = vmatprep.subr.mxu0 0.0
        %1772 = vmatpush1.msra.mxu0 %v1517
        %1773 = vmatprep.subr.mxu0 0.0
        %1774 = vmatpush1.msra.mxu0 %v1518
        %1775 = vmatprep.subr.mxu0 0.0
        %1776 = vmatpush1.msra.mxu0 %v1519
        %1777 = vmatprep.subr.mxu0 0.0
        %1778 = vmatpush1.msra.mxu0 0.0
        %1779 = vmatprep.subr.mxu0 0.0
        %1780 = vmatpush1.msra.mxu0 0.0
        %1781 = vmatprep.subr.mxu0 0.0
        %1782 = vmatpush1.msra.mxu0 0.0
        %1783 = vmatprep.subr.mxu0 0.0
        %1784 = vmatpush1.msra.mxu0 0.0
        %1785 = vmatprep.subr.mxu0 0.0
        %1786 = vmatpush1.msra.mxu0 0.0
        %1787 = vmatprep.subr.mxu0 0.0
        %1788 = vmatpush1.msra.mxu0 0.0
        %1789 = vmatprep.subr.mxu0 0.0
        %1790 = vmatpush1.msra.mxu0 0.0
        %1791 = vmatprep.subr.mxu0 0.0
        %1792 = vmatpush1.msra.mxu0 0.0
        %1793 = vmatprep.subr.mxu0 0.0
        %1794 = vmatpush1.msra.mxu0 0.0
        %1795 = vmatprep.subr.mxu0 0.0
        %1796 = vmatpush1.msra.mxu0 0.0
        %1797 = vmatprep.subr.mxu0 0.0
        %1798 = vmatpush1.msra.mxu0 0.0
        %1799 = vmatprep.subr.mxu0 0.0
        %1800 = vmatpush1.msra.mxu0 0.0
        %1801 = vmatprep.subr.mxu0 0.0
        %1802 = vmatpush1.msra.mxu0 0.0
        %1803 = vmatprep.subr.mxu0 0.0
        %1804 = vmatpush1.msra.mxu0 0.0
        %1805 = vmatprep.subr.mxu0 0.0
        %1806 = vmatpush1.msra.mxu0 0.0
        %1807 = vmatprep.subr.mxu0 0.0
        %1808 = vmatpush1.msra.mxu0 0.0
        %1809 = vmatprep.mubr.f32.mxu0 0.0
        %1810 = vmatmul.mubr.f32.gmra.mrb[0].mxu0 %v1439
        %v1811 = vpop.f32.mrb[0].mxu0
        %v1812 = vadd.f32 %v1587, %v1811
        %v1813 = vpop.f32.mrb[0].mxu0
        %1814 = vmatprep.mubr.f32.mxu0 0.0
        %1815 = vmatmul.mubr.f32.gmra.mrb[0].mxu0 %v1440
        %v1816 = vpop.f32.mrb[0].mxu0
        %v1817 = vadd.f32 %v1592, %v1816
        %v1818 = vpop.f32.mrb[0].mxu0
        %1819 = vmatprep.mubr.f32.mxu0 0.0
        %1820 = vmatmul.mubr.f32.gmra.mrb[0].mxu0 %v1441
        %v1821 = vpop.f32.mrb[0].mxu0
        %v1822 = vadd.f32 %v1597, %v1821
        %v1823 = vpop.f32.mrb[0].mxu0
        %1824 = vmatprep.mubr.f32.mxu0 0.0
        %1825 = vmatmul.mubr.f32.gmra.mrb[0].mxu0 %v1442
        %v1826 = vpop.f32.mrb[0].mxu0
        %v1827 = vadd.f32 %v1602, %v1826
        %v1828 = vpop.f32.mrb[0].mxu0
        %1829 = vmatprep.mubr.f32.mxu0 0.0
        %1830 = vmatmul.mubr.f32.gmra.mrb[0].mxu0 %v1443
        %v1831 = vpop.f32.mrb[0].mxu0
        %v1832 = vadd.f32 %v1607, %v1831
        %v1833 = vpop.f32.mrb[0].mxu0
        %1834 = vmatprep.mubr.f32.mxu0 0.0
        %1835 = vmatmul.mubr.f32.gmra.mrb[0].mxu0 %v1444
        %v1836 = vpop.f32.mrb[0].mxu0
        %v1837 = vadd.f32 %v1612, %v1836
        %v1838 = vpop.f32.mrb[0].mxu0
        %1839 = vmatprep.mubr.f32.mxu0 0.0
        %1840 = vmatmul.mubr.f32.gmra.mrb[0].mxu0 %v1445
        %v1841 = vpop.f32.mrb[0].mxu0
        %v1842 = vadd.f32 %v1617, %v1841
        %v1843 = vpop.f32.mrb[0].mxu0
        %1844 = vmatprep.mubr.f32.mxu0 0.0
        %1845 = vmatmul.mubr.f32.gmra.mrb[0].mxu0 %v1446
        %v1846 = vpop.f32.mrb[0].mxu0
        %v1847 = vadd.f32 %v1622, %v1846
        %v1848 = vpop.f32.mrb[0].mxu0
        %1849 = vmatprep.mubr.f32.mxu0 0.0
        %1850 = vmatmul.mubr.f32.gmra.mrb[0].mxu0 %v1447
        %v1851 = vpop.f32.mrb[0].mxu0
        %v1852 = vadd.f32 %v1627, %v1851
        %v1853 = vpop.f32.mrb[0].mxu0
        %1854 = vmatprep.mubr.f32.mxu0 0.0
        %1855 = vmatmul.mubr.f32.gmra.mrb[0].mxu0 %v1448
        %v1856 = vpop.f32.mrb[0].mxu0
        %v1857 = vadd.f32 %v1632, %v1856
        %v1858 = vpop.f32.mrb[0].mxu0
        %1859 = vmatprep.mubr.f32.mxu0 0.0
        %1860 = vmatmul.mubr.f32.gmra.mrb[0].mxu0 %v1449
        %v1861 = vpop.f32.mrb[0].mxu0
        %v1862 = vadd.f32 %v1637, %v1861
        %v1863 = vpop.f32.mrb[0].mxu0
        %1864 = vmatprep.mubr.f32.mxu0 0.0
        %1865 = vmatmul.mubr.f32.gmra.mrb[0].mxu0 %v1450
        %v1866 = vpop.f32.mrb[0].mxu0
        %v1867 = vadd.f32 %v1642, %v1866
        %v1868 = vpop.f32.mrb[0].mxu0
        %1869 = vmatprep.mubr.f32.mxu0 0.0
        %1870 = vmatmul.mubr.f32.gmra.mrb[0].mxu0 %v1451
        %v1871 = vpop.f32.mrb[0].mxu0
        %v1872 = vadd.f32 %v1647, %v1871
        %v1873 = vpop.f32.mrb[0].mxu0
        %1874 = vmatprep.mubr.f32.mxu0 0.0
        %1875 = vmatmul.mubr.f32.gmra.mrb[0].mxu0 %v1452
        %v1876 = vpop.f32.mrb[0].mxu0
        %v1877 = vadd.f32 %v1652, %v1876
        %v1878 = vpop.f32.mrb[0].mxu0
        %1879 = vmatprep.mubr.f32.mxu0 0.0
        %1880 = vmatmul.mubr.f32.gmra.mrb[0].mxu0 %v1453
        %v1881 = vpop.f32.mrb[0].mxu0
        %v1882 = vadd.f32 %v1657, %v1881
        %v1883 = vpop.f32.mrb[0].mxu0
        %1884 = vmatprep.mubr.f32.mxu0 0.0
        %1885 = vmatmul.mubr.f32.gmra.mrb[0].mxu0 %v1454
        %v1886 = vpop.f32.mrb[0].mxu0
        %v1887 = vadd.f32 %v1662, %v1886
        %v1888 = vpop.f32.mrb[0].mxu0
        %1889 = vmatprep.mubr.f32.mxu0 0.0
        %1890 = vmatmul.mubr.f32.gmra.mrb[0].mxu0 %v1455
        %v1891 = vpop.f32.mrb[0].mxu0
        %v1892 = vadd.f32 %v1667, %v1891
        %v1893 = vpop.f32.mrb[0].mxu0
        %1894 = vmatprep.mubr.f32.mxu0 0.0
        %1895 = vmatmul.mubr.f32.gmra.mrb[0].mxu0 %v1456
        %v1896 = vpop.f32.mrb[0].mxu0
        %v1897 = vadd.f32 %v1672, %v1896
        %v1898 = vpop.f32.mrb[0].mxu0
        %1899 = vmatprep.mubr.f32.mxu0 0.0
        %1900 = vmatmul.mubr.f32.gmra.mrb[0].mxu0 %v1457
        %v1901 = vpop.f32.mrb[0].mxu0
        %v1902 = vadd.f32 %v1677, %v1901
        %v1903 = vpop.f32.mrb[0].mxu0
        %1904 = vmatprep.mubr.f32.mxu0 0.0
        %1905 = vmatmul.mubr.f32.gmra.mrb[0].mxu0 %v1458
        %v1906 = vpop.f32.mrb[0].mxu0
        %v1907 = vadd.f32 %v1682, %v1906
        %v1908 = vpop.f32.mrb[0].mxu0
        %1909 = vmatprep.mubr.f32.mxu0 0.0
        %1910 = vmatmul.mubr.f32.gmra.mrb[0].mxu0 %v1459
        %v1911 = vpop.f32.mrb[0].mxu0
        %v1912 = vadd.f32 %v1687, %v1911
        %v1913 = vpop.f32.mrb[0].mxu0
        %1914 = vmatprep.mubr.f32.mxu0 0.0
        %1915 = vmatmul.mubr.f32.gmra.mrb[0].mxu0 %v1460
        %v1916 = vpop.f32.mrb[0].mxu0
        %v1917 = vadd.f32 %v1692, %v1916
        %v1918 = vpop.f32.mrb[0].mxu0
        %1919 = vmatprep.mubr.f32.mxu0 0.0
        %1920 = vmatmul.mubr.f32.gmra.mrb[0].mxu0 %v1461
        %v1921 = vpop.f32.mrb[0].mxu0
        %v1922 = vadd.f32 %v1697, %v1921
        %v1923 = vpop.f32.mrb[0].mxu0
        %1924 = vmatprep.mubr.f32.mxu0 0.0
        %1925 = vmatmul.mubr.f32.gmra.mrb[0].mxu0 %v1462
        %v1926 = vpop.f32.mrb[0].mxu0
        %v1927 = vadd.f32 %v1702, %v1926
        %v1928 = vpop.f32.mrb[0].mxu0
        %1929 = vmatprep.mubr.f32.mxu0 0.0
        %1930 = vmatmul.mubr.f32.gmra.mrb[0].mxu0 %v1463
        %v1931 = vpop.f32.mrb[0].mxu0
        %v1932 = vadd.f32 %v1707, %v1931
        %v1933 = vpop.f32.mrb[0].mxu0
        %1934 = vmatprep.mubr.f32.mxu0 0.0
        %1935 = vmatmul.mubr.f32.gmra.mrb[0].mxu0 %v1464
        %v1936 = vpop.f32.mrb[0].mxu0
        %v1937 = vadd.f32 %v1712, %v1936
        %v1938 = vpop.f32.mrb[0].mxu0
        %1939 = vmatprep.mubr.f32.mxu0 0.0
        %1940 = vmatmul.mubr.f32.gmra.mrb[0].mxu0 %v1465
        %v1941 = vpop.f32.mrb[0].mxu0
        %v1942 = vadd.f32 %v1717, %v1941
        %v1943 = vpop.f32.mrb[0].mxu0
        %1944 = vmatprep.mubr.f32.mxu0 0.0
        %1945 = vmatmul.mubr.f32.gmra.mrb[0].mxu0 %v1466
        %v1946 = vpop.f32.mrb[0].mxu0
        %v1947 = vadd.f32 %v1722, %v1946
        %v1948 = vpop.f32.mrb[0].mxu0
        %1949 = vmatprep.mubr.f32.mxu0 0.0
        %1950 = vmatmul.mubr.f32.gmra.mrb[0].mxu0 %v1467
        %v1951 = vpop.f32.mrb[0].mxu0
        %v1952 = vadd.f32 %v1727, %v1951
        %v1953 = vpop.f32.mrb[0].mxu0
        %1954 = vmatprep.mubr.f32.mxu0 0.0
        %1955 = vmatmul.mubr.f32.gmra.mrb[0].mxu0 %v1468
        %v1956 = vpop.f32.mrb[0].mxu0
        %v1957 = vadd.f32 %v1732, %v1956
        %v1958 = vpop.f32.mrb[0].mxu0
        %1959 = vmatprep.mubr.f32.mxu0 0.0
        %1960 = vmatmul.mubr.f32.gmra.mrb[0].mxu0 %v1469
        %v1961 = vpop.f32.mrb[0].mxu0
        %v1962 = vadd.f32 %v1737, %v1961
        %v1963 = vpop.f32.mrb[0].mxu0
        %1964 = vmatprep.mubr.f32.mxu0 0.0
        %1965 = vmatmul.mubr.f32.gmra.mrb[0].mxu0 %v1470
        %v1966 = vpop.f32.mrb[0].mxu0
        %v1967 = vadd.f32 %v1742, %v1966
        %v1968 = vpop.f32.mrb[0].mxu0
        %1969 = vdwg.mxu0
        %v1970 = vld [vmem:[#allocation2] sm:$0xff]
        %v1971 = vld [vmem:[#allocation2 + $0x8] sm:$0xff]
        %v1972 = vld [vmem:[#allocation2 + $0x10] sm:$0xff]
        %v1973 = vld [vmem:[#allocation2 + $0x18] sm:$0xff]
        %v1974 = vld [vmem:[#allocation2 + $0x20] sm:$0xff]
        %v1975 = vld [vmem:[#allocation2 + $0x28] sm:$0xff]
        %v1976 = vld [vmem:[#allocation2 + $0x30] sm:$0xff]
        %v1977 = vld [vmem:[#allocation2 + $0x38] sm:$0xff]
        %v1978 = vld [vmem:[#allocation2 + $0x40] sm:$0xff]
        %v1979 = vld [vmem:[#allocation2 + $0x48] sm:$0xff]
        %v1980 = vld [vmem:[#allocation2 + $0x50] sm:$0xff]
        %v1981 = vld [vmem:[#allocation2 + $0x58] sm:$0xff]
        %v1982 = vld [vmem:[#allocation2 + $0x60] sm:$0xff]
        %v1983 = vld [vmem:[#allocation2 + $0x68] sm:$0xff]
        %v1984 = vld [vmem:[#allocation2 + $0x70] sm:$0xff]
        %v1985 = vld [vmem:[#allocation2 + $0x78] sm:$0xff]
        %v1986 = vld [vmem:[#allocation2 + $0x80] sm:$0xff]
        %v1987 = vld [vmem:[#allocation2 + $0x88] sm:$0xff]
        %v1988 = vld [vmem:[#allocation2 + $0x90] sm:$0xff]
        %v1989 = vld [vmem:[#allocation2 + $0x98] sm:$0xff]
        %v1990 = vld [vmem:[#allocation2 + $0xa0] sm:$0xff]
        %v1991 = vld [vmem:[#allocation2 + $0xa8] sm:$0xff]
        %v1992 = vld [vmem:[#allocation2 + $0xb0] sm:$0xff]
        %v1993 = vld [vmem:[#allocation2 + $0xb8] sm:$0xff]
        %v1994 = vld [vmem:[#allocation2 + $0xc0] sm:$0xff]
        %v1995 = vld [vmem:[#allocation2 + $0xc8] sm:$0xff]
        %v1996 = vld [vmem:[#allocation2 + $0xd0] sm:$0xff]
        %v1997 = vld [vmem:[#allocation2 + $0xd8] sm:$0xff]
        %v1998 = vld [vmem:[#allocation2 + $0xe0] sm:$0xff]
        %v1999 = vld [vmem:[#allocation2 + $0xe8] sm:$0xff]
        %v2000 = vld [vmem:[#allocation2 + $0xf0] sm:$0xff]
        %v2001 = vld [vmem:[#allocation2 + $0xf8] sm:$0xff]
        %v2002 = vadd.f32 %v1970, %v1812
        %v2003 = vadd.f32 %v1971, %v1817
        %v2004 = vadd.f32 %v1972, %v1822
        %v2005 = vadd.f32 %v1973, %v1827
        %v2006 = vadd.f32 %v1974, %v1832
        %v2007 = vadd.f32 %v1975, %v1837
        %v2008 = vadd.f32 %v1976, %v1842
        %v2009 = vadd.f32 %v1977, %v1847
        %v2010 = vadd.f32 %v1978, %v1852
        %v2011 = vadd.f32 %v1979, %v1857
        %v2012 = vadd.f32 %v1980, %v1862
        %v2013 = vadd.f32 %v1981, %v1867
        %v2014 = vadd.f32 %v1982, %v1872
        %v2015 = vadd.f32 %v1983, %v1877
        %v2016 = vadd.f32 %v1984, %v1882
        %v2017 = vadd.f32 %v1985, %v1887
        %v2018 = vadd.f32 %v1986, %v1892
        %v2019 = vadd.f32 %v1987, %v1897
        %v2020 = vadd.f32 %v1988, %v1902
        %v2021 = vadd.f32 %v1989, %v1907
        %v2022 = vadd.f32 %v1990, %v1912
        %v2023 = vadd.f32 %v1991, %v1917
        %v2024 = vadd.f32 %v1992, %v1922
        %v2025 = vadd.f32 %v1993, %v1927
        %v2026 = vadd.f32 %v1994, %v1932
        %v2027 = vadd.f32 %v1995, %v1937
        %v2028 = vadd.f32 %v1996, %v1942
        %v2029 = vadd.f32 %v1997, %v1947
        %v2030 = vadd.f32 %v1998, %v1952
        %v2031 = vadd.f32 %v1999, %v1957
        %v2032 = vadd.f32 %v2000, %v1962
        %v2033 = vadd.f32 %v2001, %v1967
        %2034 = vst [vmem:[#allocation2] sm:$0xff] %v2002
        %2035 = vst [vmem:[#allocation2 + $0x8] sm:$0xff] %v2003
        %2036 = vst [vmem:[#allocation2 + $0x10] sm:$0xff] %v2004
        %2037 = vst [vmem:[#allocation2 + $0x18] sm:$0xff] %v2005
        %2038 = vst [vmem:[#allocation2 + $0x20] sm:$0xff] %v2006
        %2039 = vst [vmem:[#allocation2 + $0x28] sm:$0xff] %v2007
        %2040 = vst [vmem:[#allocation2 + $0x30] sm:$0xff] %v2008
        %2041 = vst [vmem:[#allocation2 + $0x38] sm:$0xff] %v2009
        %2042 = vst [vmem:[#allocation2 + $0x40] sm:$0xff] %v2010
        %2043 = vst [vmem:[#allocation2 + $0x48] sm:$0xff] %v2011
        %2044 = vst [vmem:[#allocation2 + $0x50] sm:$0xff] %v2012
        %2045 = vst [vmem:[#allocation2 + $0x58] sm:$0xff] %v2013
        %2046 = vst [vmem:[#allocation2 + $0x60] sm:$0xff] %v2014
        %2047 = vst [vmem:[#allocation2 + $0x68] sm:$0xff] %v2015
        %2048 = vst [vmem:[#allocation2 + $0x70] sm:$0xff] %v2016
        %2049 = vst [vmem:[#allocation2 + $0x78] sm:$0xff] %v2017
        %2050 = vst [vmem:[#allocation2 + $0x80] sm:$0xff] %v2018
        %2051 = vst [vmem:[#allocation2 + $0x88] sm:$0xff] %v2019
        %2052 = vst [vmem:[#allocation2 + $0x90] sm:$0xff] %v2020
        %2053 = vst [vmem:[#allocation2 + $0x98] sm:$0xff] %v2021
        %2054 = vst [vmem:[#allocation2 + $0xa0] sm:$0xff] %v2022
        %2055 = vst [vmem:[#allocation2 + $0xa8] sm:$0xff] %v2023
        %2056 = vst [vmem:[#allocation2 + $0xb0] sm:$0xff] %v2024
        %2057 = vst [vmem:[#allocation2 + $0xb8] sm:$0xff] %v2025
        %2058 = vst [vmem:[#allocation2 + $0xc0] sm:$0xff] %v2026
        %2059 = vst [vmem:[#allocation2 + $0xc8] sm:$0xff] %v2027
        %2060 = vst [vmem:[#allocation2 + $0xd0] sm:$0xff] %v2028
        %2061 = vst [vmem:[#allocation2 + $0xd8] sm:$0xff] %v2029
        %2062 = vst [vmem:[#allocation2 + $0xe0] sm:$0xff] %v2030
        %2063 = vst [vmem:[#allocation2 + $0xe8] sm:$0xff] %v2031
        %2064 = vst [vmem:[#allocation2 + $0xf0] sm:$0xff] %v2032
        %2065 = vst [vmem:[#allocation2 + $0xf8] sm:$0xff] %v2033
        %v2066 = vld [vmem:[#allocation2] sm:$0xff]
        %v2067 = vld [vmem:[#allocation2 + $0x8] sm:$0xff]
        %v2068 = vld [vmem:[#allocation2 + $0x10] sm:$0xff]
        %v2069 = vld [vmem:[#allocation2 + $0x18] sm:$0xff]
        %v2070 = vld [vmem:[#allocation2 + $0x20] sm:$0xff]
        %v2071 = vld [vmem:[#allocation2 + $0x28] sm:$0xff]
        %v2072 = vld [vmem:[#allocation2 + $0x30] sm:$0xff]
        %v2073 = vld [vmem:[#allocation2 + $0x38] sm:$0xff]
        %v2074 = vld [vmem:[#allocation2 + $0x40] sm:$0xff]
        %v2075 = vld [vmem:[#allocation2 + $0x48] sm:$0xff]
        %v2076 = vld [vmem:[#allocation2 + $0x50] sm:$0xff]
        %v2077 = vld [vmem:[#allocation2 + $0x58] sm:$0xff]
        %v2078 = vld [vmem:[#allocation2 + $0x60] sm:$0xff]
        %v2079 = vld [vmem:[#allocation2 + $0x68] sm:$0xff]
        %v2080 = vld [vmem:[#allocation2 + $0x70] sm:$0xff]
        %v2081 = vld [vmem:[#allocation2 + $0x78] sm:$0xff]
        %v2082 = vld [vmem:[#allocation2 + $0x80] sm:$0xff]
        %v2083 = vld [vmem:[#allocation2 + $0x88] sm:$0xff]
        %v2084 = vld [vmem:[#allocation2 + $0x90] sm:$0xff]
        %v2085 = vld [vmem:[#allocation2 + $0x98] sm:$0xff]
        %v2086 = vld [vmem:[#allocation2 + $0xa0] sm:$0xff]
        %v2087 = vld [vmem:[#allocation2 + $0xa8] sm:$0xff]
        %v2088 = vld [vmem:[#allocation2 + $0xb0] sm:$0xff]
        %v2089 = vld [vmem:[#allocation2 + $0xb8] sm:$0xff]
        %v2090 = vld [vmem:[#allocation2 + $0xc0] sm:$0xff]
        %v2091 = vld [vmem:[#allocation2 + $0xc8] sm:$0xff]
        %v2092 = vld [vmem:[#allocation2 + $0xd0] sm:$0xff]
        %v2093 = vld [vmem:[#allocation2 + $0xd8] sm:$0xff]
        %v2094 = vld [vmem:[#allocation2 + $0xe0] sm:$0xff]
        %v2095 = vld [vmem:[#allocation2 + $0xe8] sm:$0xff]
        %v2096 = vld [vmem:[#allocation2 + $0xf0] sm:$0xff]
        %v2097 = vld [vmem:[#allocation2 + $0xf8] sm:$0xff]
        %v2098 = vld [vmem:[%s3] sm:$0x1]
        %v2100 = vlaneseq
        %v2101 = vshrl.u32 %v2100, 7
        %v2102 = vsub.s32 0, %v2101
        %v2103 = vrot.slane %v2098, %v2102
        %v2105 = vadd.f32 %v2066, %v2103
        %v2106 = vadd.f32 %v2067, %v2103
        %v2107 = vadd.f32 %v2068, %v2103
        %v2108 = vadd.f32 %v2069, %v2103
        %v2109 = vadd.f32 %v2070, %v2103
        %v2110 = vadd.f32 %v2071, %v2103
        %v2111 = vadd.f32 %v2072, %v2103
        %v2112 = vadd.f32 %v2073, %v2103
        %v2113 = vadd.f32 %v2074, %v2103
        %v2114 = vadd.f32 %v2075, %v2103
        %v2115 = vadd.f32 %v2076, %v2103
        %v2116 = vadd.f32 %v2077, %v2103
        %v2117 = vadd.f32 %v2078, %v2103
        %v2118 = vadd.f32 %v2079, %v2103
        %v2119 = vadd.f32 %v2080, %v2103
        %v2120 = vadd.f32 %v2081, %v2103
        %v2121 = vadd.f32 %v2082, %v2103
        %v2122 = vadd.f32 %v2083, %v2103
        %v2123 = vadd.f32 %v2084, %v2103
        %v2124 = vadd.f32 %v2085, %v2103
        %v2125 = vadd.f32 %v2086, %v2103
        %v2126 = vadd.f32 %v2087, %v2103
        %v2127 = vadd.f32 %v2088, %v2103
        %v2128 = vadd.f32 %v2089, %v2103
        %v2129 = vadd.f32 %v2090, %v2103
        %v2130 = vadd.f32 %v2091, %v2103
        %v2131 = vadd.f32 %v2092, %v2103
        %v2132 = vadd.f32 %v2093, %v2103
        %v2133 = vadd.f32 %v2094, %v2103
        %v2134 = vadd.f32 %v2095, %v2103
        %v2135 = vadd.f32 %v2096, %v2103
        %v2136 = vadd.f32 %v2097, %v2103
        %v2137 = vmax.f32 %v2105, 0.0
        %v2138 = vmax.f32 %v2106, 0.0
        %v2139 = vmax.f32 %v2107, 0.0
        %v2140 = vmax.f32 %v2108, 0.0
        %v2141 = vmax.f32 %v2109, 0.0
        %v2142 = vmax.f32 %v2110, 0.0
        %v2143 = vmax.f32 %v2111, 0.0
        %v2144 = vmax.f32 %v2112, 0.0
        %v2145 = vmax.f32 %v2113, 0.0
        %v2146 = vmax.f32 %v2114, 0.0
        %v2147 = vmax.f32 %v2115, 0.0
        %v2148 = vmax.f32 %v2116, 0.0
        %v2149 = vmax.f32 %v2117, 0.0
        %v2150 = vmax.f32 %v2118, 0.0
        %v2151 = vmax.f32 %v2119, 0.0
        %v2152 = vmax.f32 %v2120, 0.0
        %v2153 = vmax.f32 %v2121, 0.0
        %v2154 = vmax.f32 %v2122, 0.0
        %v2155 = vmax.f32 %v2123, 0.0
        %v2156 = vmax.f32 %v2124, 0.0
        %v2157 = vmax.f32 %v2125, 0.0
        %v2158 = vmax.f32 %v2126, 0.0
        %v2159 = vmax.f32 %v2127, 0.0
        %v2160 = vmax.f32 %v2128, 0.0
        %v2161 = vmax.f32 %v2129, 0.0
        %v2162 = vmax.f32 %v2130, 0.0
        %v2163 = vmax.f32 %v2131, 0.0
        %v2164 = vmax.f32 %v2132, 0.0
        %v2165 = vmax.f32 %v2133, 0.0
        %v2166 = vmax.f32 %v2134, 0.0
        %v2167 = vmax.f32 %v2135, 0.0
        %v2168 = vmax.f32 %v2136, 0.0
        %2169 = vst [vmem:[#allocation3] sm:$0xff] 0.0
        %2170 = vst [vmem:[#allocation3 + $0x8] sm:$0xff] 0.0
        %2171 = vst [vmem:[#allocation3 + $0x10] sm:$0x3] 0.0
        %s2172 = scalar_lea.vmem [#allocation3], 408
        %2173 = vst [vmem:[%s2172] sm:$0xff] 0.0
        %2174 = vst [vmem:[%s2172 + $0x8] sm:$0xff] 0.0
        %2175 = vst [vmem:[%s2172 + $0x10] sm:$0x3] 0.0
        %2176 = vst [vmem:[#allocation3] sm:$0x1] 0.0
        %2177 = vst [vmem:[#allocation3 + $0x18] sm:$0x1] 0.0
        %2178 = vst [vmem:[#allocation3 + $0x30] sm:$0x1] 0.0
        %2179 = vst [vmem:[#allocation3 + $0x48] sm:$0x1] 0.0
        %2180 = vst [vmem:[#allocation3 + $0x60] sm:$0x1] 0.0
        %2181 = vst [vmem:[#allocation3 + $0x78] sm:$0x1] 0.0
        %2182 = vst [vmem:[#allocation3 + $0x90] sm:$0x1] 0.0
        %2183 = vst [vmem:[#allocation3 + $0xa8] sm:$0x1] 0.0
        %2184 = vst [vmem:[#allocation3 + $0xc0] sm:$0x1] 0.0
        %2185 = vst [vmem:[#allocation3 + $0xd8] sm:$0x1] 0.0
        %2186 = vst [vmem:[#allocation3 + $0xf0] sm:$0x1] 0.0
        %2187 = vst [vmem:[#allocation3 + $0x108] sm:$0x1] 0.0
        %2188 = vst [vmem:[#allocation3 + $0x120] sm:$0x1] 0.0
        %2189 = vst [vmem:[#allocation3 + $0x138] sm:$0x1] 0.0
        %2190 = vst [vmem:[#allocation3 + $0x150] sm:$0x1] 0.0
        %2191 = vst [vmem:[#allocation3 + $0x168] sm:$0x1] 0.0
        %2192 = vst [vmem:[#allocation3 + $0x180] sm:$0x1] 0.0
        %2193 = vst [vmem:[#allocation3 + $0x198] sm:$0x1] 0.0
        %2194 = vst [vmem:[#allocation3 + $0x11] sm:$0x1] 0.0
        %2195 = vst [vmem:[#allocation3 + $0x29] sm:$0x1] 0.0
        %2196 = vst [vmem:[#allocation3 + $0x41] sm:$0x1] 0.0
        %2197 = vst [vmem:[#allocation3 + $0x59] sm:$0x1] 0.0
        %2198 = vst [vmem:[#allocation3 + $0x71] sm:$0x1] 0.0
        %2199 = vst [vmem:[#allocation3 + $0x89] sm:$0x1] 0.0
        %2200 = vst [vmem:[#allocation3 + $0xa1] sm:$0x1] 0.0
        %2201 = vst [vmem:[#allocation3 + $0xb9] sm:$0x1] 0.0
        %2202 = vst [vmem:[#allocation3 + $0xd1] sm:$0x1] 0.0
        %2203 = vst [vmem:[#allocation3 + $0xe9] sm:$0x1] 0.0
        %2204 = vst [vmem:[#allocation3 + $0x101] sm:$0x1] 0.0
        %2205 = vst [vmem:[#allocation3 + $0x119] sm:$0x1] 0.0
        %2206 = vst [vmem:[#allocation3 + $0x131] sm:$0x1] 0.0
        %2207 = vst [vmem:[#allocation3 + $0x149] sm:$0x1] 0.0
        %2208 = vst [vmem:[#allocation3 + $0x161] sm:$0x1] 0.0
        %2209 = vst [vmem:[#allocation3 + $0x179] sm:$0x1] 0.0
        %2210 = vst [vmem:[#allocation3 + $0x191] sm:$0x1] 0.0
        %2211 = vst [vmem:[#allocation3 + $0x1a9] sm:$0x1] 0.0
        %s2212 = scalar_lea.vmem [#allocation3], 24
        %2213 = vst [vmem:[%s2212 + $0x1] sm:$0xff] %v2137
        %2214 = vst [vmem:[%s2212 + $0x9] sm:$0xff] %v2138
        %2215 = vst [vmem:[%s2212 + $0x19] sm:$0xff] %v2139
        %2216 = vst [vmem:[%s2212 + $0x21] sm:$0xff] %v2140
        %2217 = vst [vmem:[%s2212 + $0x31] sm:$0xff] %v2141
        %2218 = vst [vmem:[%s2212 + $0x39] sm:$0xff] %v2142
        %2219 = vst [vmem:[%s2212 + $0x49] sm:$0xff] %v2143
        %2220 = vst [vmem:[%s2212 + $0x51] sm:$0xff] %v2144
        %2221 = vst [vmem:[%s2212 + $0x61] sm:$0xff] %v2145
        %2222 = vst [vmem:[%s2212 + $0x69] sm:$0xff] %v2146
        %2223 = vst [vmem:[%s2212 + $0x79] sm:$0xff] %v2147
        %2224 = vst [vmem:[%s2212 + $0x81] sm:$0xff] %v2148
        %2225 = vst [vmem:[%s2212 + $0x91] sm:$0xff] %v2149
        %2226 = vst [vmem:[%s2212 + $0x99] sm:$0xff] %v2150
        %2227 = vst [vmem:[%s2212 + $0xa9] sm:$0xff] %v2151
        %2228 = vst [vmem:[%s2212 + $0xb1] sm:$0xff] %v2152
        %2229 = vst [vmem:[%s2212 + $0xc1] sm:$0xff] %v2153
        %2230 = vst [vmem:[%s2212 + $0xc9] sm:$0xff] %v2154
        %2231 = vst [vmem:[%s2212 + $0xd9] sm:$0xff] %v2155
        %2232 = vst [vmem:[%s2212 + $0xe1] sm:$0xff] %v2156
        %2233 = vst [vmem:[%s2212 + $0xf1] sm:$0xff] %v2157
        %2234 = vst [vmem:[%s2212 + $0xf9] sm:$0xff] %v2158
        %2235 = vst [vmem:[%s2212 + $0x109] sm:$0xff] %v2159
        %2236 = vst [vmem:[%s2212 + $0x111] sm:$0xff] %v2160
        %2237 = vst [vmem:[%s2212 + $0x121] sm:$0xff] %v2161
        %2238 = vst [vmem:[%s2212 + $0x129] sm:$0xff] %v2162
        %2239 = vst [vmem:[%s2212 + $0x139] sm:$0xff] %v2163
        %2240 = vst [vmem:[%s2212 + $0x141] sm:$0xff] %v2164
        %2241 = vst [vmem:[%s2212 + $0x151] sm:$0xff] %v2165
        %2242 = vst [vmem:[%s2212 + $0x159] sm:$0xff] %v2166
        %2243 = vst [vmem:[%s2212 + $0x169] sm:$0xff] %v2167
        %2244 = vst [vmem:[%s2212 + $0x171] sm:$0xff] %v2168
        %v2245 = vld [vmem:[#allocation3] sm:$0xff]
        %v2246 = vld [vmem:[#allocation3 + $0x8] sm:$0xff]
        %v2247 = vld [vmem:[#allocation3 + $0x18] sm:$0xff]
        %v2248 = vld [vmem:[#allocation3 + $0x20] sm:$0xff]
        %v2249 = vld [vmem:[#allocation3 + $0x30] sm:$0xff]
        %v2250 = vld [vmem:[#allocation3 + $0x38] sm:$0xff]
        %v2251 = vld [vmem:[#allocation3 + $0x48] sm:$0xff]
        %v2252 = vld [vmem:[#allocation3 + $0x50] sm:$0xff]
        %v2253 = vld [vmem:[#allocation3 + $0x60] sm:$0xff]
        %v2254 = vld [vmem:[#allocation3 + $0x68] sm:$0xff]
        %v2255 = vld [vmem:[#allocation3 + $0x78] sm:$0xff]
        %v2256 = vld [vmem:[#allocation3 + $0x80] sm:$0xff]
        %v2257 = vld [vmem:[#allocation3 + $0x90] sm:$0xff]
        %v2258 = vld [vmem:[#allocation3 + $0x98] sm:$0xff]
        %v2259 = vld [vmem:[#allocation3 + $0xa8] sm:$0xff]
        %v2260 = vld [vmem:[#allocation3 + $0xb0] sm:$0xff]
        %v2261 = vld [vmem:[#allocation3 + $0xc0] sm:$0xff]
        %v2262 = vld [vmem:[#allocation3 + $0xc8] sm:$0xff]
        %v2263 = vld [vmem:[#allocation3 + $0xd8] sm:$0xff]
        %v2264 = vld [vmem:[#allocation3 + $0xe0] sm:$0xff]
        %v2265 = vld [vmem:[#allocation3 + $0xf0] sm:$0xff]
        %v2266 = vld [vmem:[#allocation3 + $0xf8] sm:$0xff]
        %v2267 = vld [vmem:[#allocation3 + $0x108] sm:$0xff]
        %v2268 = vld [vmem:[#allocation3 + $0x110] sm:$0xff]
        %v2269 = vld [vmem:[#allocation3 + $0x120] sm:$0xff]
        %v2270 = vld [vmem:[#allocation3 + $0x128] sm:$0xff]
        %v2271 = vld [vmem:[#allocation3 + $0x138] sm:$0xff]
        %v2272 = vld [vmem:[#allocation3 + $0x140] sm:$0xff]
        %v2273 = vld [vmem:[#allocation3 + $0x150] sm:$0xff]
        %v2274 = vld [vmem:[#allocation3 + $0x158] sm:$0xff]
        %v2275 = vld [vmem:[#allocation3 + $0x168] sm:$0xff]
        %v2276 = vld [vmem:[#allocation3 + $0x170] sm:$0xff]
        %v2277 = vld [vmem:[#allocation3 + $0x180] sm:$0xff]
        %v2278 = vld [vmem:[#allocation3 + $0x188] sm:$0xff]
        %v2279 = vld [vmem:[#allocation3 + $0x198] sm:$0xff]
        %v2280 = vld [vmem:[#allocation3 + $0x1a0] sm:$0xff]
        %v2281 = vld [vmem:[#allocation4] sm:$0xff]
        %v2282 = vld [vmem:[#allocation4 + $0x8] sm:$0xff]
        %v2283 = vld [vmem:[#allocation4 + $0x10] sm:$0xff]
        %v2284 = vld [vmem:[#allocation4 + $0x18] sm:$0xff]
        %v2285 = vld [vmem:[#allocation4 + $0x20] sm:$0xff]
        %v2286 = vld [vmem:[#allocation4 + $0x28] sm:$0xff]
        %v2287 = vld [vmem:[#allocation4 + $0x30] sm:$0xff]
        %v2288 = vld [vmem:[#allocation4 + $0x38] sm:$0xff]
        %v2289 = vld [vmem:[#allocation4 + $0x40] sm:$0xff]
        %v2290 = vld [vmem:[#allocation4 + $0x48] sm:$0xff]
        %v2291 = vld [vmem:[#allocation4 + $0x50] sm:$0xff]
        %v2292 = vld [vmem:[#allocation4 + $0x58] sm:$0xff]
        %v2293 = vld [vmem:[#allocation4 + $0x60] sm:$0xff]
        %v2294 = vld [vmem:[#allocation4 + $0x68] sm:$0xff]
        %v2295 = vld [vmem:[#allocation4 + $0x70] sm:$0xff]
        %v2296 = vld [vmem:[#allocation4 + $0x78] sm:$0xff]
        %v2297 = vld [vmem:[#allocation4 + $0x80] sm:$0xff]
        %v2298 = vld [vmem:[#allocation4 + $0x88] sm:$0xff]
        %v2299 = vld [vmem:[#allocation4 + $0x90] sm:$0xff]
        %v2300 = vld [vmem:[#allocation4 + $0x98] sm:$0xff]
        %v2301 = vld [vmem:[#allocation4 + $0xa0] sm:$0xff]
        %v2302 = vld [vmem:[#allocation4 + $0xa8] sm:$0xff]
        %v2303 = vld [vmem:[#allocation4 + $0xb0] sm:$0xff]
        %v2304 = vld [vmem:[#allocation4 + $0xb8] sm:$0xff]
        %v2305 = vld [vmem:[#allocation4 + $0xc0] sm:$0xff]
        %v2306 = vld [vmem:[#allocation4 + $0xc8] sm:$0xff]
        %v2307 = vld [vmem:[#allocation4 + $0xd0] sm:$0xff]
        %v2308 = vld [vmem:[#allocation4 + $0xd8] sm:$0xff]
        %v2309 = vld [vmem:[#allocation4 + $0xe0] sm:$0xff]
        %v2310 = vld [vmem:[#allocation4 + $0xe8] sm:$0xff]
        %v2311 = vld [vmem:[#allocation4 + $0xf0] sm:$0xff]
        %v2312 = vld [vmem:[#allocation4 + $0xf8] sm:$0xff]
        %v2313 = vld [vmem:[#allocation4 + $0x100] sm:$0xff]
        %v2314 = vld [vmem:[#allocation4 + $0x108] sm:$0xff]
        %v2315 = vld [vmem:[#allocation4 + $0x110] sm:$0xff]
        %v2316 = vld [vmem:[#allocation4 + $0x118] sm:$0xff]
        %v2317 = vld [vmem:[#allocation4 + $0x120] sm:$0xff]
        %v2318 = vld [vmem:[#allocation4 + $0x128] sm:$0xff]
        %v2319 = vld [vmem:[#allocation4 + $0x130] sm:$0xff]
        %v2320 = vld [vmem:[#allocation4 + $0x138] sm:$0xff]
        %v2321 = vld [vmem:[#allocation4 + $0x140] sm:$0xff]
        %v2322 = vld [vmem:[#allocation4 + $0x148] sm:$0xff]
        %v2323 = vld [vmem:[#allocation4 + $0x150] sm:$0xff]
        %v2324 = vld [vmem:[#allocation4 + $0x158] sm:$0xff]
        %v2325 = vld [vmem:[#allocation4 + $0x160] sm:$0xff]
        %v2326 = vld [vmem:[#allocation4 + $0x168] sm:$0xff]
        %v2327 = vld [vmem:[#allocation4 + $0x170] sm:$0xff]
        %v2328 = vld [vmem:[#allocation4 + $0x178] sm:$0xff]
        %2329 = vmatprep.subr.mxu0 0.0
        %2330 = vmatpush1.msra.mxu0 %v2281
        %2331 = vmatprep.subr.mxu0 0.0
        %2332 = vmatpush1.msra.mxu0 %v2282
        %2333 = vmatprep.subr.mxu0 0.0
        %2334 = vmatpush1.msra.mxu0 %v2283
        %2335 = vmatprep.subr.mxu0 0.0
        %2336 = vmatpush1.msra.mxu0 %v2284
        %2337 = vmatprep.subr.mxu0 0.0
        %2338 = vmatpush1.msra.mxu0 %v2285
        %2339 = vmatprep.subr.mxu0 0.0
        %2340 = vmatpush1.msra.mxu0 %v2286
        %2341 = vmatprep.subr.mxu0 0.0
        %2342 = vmatpush1.msra.mxu0 %v2287
        %2343 = vmatprep.subr.mxu0 0.0
        %2344 = vmatpush1.msra.mxu0 %v2288
        %2345 = vmatprep.subr.mxu0 0.0
        %2346 = vmatpush1.msra.mxu0 %v2289
        %2347 = vmatprep.subr.mxu0 0.0
        %2348 = vmatpush1.msra.mxu0 %v2290
        %2349 = vmatprep.subr.mxu0 0.0
        %2350 = vmatpush1.msra.mxu0 %v2291
        %2351 = vmatprep.subr.mxu0 0.0
        %2352 = vmatpush1.msra.mxu0 %v2292
        %2353 = vmatprep.subr.mxu0 0.0
        %2354 = vmatpush1.msra.mxu0 %v2293
        %2355 = vmatprep.subr.mxu0 0.0
        %2356 = vmatpush1.msra.mxu0 %v2294
        %2357 = vmatprep.subr.mxu0 0.0
        %2358 = vmatpush1.msra.mxu0 %v2295
        %2359 = vmatprep.subr.mxu0 0.0
        %2360 = vmatpush1.msra.mxu0 %v2296
        %2361 = vmatprep.subr.mxu0 0.0
        %2362 = vmatpush1.msra.mxu0 %v2297
        %2363 = vmatprep.subr.mxu0 0.0
        %2364 = vmatpush1.msra.mxu0 %v2298
        %2365 = vmatprep.subr.mxu0 0.0
        %2366 = vmatpush1.msra.mxu0 %v2299
        %2367 = vmatprep.subr.mxu0 0.0
        %2368 = vmatpush1.msra.mxu0 %v2300
        %2369 = vmatprep.subr.mxu0 0.0
        %2370 = vmatpush1.msra.mxu0 %v2301
        %2371 = vmatprep.subr.mxu0 0.0
        %2372 = vmatpush1.msra.mxu0 %v2302
        %2373 = vmatprep.subr.mxu0 0.0
        %2374 = vmatpush1.msra.mxu0 %v2303
        %2375 = vmatprep.subr.mxu0 0.0
        %2376 = vmatpush1.msra.mxu0 %v2304
        %2377 = vmatprep.subr.mxu0 0.0
        %2378 = vmatpush1.msra.mxu0 %v2305
        %2379 = vmatprep.subr.mxu0 0.0
        %2380 = vmatpush1.msra.mxu0 %v2306
        %2381 = vmatprep.subr.mxu0 0.0
        %2382 = vmatpush1.msra.mxu0 %v2307
        %2383 = vmatprep.subr.mxu0 0.0
        %2384 = vmatpush1.msra.mxu0 %v2308
        %2385 = vmatprep.subr.mxu0 0.0
        %2386 = vmatpush1.msra.mxu0 %v2309
        %2387 = vmatprep.subr.mxu0 0.0
        %2388 = vmatpush1.msra.mxu0 %v2310
        %2389 = vmatprep.subr.mxu0 0.0
        %2390 = vmatpush1.msra.mxu0 %v2311
        %2391 = vmatprep.subr.mxu0 0.0
        %2392 = vmatpush1.msra.mxu0 %v2312
        %2393 = vmatprep.mubr.f32.mxu0 %v2247
        %2394 = vmatmul.mubr.f32.gmra.mrb[0].mxu0 %v2245
        %v2395 = vpop.f32.mrb[0].mxu0
        %v2396 = vadd.f32 0.0, %v2395
        %v2397 = vpop.f32.mrb[0].mxu0
        %2398 = vmatprep.mubr.f32.mxu0 %v2248
        %2399 = vmatmul.mubr.f32.gmra.mrb[0].mxu0 %v2246
        %v2400 = vpop.f32.mrb[0].mxu0
        %v2401 = vadd.f32 0.0, %v2400
        %v2402 = vpop.f32.mrb[0].mxu0
        %2403 = vmatprep.mubr.f32.mxu0 %v2249
        %2404 = vmatmul.mubr.f32.gmra.mrb[0].mxu0 %v2247
        %v2405 = vpop.f32.mrb[0].mxu0
        %v2406 = vadd.f32 0.0, %v2405
        %v2407 = vpop.f32.mrb[0].mxu0
        %2408 = vmatprep.mubr.f32.mxu0 %v2250
        %2409 = vmatmul.mubr.f32.gmra.mrb[0].mxu0 %v2248
        %v2410 = vpop.f32.mrb[0].mxu0
        %v2411 = vadd.f32 0.0, %v2410
        %v2412 = vpop.f32.mrb[0].mxu0
        %2413 = vmatprep.mubr.f32.mxu0 %v2251
        %2414 = vmatmul.mubr.f32.gmra.mrb[0].mxu0 %v2249
        %v2415 = vpop.f32.mrb[0].mxu0
        %v2416 = vadd.f32 0.0, %v2415
        %v2417 = vpop.f32.mrb[0].mxu0
        %2418 = vmatprep.mubr.f32.mxu0 %v2252
        %2419 = vmatmul.mubr.f32.gmra.mrb[0].mxu0 %v2250
        %v2420 = vpop.f32.mrb[0].mxu0
        %v2421 = vadd.f32 0.0, %v2420
        %v2422 = vpop.f32.mrb[0].mxu0
        %2423 = vmatprep.mubr.f32.mxu0 %v2253
        %2424 = vmatmul.mubr.f32.gmra.mrb[0].mxu0 %v2251
        %v2425 = vpop.f32.mrb[0].mxu0
        %v2426 = vadd.f32 0.0, %v2425
        %v2427 = vpop.f32.mrb[0].mxu0
        %2428 = vmatprep.mubr.f32.mxu0 %v2254
        %2429 = vmatmul.mubr.f32.gmra.mrb[0].mxu0 %v2252
        %v2430 = vpop.f32.mrb[0].mxu0
        %v2431 = vadd.f32 0.0, %v2430
        %v2432 = vpop.f32.mrb[0].mxu0
        %2433 = vmatprep.mubr.f32.mxu0 %v2255
        %2434 = vmatmul.mubr.f32.gmra.mrb[0].mxu0 %v2253
        %v2435 = vpop.f32.mrb[0].mxu0
        %v2436 = vadd.f32 0.0, %v2435
        %v2437 = vpop.f32.mrb[0].mxu0
        %2438 = vmatprep.mubr.f32.mxu0 %v2256
        %2439 = vmatmul.mubr.f32.gmra.mrb[0].mxu0 %v2254
        %v2440 = vpop.f32.mrb[0].mxu0
        %v2441 = vadd.f32 0.0, %v2440
        %v2442 = vpop.f32.mrb[0].mxu0
        %2443 = vmatprep.mubr.f32.mxu0 %v2257
        %2444 = vmatmul.mubr.f32.gmra.mrb[0].mxu0 %v2255
        %v2445 = vpop.f32.mrb[0].mxu0
        %v2446 = vadd.f32 0.0, %v2445
        %v2447 = vpop.f32.mrb[0].mxu0
        %2448 = vmatprep.mubr.f32.mxu0 %v2258
        %2449 = vmatmul.mubr.f32.gmra.mrb[0].mxu0 %v2256
        %v2450 = vpop.f32.mrb[0].mxu0
        %v2451 = vadd.f32 0.0, %v2450
        %v2452 = vpop.f32.mrb[0].mxu0
        %2453 = vmatprep.mubr.f32.mxu0 %v2259
        %2454 = vmatmul.mubr.f32.gmra.mrb[0].mxu0 %v2257
        %v2455 = vpop.f32.mrb[0].mxu0
        %v2456 = vadd.f32 0.0, %v2455
        %v2457 = vpop.f32.mrb[0].mxu0
        %2458 = vmatprep.mubr.f32.mxu0 %v2260
        %2459 = vmatmul.mubr.f32.gmra.mrb[0].mxu0 %v2258
        %v2460 = vpop.f32.mrb[0].mxu0
        %v2461 = vadd.f32 0.0, %v2460
        %v2462 = vpop.f32.mrb[0].mxu0
        %2463 = vmatprep.mubr.f32.mxu0 %v2261
        %2464 = vmatmul.mubr.f32.gmra.mrb[0].mxu0 %v2259
        %v2465 = vpop.f32.mrb[0].mxu0
        %v2466 = vadd.f32 0.0, %v2465
        %v2467 = vpop.f32.mrb[0].mxu0
        %2468 = vmatprep.mubr.f32.mxu0 %v2262
        %2469 = vmatmul.mubr.f32.gmra.mrb[0].mxu0 %v2260
        %v2470 = vpop.f32.mrb[0].mxu0
        %v2471 = vadd.f32 0.0, %v2470
        %v2472 = vpop.f32.mrb[0].mxu0
        %2473 = vmatprep.mubr.f32.mxu0 %v2263
        %2474 = vmatmul.mubr.f32.gmra.mrb[0].mxu0 %v2261
        %v2475 = vpop.f32.mrb[0].mxu0
        %v2476 = vadd.f32 0.0, %v2475
        %v2477 = vpop.f32.mrb[0].mxu0
        %2478 = vmatprep.mubr.f32.mxu0 %v2264
        %2479 = vmatmul.mubr.f32.gmra.mrb[0].mxu0 %v2262
        %v2480 = vpop.f32.mrb[0].mxu0
        %v2481 = vadd.f32 0.0, %v2480
        %v2482 = vpop.f32.mrb[0].mxu0
        %2483 = vmatprep.mubr.f32.mxu0 %v2265
        %2484 = vmatmul.mubr.f32.gmra.mrb[0].mxu0 %v2263
        %v2485 = vpop.f32.mrb[0].mxu0
        %v2486 = vadd.f32 0.0, %v2485
        %v2487 = vpop.f32.mrb[0].mxu0
        %2488 = vmatprep.mubr.f32.mxu0 %v2266
        %2489 = vmatmul.mubr.f32.gmra.mrb[0].mxu0 %v2264
        %v2490 = vpop.f32.mrb[0].mxu0
        %v2491 = vadd.f32 0.0, %v2490
        %v2492 = vpop.f32.mrb[0].mxu0
        %2493 = vmatprep.mubr.f32.mxu0 %v2267
        %2494 = vmatmul.mubr.f32.gmra.mrb[0].mxu0 %v2265
        %v2495 = vpop.f32.mrb[0].mxu0
        %v2496 = vadd.f32 0.0, %v2495
        %v2497 = vpop.f32.mrb[0].mxu0
        %2498 = vmatprep.mubr.f32.mxu0 %v2268
        %2499 = vmatmul.mubr.f32.gmra.mrb[0].mxu0 %v2266
        %v2500 = vpop.f32.mrb[0].mxu0
        %v2501 = vadd.f32 0.0, %v2500
        %v2502 = vpop.f32.mrb[0].mxu0
        %2503 = vmatprep.mubr.f32.mxu0 %v2269
        %2504 = vmatmul.mubr.f32.gmra.mrb[0].mxu0 %v2267
        %v2505 = vpop.f32.mrb[0].mxu0
        %v2506 = vadd.f32 0.0, %v2505
        %v2507 = vpop.f32.mrb[0].mxu0
        %2508 = vmatprep.mubr.f32.mxu0 %v2270
        %2509 = vmatmul.mubr.f32.gmra.mrb[0].mxu0 %v2268
        %v2510 = vpop.f32.mrb[0].mxu0
        %v2511 = vadd.f32 0.0, %v2510
        %v2512 = vpop.f32.mrb[0].mxu0
        %2513 = vmatprep.mubr.f32.mxu0 %v2271
        %2514 = vmatmul.mubr.f32.gmra.mrb[0].mxu0 %v2269
        %v2515 = vpop.f32.mrb[0].mxu0
        %v2516 = vadd.f32 0.0, %v2515
        %v2517 = vpop.f32.mrb[0].mxu0
        %2518 = vmatprep.mubr.f32.mxu0 %v2272
        %2519 = vmatmul.mubr.f32.gmra.mrb[0].mxu0 %v2270
        %v2520 = vpop.f32.mrb[0].mxu0
        %v2521 = vadd.f32 0.0, %v2520
        %v2522 = vpop.f32.mrb[0].mxu0
        %2523 = vmatprep.mubr.f32.mxu0 %v2273
        %2524 = vmatmul.mubr.f32.gmra.mrb[0].mxu0 %v2271
        %v2525 = vpop.f32.mrb[0].mxu0
        %v2526 = vadd.f32 0.0, %v2525
        %v2527 = vpop.f32.mrb[0].mxu0
        %2528 = vmatprep.mubr.f32.mxu0 %v2274
        %2529 = vmatmul.mubr.f32.gmra.mrb[0].mxu0 %v2272
        %v2530 = vpop.f32.mrb[0].mxu0
        %v2531 = vadd.f32 0.0, %v2530
        %v2532 = vpop.f32.mrb[0].mxu0
        %2533 = vmatprep.mubr.f32.mxu0 %v2275
        %2534 = vmatmul.mubr.f32.gmra.mrb[0].mxu0 %v2273
        %v2535 = vpop.f32.mrb[0].mxu0
        %v2536 = vadd.f32 0.0, %v2535
        %v2537 = vpop.f32.mrb[0].mxu0
        %2538 = vmatprep.mubr.f32.mxu0 %v2276
        %2539 = vmatmul.mubr.f32.gmra.mrb[0].mxu0 %v2274
        %v2540 = vpop.f32.mrb[0].mxu0
        %v2541 = vadd.f32 0.0, %v2540
        %v2542 = vpop.f32.mrb[0].mxu0
        %2543 = vmatprep.mubr.f32.mxu0 %v2277
        %2544 = vmatmul.mubr.f32.gmra.mrb[0].mxu0 %v2275
        %v2545 = vpop.f32.mrb[0].mxu0
        %v2546 = vadd.f32 0.0, %v2545
        %v2547 = vpop.f32.mrb[0].mxu0
        %2548 = vmatprep.mubr.f32.mxu0 %v2278
        %2549 = vmatmul.mubr.f32.gmra.mrb[0].mxu0 %v2276
        %v2550 = vpop.f32.mrb[0].mxu0
        %v2551 = vadd.f32 0.0, %v2550
        %v2552 = vpop.f32.mrb[0].mxu0
        %2553 = vdwg.mxu0
        %2554 = vmatprep.subr.mxu0 0.0
        %2555 = vmatpush1.msra.mxu0 %v2313
        %2556 = vmatprep.subr.mxu0 0.0
        %2557 = vmatpush1.msra.mxu0 %v2314
        %2558 = vmatprep.subr.mxu0 0.0
        %2559 = vmatpush1.msra.mxu0 %v2315
        %2560 = vmatprep.subr.mxu0 0.0
        %2561 = vmatpush1.msra.mxu0 %v2316
        %2562 = vmatprep.subr.mxu0 0.0
        %2563 = vmatpush1.msra.mxu0 %v2317
        %2564 = vmatprep.subr.mxu0 0.0
        %2565 = vmatpush1.msra.mxu0 %v2318
        %2566 = vmatprep.subr.mxu0 0.0
        %2567 = vmatpush1.msra.mxu0 %v2319
        %2568 = vmatprep.subr.mxu0 0.0
        %2569 = vmatpush1.msra.mxu0 %v2320
        %2570 = vmatprep.subr.mxu0 0.0
        %2571 = vmatpush1.msra.mxu0 %v2321
        %2572 = vmatprep.subr.mxu0 0.0
        %2573 = vmatpush1.msra.mxu0 %v2322
        %2574 = vmatprep.subr.mxu0 0.0
        %2575 = vmatpush1.msra.mxu0 %v2323
        %2576 = vmatprep.subr.mxu0 0.0
        %2577 = vmatpush1.msra.mxu0 %v2324
        %2578 = vmatprep.subr.mxu0 0.0
        %2579 = vmatpush1.msra.mxu0 %v2325
        %2580 = vmatprep.subr.mxu0 0.0
        %2581 = vmatpush1.msra.mxu0 %v2326
        %2582 = vmatprep.subr.mxu0 0.0
        %2583 = vmatpush1.msra.mxu0 %v2327
        %2584 = vmatprep.subr.mxu0 0.0
        %2585 = vmatpush1.msra.mxu0 %v2328
        %2586 = vmatprep.subr.mxu0 0.0
        %2587 = vmatpush1.msra.mxu0 0.0
        %2588 = vmatprep.subr.mxu0 0.0
        %2589 = vmatpush1.msra.mxu0 0.0
        %2590 = vmatprep.subr.mxu0 0.0
        %2591 = vmatpush1.msra.mxu0 0.0
        %2592 = vmatprep.subr.mxu0 0.0
        %2593 = vmatpush1.msra.mxu0 0.0
        %2594 = vmatprep.subr.mxu0 0.0
        %2595 = vmatpush1.msra.mxu0 0.0
        %2596 = vmatprep.subr.mxu0 0.0
        %2597 = vmatpush1.msra.mxu0 0.0
        %2598 = vmatprep.subr.mxu0 0.0
        %2599 = vmatpush1.msra.mxu0 0.0
        %2600 = vmatprep.subr.mxu0 0.0
        %2601 = vmatpush1.msra.mxu0 0.0
        %2602 = vmatprep.subr.mxu0 0.0
        %2603 = vmatpush1.msra.mxu0 0.0
        %2604 = vmatprep.subr.mxu0 0.0
        %2605 = vmatpush1.msra.mxu0 0.0
        %2606 = vmatprep.subr.mxu0 0.0
        %2607 = vmatpush1.msra.mxu0 0.0
        %2608 = vmatprep.subr.mxu0 0.0
        %2609 = vmatpush1.msra.mxu0 0.0
        %2610 = vmatprep.subr.mxu0 0.0
        %2611 = vmatpush1.msra.mxu0 0.0
        %2612 = vmatprep.subr.mxu0 0.0
        %2613 = vmatpush1.msra.mxu0 0.0
        %2614 = vmatprep.subr.mxu0 0.0
        %2615 = vmatpush1.msra.mxu0 0.0
        %2616 = vmatprep.subr.mxu0 0.0
        %2617 = vmatpush1.msra.mxu0 0.0
        %2618 = vmatprep.mubr.f32.mxu0 0.0
        %2619 = vmatmul.mubr.f32.gmra.mrb[0].mxu0 %v2249
        %v2620 = vpop.f32.mrb[0].mxu0
        %v2621 = vadd.f32 %v2396, %v2620
        %v2622 = vpop.f32.mrb[0].mxu0
        %2623 = vmatprep.mubr.f32.mxu0 0.0
        %2624 = vmatmul.mubr.f32.gmra.mrb[0].mxu0 %v2250
        %v2625 = vpop.f32.mrb[0].mxu0
        %v2626 = vadd.f32 %v2401, %v2625
        %v2627 = vpop.f32.mrb[0].mxu0
        %2628 = vmatprep.mubr.f32.mxu0 0.0
        %2629 = vmatmul.mubr.f32.gmra.mrb[0].mxu0 %v2251
        %v2630 = vpop.f32.mrb[0].mxu0
        %v2631 = vadd.f32 %v2406, %v2630
        %v2632 = vpop.f32.mrb[0].mxu0
        %2633 = vmatprep.mubr.f32.mxu0 0.0
        %2634 = vmatmul.mubr.f32.gmra.mrb[0].mxu0 %v2252
        %v2635 = vpop.f32.mrb[0].mxu0
        %v2636 = vadd.f32 %v2411, %v2635
        %v2637 = vpop.f32.mrb[0].mxu0
        %2638 = vmatprep.mubr.f32.mxu0 0.0
        %2639 = vmatmul.mubr.f32.gmra.mrb[0].mxu0 %v2253
        %v2640 = vpop.f32.mrb[0].mxu0
        %v2641 = vadd.f32 %v2416, %v2640
        %v2642 = vpop.f32.mrb[0].mxu0
        %2643 = vmatprep.mubr.f32.mxu0 0.0
        %2644 = vmatmul.mubr.f32.gmra.mrb[0].mxu0 %v2254
        %v2645 = vpop.f32.mrb[0].mxu0
        %v2646 = vadd.f32 %v2421, %v2645
        %v2647 = vpop.f32.mrb[0].mxu0
        %2648 = vmatprep.mubr.f32.mxu0 0.0
        %2649 = vmatmul.mubr.f32.gmra.mrb[0].mxu0 %v2255
        %v2650 = vpop.f32.mrb[0].mxu0
        %v2651 = vadd.f32 %v2426, %v2650
        %v2652 = vpop.f32.mrb[0].mxu0
        %2653 = vmatprep.mubr.f32.mxu0 0.0
        %2654 = vmatmul.mubr.f32.gmra.mrb[0].mxu0 %v2256
        %v2655 = vpop.f32.mrb[0].mxu0
        %v2656 = vadd.f32 %v2431, %v2655
        %v2657 = vpop.f32.mrb[0].mxu0
        %2658 = vmatprep.mubr.f32.mxu0 0.0
        %2659 = vmatmul.mubr.f32.gmra.mrb[0].mxu0 %v2257
        %v2660 = vpop.f32.mrb[0].mxu0
        %v2661 = vadd.f32 %v2436, %v2660
        %v2662 = vpop.f32.mrb[0].mxu0
        %2663 = vmatprep.mubr.f32.mxu0 0.0
        %2664 = vmatmul.mubr.f32.gmra.mrb[0].mxu0 %v2258
        %v2665 = vpop.f32.mrb[0].mxu0
        %v2666 = vadd.f32 %v2441, %v2665
        %v2667 = vpop.f32.mrb[0].mxu0
        %2668 = vmatprep.mubr.f32.mxu0 0.0
        %2669 = vmatmul.mubr.f32.gmra.mrb[0].mxu0 %v2259
        %v2670 = vpop.f32.mrb[0].mxu0
        %v2671 = vadd.f32 %v2446, %v2670
        %v2672 = vpop.f32.mrb[0].mxu0
        %2673 = vmatprep.mubr.f32.mxu0 0.0
        %2674 = vmatmul.mubr.f32.gmra.mrb[0].mxu0 %v2260
        %v2675 = vpop.f32.mrb[0].mxu0
        %v2676 = vadd.f32 %v2451, %v2675
        %v2677 = vpop.f32.mrb[0].mxu0
        %2678 = vmatprep.mubr.f32.mxu0 0.0
        %2679 = vmatmul.mubr.f32.gmra.mrb[0].mxu0 %v2261
        %v2680 = vpop.f32.mrb[0].mxu0
        %v2681 = vadd.f32 %v2456, %v2680
        %v2682 = vpop.f32.mrb[0].mxu0
        %2683 = vmatprep.mubr.f32.mxu0 0.0
        %2684 = vmatmul.mubr.f32.gmra.mrb[0].mxu0 %v2262
        %v2685 = vpop.f32.mrb[0].mxu0
        %v2686 = vadd.f32 %v2461, %v2685
        %v2687 = vpop.f32.mrb[0].mxu0
        %2688 = vmatprep.mubr.f32.mxu0 0.0
        %2689 = vmatmul.mubr.f32.gmra.mrb[0].mxu0 %v2263
        %v2690 = vpop.f32.mrb[0].mxu0
        %v2691 = vadd.f32 %v2466, %v2690
        %v2692 = vpop.f32.mrb[0].mxu0
        %2693 = vmatprep.mubr.f32.mxu0 0.0
        %2694 = vmatmul.mubr.f32.gmra.mrb[0].mxu0 %v2264
        %v2695 = vpop.f32.mrb[0].mxu0
        %v2696 = vadd.f32 %v2471, %v2695
        %v2697 = vpop.f32.mrb[0].mxu0
        %2698 = vmatprep.mubr.f32.mxu0 0.0
        %2699 = vmatmul.mubr.f32.gmra.mrb[0].mxu0 %v2265
        %v2700 = vpop.f32.mrb[0].mxu0
        %v2701 = vadd.f32 %v2476, %v2700
        %v2702 = vpop.f32.mrb[0].mxu0
        %2703 = vmatprep.mubr.f32.mxu0 0.0
        %2704 = vmatmul.mubr.f32.gmra.mrb[0].mxu0 %v2266
        %v2705 = vpop.f32.mrb[0].mxu0
        %v2706 = vadd.f32 %v2481, %v2705
        %v2707 = vpop.f32.mrb[0].mxu0
        %2708 = vmatprep.mubr.f32.mxu0 0.0
        %2709 = vmatmul.mubr.f32.gmra.mrb[0].mxu0 %v2267
        %v2710 = vpop.f32.mrb[0].mxu0
        %v2711 = vadd.f32 %v2486, %v2710
        %v2712 = vpop.f32.mrb[0].mxu0
        %2713 = vmatprep.mubr.f32.mxu0 0.0
        %2714 = vmatmul.mubr.f32.gmra.mrb[0].mxu0 %v2268
        %v2715 = vpop.f32.mrb[0].mxu0
        %v2716 = vadd.f32 %v2491, %v2715
        %v2717 = vpop.f32.mrb[0].mxu0
        %2718 = vmatprep.mubr.f32.mxu0 0.0
        %2719 = vmatmul.mubr.f32.gmra.mrb[0].mxu0 %v2269
        %v2720 = vpop.f32.mrb[0].mxu0
        %v2721 = vadd.f32 %v2496, %v2720
        %v2722 = vpop.f32.mrb[0].mxu0
        %2723 = vmatprep.mubr.f32.mxu0 0.0
        %2724 = vmatmul.mubr.f32.gmra.mrb[0].mxu0 %v2270
        %v2725 = vpop.f32.mrb[0].mxu0
        %v2726 = vadd.f32 %v2501, %v2725
        %v2727 = vpop.f32.mrb[0].mxu0
        %2728 = vmatprep.mubr.f32.mxu0 0.0
        %2729 = vmatmul.mubr.f32.gmra.mrb[0].mxu0 %v2271
        %v2730 = vpop.f32.mrb[0].mxu0
        %v2731 = vadd.f32 %v2506, %v2730
        %v2732 = vpop.f32.mrb[0].mxu0
        %2733 = vmatprep.mubr.f32.mxu0 0.0
        %2734 = vmatmul.mubr.f32.gmra.mrb[0].mxu0 %v2272
        %v2735 = vpop.f32.mrb[0].mxu0
        %v2736 = vadd.f32 %v2511, %v2735
        %v2737 = vpop.f32.mrb[0].mxu0
        %2738 = vmatprep.mubr.f32.mxu0 0.0
        %2739 = vmatmul.mubr.f32.gmra.mrb[0].mxu0 %v2273
        %v2740 = vpop.f32.mrb[0].mxu0
        %v2741 = vadd.f32 %v2516, %v2740
        %v2742 = vpop.f32.mrb[0].mxu0
        %2743 = vmatprep.mubr.f32.mxu0 0.0
        %2744 = vmatmul.mubr.f32.gmra.mrb[0].mxu0 %v2274
        %v2745 = vpop.f32.mrb[0].mxu0
        %v2746 = vadd.f32 %v2521, %v2745
        %v2747 = vpop.f32.mrb[0].mxu0
        %2748 = vmatprep.mubr.f32.mxu0 0.0
        %2749 = vmatmul.mubr.f32.gmra.mrb[0].mxu0 %v2275
        %v2750 = vpop.f32.mrb[0].mxu0
        %v2751 = vadd.f32 %v2526, %v2750
        %v2752 = vpop.f32.mrb[0].mxu0
        %2753 = vmatprep.mubr.f32.mxu0 0.0
        %2754 = vmatmul.mubr.f32.gmra.mrb[0].mxu0 %v2276
        %v2755 = vpop.f32.mrb[0].mxu0
        %v2756 = vadd.f32 %v2531, %v2755
        %v2757 = vpop.f32.mrb[0].mxu0
        %2758 = vmatprep.mubr.f32.mxu0 0.0
        %2759 = vmatmul.mubr.f32.gmra.mrb[0].mxu0 %v2277
        %v2760 = vpop.f32.mrb[0].mxu0
        %v2761 = vadd.f32 %v2536, %v2760
        %v2762 = vpop.f32.mrb[0].mxu0
        %2763 = vmatprep.mubr.f32.mxu0 0.0
        %2764 = vmatmul.mubr.f32.gmra.mrb[0].mxu0 %v2278
        %v2765 = vpop.f32.mrb[0].mxu0
        %v2766 = vadd.f32 %v2541, %v2765
        %v2767 = vpop.f32.mrb[0].mxu0
        %2768 = vmatprep.mubr.f32.mxu0 0.0
        %2769 = vmatmul.mubr.f32.gmra.mrb[0].mxu0 %v2279
        %v2770 = vpop.f32.mrb[0].mxu0
        %v2771 = vadd.f32 %v2546, %v2770
        %v2772 = vpop.f32.mrb[0].mxu0
        %2773 = vmatprep.mubr.f32.mxu0 0.0
        %2774 = vmatmul.mubr.f32.gmra.mrb[0].mxu0 %v2280
        %v2775 = vpop.f32.mrb[0].mxu0
        %v2776 = vadd.f32 %v2551, %v2775
        %v2777 = vpop.f32.mrb[0].mxu0
        %2778 = vdwg.mxu0
        %2779 = vst [vmem:[#allocation2] sm:$0xff] %v2621
        %2780 = vst [vmem:[#allocation2 + $0x8] sm:$0xff] %v2626
        %2781 = vst [vmem:[#allocation2 + $0x10] sm:$0xff] %v2631
        %2782 = vst [vmem:[#allocation2 + $0x18] sm:$0xff] %v2636
        %2783 = vst [vmem:[#allocation2 + $0x20] sm:$0xff] %v2641
        %2784 = vst [vmem:[#allocation2 + $0x28] sm:$0xff] %v2646
        %2785 = vst [vmem:[#allocation2 + $0x30] sm:$0xff] %v2651
        %2786 = vst [vmem:[#allocation2 + $0x38] sm:$0xff] %v2656
        %2787 = vst [vmem:[#allocation2 + $0x40] sm:$0xff] %v2661
        %2788 = vst [vmem:[#allocation2 + $0x48] sm:$0xff] %v2666
        %2789 = vst [vmem:[#allocation2 + $0x50] sm:$0xff] %v2671
        %2790 = vst [vmem:[#allocation2 + $0x58] sm:$0xff] %v2676
        %2791 = vst [vmem:[#allocation2 + $0x60] sm:$0xff] %v2681
        %2792 = vst [vmem:[#allocation2 + $0x68] sm:$0xff] %v2686
        %2793 = vst [vmem:[#allocation2 + $0x70] sm:$0xff] %v2691
        %2794 = vst [vmem:[#allocation2 + $0x78] sm:$0xff] %v2696
        %2795 = vst [vmem:[#allocation2 + $0x80] sm:$0xff] %v2701
        %2796 = vst [vmem:[#allocation2 + $0x88] sm:$0xff] %v2706
        %2797 = vst [vmem:[#allocation2 + $0x90] sm:$0xff] %v2711
        %2798 = vst [vmem:[#allocation2 + $0x98] sm:$0xff] %v2716
        %2799 = vst [vmem:[#allocation2 + $0xa0] sm:$0xff] %v2721
        %2800 = vst [vmem:[#allocation2 + $0xa8] sm:$0xff] %v2726
        %2801 = vst [vmem:[#allocation2 + $0xb0] sm:$0xff] %v2731
        %2802 = vst [vmem:[#allocation2 + $0xb8] sm:$0xff] %v2736
        %2803 = vst [vmem:[#allocation2 + $0xc0] sm:$0xff] %v2741
        %2804 = vst [vmem:[#allocation2 + $0xc8] sm:$0xff] %v2746
        %2805 = vst [vmem:[#allocation2 + $0xd0] sm:$0xff] %v2751
        %2806 = vst [vmem:[#allocation2 + $0xd8] sm:$0xff] %v2756
        %2807 = vst [vmem:[#allocation2 + $0xe0] sm:$0xff] %v2761
        %2808 = vst [vmem:[#allocation2 + $0xe8] sm:$0xff] %v2766
        %2809 = vst [vmem:[#allocation2 + $0xf0] sm:$0xff] %v2771
        %2810 = vst [vmem:[#allocation2 + $0xf8] sm:$0xff] %v2776
        %v2811 = vld [vmem:[#allocation3 + $0x1] sm:$0xff]
        %v2812 = vld [vmem:[#allocation3 + $0x9] sm:$0xff]
        %v2813 = vld [vmem:[#allocation3 + $0x19] sm:$0xff]
        %v2814 = vld [vmem:[#allocation3 + $0x21] sm:$0xff]
        %v2815 = vld [vmem:[#allocation3 + $0x31] sm:$0xff]
        %v2816 = vld [vmem:[#allocation3 + $0x39] sm:$0xff]
        %v2817 = vld [vmem:[#allocation3 + $0x49] sm:$0xff]
        %v2818 = vld [vmem:[#allocation3 + $0x51] sm:$0xff]
        %v2819 = vld [vmem:[#allocation3 + $0x61] sm:$0xff]
        %v2820 = vld [vmem:[#allocation3 + $0x69] sm:$0xff]
        %v2821 = vld [vmem:[#allocation3 + $0x79] sm:$0xff]
        %v2822 = vld [vmem:[#allocation3 + $0x81] sm:$0xff]
        %v2823 = vld [vmem:[#allocation3 + $0x91] sm:$0xff]
        %v2824 = vld [vmem:[#allocation3 + $0x99] sm:$0xff]
        %v2825 = vld [vmem:[#allocation3 + $0xa9] sm:$0xff]
        %v2826 = vld [vmem:[#allocation3 + $0xb1] sm:$0xff]
        %v2827 = vld [vmem:[#allocation3 + $0xc1] sm:$0xff]
        %v2828 = vld [vmem:[#allocation3 + $0xc9] sm:$0xff]
        %v2829 = vld [vmem:[#allocation3 + $0xd9] sm:$0xff]
        %v2830 = vld [vmem:[#allocation3 + $0xe1] sm:$0xff]
        %v2831 = vld [vmem:[#allocation3 + $0xf1] sm:$0xff]
        %v2832 = vld [vmem:[#allocation3 + $0xf9] sm:$0xff]
        %v2833 = vld [vmem:[#allocation3 + $0x109] sm:$0xff]
        %v2834 = vld [vmem:[#allocation3 + $0x111] sm:$0xff]
        %v2835 = vld [vmem:[#allocation3 + $0x121] sm:$0xff]
        %v2836 = vld [vmem:[#allocation3 + $0x129] sm:$0xff]
        %v2837 = vld [vmem:[#allocation3 + $0x139] sm:$0xff]
        %v2838 = vld [vmem:[#allocation3 + $0x141] sm:$0xff]
        %v2839 = vld [vmem:[#allocation3 + $0x151] sm:$0xff]
        %v2840 = vld [vmem:[#allocation3 + $0x159] sm:$0xff]
        %v2841 = vld [vmem:[#allocation3 + $0x169] sm:$0xff]
        %v2842 = vld [vmem:[#allocation3 + $0x171] sm:$0xff]
        %v2843 = vld [vmem:[#allocation3 + $0x181] sm:$0xff]
        %v2844 = vld [vmem:[#allocation3 + $0x189] sm:$0xff]
        %v2845 = vld [vmem:[#allocation3 + $0x199] sm:$0xff]
        %v2846 = vld [vmem:[#allocation3 + $0x1a1] sm:$0xff]
        %s2847 = scalar_lea.vmem [#allocation4], 384
        %v2848 = vld [vmem:[%s2847] sm:$0xff]
        %v2849 = vld [vmem:[%s2847 + $0x8] sm:$0xff]
        %v2850 = vld [vmem:[%s2847 + $0x10] sm:$0xff]
        %v2851 = vld [vmem:[%s2847 + $0x18] sm:$0xff]
        %v2852 = vld [vmem:[%s2847 + $0x20] sm:$0xff]
        %v2853 = vld [vmem:[%s2847 + $0x28] sm:$0xff]
        %v2854 = vld [vmem:[%s2847 + $0x30] sm:$0xff]
        %v2855 = vld [vmem:[%s2847 + $0x38] sm:$0xff]
        %v2856 = vld [vmem:[%s2847 + $0x40] sm:$0xff]
        %v2857 = vld [vmem:[%s2847 + $0x48] sm:$0xff]
        %v2858 = vld [vmem:[%s2847 + $0x50] sm:$0xff]
        %v2859 = vld [vmem:[%s2847 + $0x58] sm:$0xff]
        %v2860 = vld [vmem:[%s2847 + $0x60] sm:$0xff]
        %v2861 = vld [vmem:[%s2847 + $0x68] sm:$0xff]
        %v2862 = vld [vmem:[%s2847 + $0x70] sm:$0xff]
        %v2863 = vld [vmem:[%s2847 + $0x78] sm:$0xff]
        %v2864 = vld [vmem:[%s2847 + $0x80] sm:$0xff]
        %v2865 = vld [vmem:[%s2847 + $0x88] sm:$0xff]
        %v2866 = vld [vmem:[%s2847 + $0x90] sm:$0xff]
        %v2867 = vld [vmem:[%s2847 + $0x98] sm:$0xff]
        %v2868 = vld [vmem:[%s2847 + $0xa0] sm:$0xff]
        %v2869 = vld [vmem:[%s2847 + $0xa8] sm:$0xff]
        %v2870 = vld [vmem:[%s2847 + $0xb0] sm:$0xff]
        %v2871 = vld [vmem:[%s2847 + $0xb8] sm:$0xff]
        %v2872 = vld [vmem:[%s2847 + $0xc0] sm:$0xff]
        %v2873 = vld [vmem:[%s2847 + $0xc8] sm:$0xff]
        %v2874 = vld [vmem:[%s2847 + $0xd0] sm:$0xff]
        %v2875 = vld [vmem:[%s2847 + $0xd8] sm:$0xff]
        %v2876 = vld [vmem:[%s2847 + $0xe0] sm:$0xff]
        %v2877 = vld [vmem:[%s2847 + $0xe8] sm:$0xff]
        %v2878 = vld [vmem:[%s2847 + $0xf0] sm:$0xff]
        %v2879 = vld [vmem:[%s2847 + $0xf8] sm:$0xff]
        %v2880 = vld [vmem:[%s2847 + $0x100] sm:$0xff]
        %v2881 = vld [vmem:[%s2847 + $0x108] sm:$0xff]
        %v2882 = vld [vmem:[%s2847 + $0x110] sm:$0xff]
        %v2883 = vld [vmem:[%s2847 + $0x118] sm:$0xff]
        %v2884 = vld [vmem:[%s2847 + $0x120] sm:$0xff]
        %v2885 = vld [vmem:[%s2847 + $0x128] sm:$0xff]
        %v2886 = vld [vmem:[%s2847 + $0x130] sm:$0xff]
        %v2887 = vld [vmem:[%s2847 + $0x138] sm:$0xff]
        %v2888 = vld [vmem:[%s2847 + $0x140] sm:$0xff]
        %v2889 = vld [vmem:[%s2847 + $0x148] sm:$0xff]
        %v2890 = vld [vmem:[%s2847 + $0x150] sm:$0xff]
        %v2891 = vld [vmem:[%s2847 + $0x158] sm:$0xff]
        %v2892 = vld [vmem:[%s2847 + $0x160] sm:$0xff]
        %v2893 = vld [vmem:[%s2847 + $0x168] sm:$0xff]
        %v2894 = vld [vmem:[%s2847 + $0x170] sm:$0xff]
        %v2895 = vld [vmem:[%s2847 + $0x178] sm:$0xff]
        %2896 = vmatprep.subr.mxu0 0.0
        %2897 = vmatpush1.msra.mxu0 %v2848
        %2898 = vmatprep.subr.mxu0 0.0
        %2899 = vmatpush1.msra.mxu0 %v2849
        %2900 = vmatprep.subr.mxu0 0.0
        %2901 = vmatpush1.msra.mxu0 %v2850
        %2902 = vmatprep.subr.mxu0 0.0
        %2903 = vmatpush1.msra.mxu0 %v2851
        %2904 = vmatprep.subr.mxu0 0.0
        %2905 = vmatpush1.msra.mxu0 %v2852
        %2906 = vmatprep.subr.mxu0 0.0
        %2907 = vmatpush1.msra.mxu0 %v2853
        %2908 = vmatprep.subr.mxu0 0.0
        %2909 = vmatpush1.msra.mxu0 %v2854
        %2910 = vmatprep.subr.mxu0 0.0
        %2911 = vmatpush1.msra.mxu0 %v2855
        %2912 = vmatprep.subr.mxu0 0.0
        %2913 = vmatpush1.msra.mxu0 %v2856
        %2914 = vmatprep.subr.mxu0 0.0
        %2915 = vmatpush1.msra.mxu0 %v2857
        %2916 = vmatprep.subr.mxu0 0.0
        %2917 = vmatpush1.msra.mxu0 %v2858
        %2918 = vmatprep.subr.mxu0 0.0
        %2919 = vmatpush1.msra.mxu0 %v2859
        %2920 = vmatprep.subr.mxu0 0.0
        %2921 = vmatpush1.msra.mxu0 %v2860
        %2922 = vmatprep.subr.mxu0 0.0
        %2923 = vmatpush1.msra.mxu0 %v2861
        %2924 = vmatprep.subr.mxu0 0.0
        %2925 = vmatpush1.msra.mxu0 %v2862
        %2926 = vmatprep.subr.mxu0 0.0
        %2927 = vmatpush1.msra.mxu0 %v2863
        %2928 = vmatprep.subr.mxu0 0.0
        %2929 = vmatpush1.msra.mxu0 %v2864
        %2930 = vmatprep.subr.mxu0 0.0
        %2931 = vmatpush1.msra.mxu0 %v2865
        %2932 = vmatprep.subr.mxu0 0.0
        %2933 = vmatpush1.msra.mxu0 %v2866
        %2934 = vmatprep.subr.mxu0 0.0
        %2935 = vmatpush1.msra.mxu0 %v2867
        %2936 = vmatprep.subr.mxu0 0.0
        %2937 = vmatpush1.msra.mxu0 %v2868
        %2938 = vmatprep.subr.mxu0 0.0
        %2939 = vmatpush1.msra.mxu0 %v2869
        %2940 = vmatprep.subr.mxu0 0.0
        %2941 = vmatpush1.msra.mxu0 %v2870
        %2942 = vmatprep.subr.mxu0 0.0
        %2943 = vmatpush1.msra.mxu0 %v2871
        %2944 = vmatprep.subr.mxu0 0.0
        %2945 = vmatpush1.msra.mxu0 %v2872
        %2946 = vmatprep.subr.mxu0 0.0
        %2947 = vmatpush1.msra.mxu0 %v2873
        %2948 = vmatprep.subr.mxu0 0.0
        %2949 = vmatpush1.msra.mxu0 %v2874
        %2950 = vmatprep.subr.mxu0 0.0
        %2951 = vmatpush1.msra.mxu0 %v2875
        %2952 = vmatprep.subr.mxu0 0.0
        %2953 = vmatpush1.msra.mxu0 %v2876
        %2954 = vmatprep.subr.mxu0 0.0
        %2955 = vmatpush1.msra.mxu0 %v2877
        %2956 = vmatprep.subr.mxu0 0.0
        %2957 = vmatpush1.msra.mxu0 %v2878
        %2958 = vmatprep.subr.mxu0 0.0
        %2959 = vmatpush1.msra.mxu0 %v2879
        %2960 = vmatprep.mubr.f32.mxu0 %v2813
        %2961 = vmatmul.mubr.f32.gmra.mrb[0].mxu0 %v2811
        %v2962 = vpop.f32.mrb[0].mxu0
        %v2963 = vadd.f32 0.0, %v2962
        %v2964 = vpop.f32.mrb[0].mxu0
        %2965 = vmatprep.mubr.f32.mxu0 %v2814
        %2966 = vmatmul.mubr.f32.gmra.mrb[0].mxu0 %v2812
        %v2967 = vpop.f32.mrb[0].mxu0
        %v2968 = vadd.f32 0.0, %v2967
        %v2969 = vpop.f32.mrb[0].mxu0
        %2970 = vmatprep.mubr.f32.mxu0 %v2815
        %2971 = vmatmul.mubr.f32.gmra.mrb[0].mxu0 %v2813
        %v2972 = vpop.f32.mrb[0].mxu0
        %v2973 = vadd.f32 0.0, %v2972
        %v2974 = vpop.f32.mrb[0].mxu0
        %2975 = vmatprep.mubr.f32.mxu0 %v2816
        %2976 = vmatmul.mubr.f32.gmra.mrb[0].mxu0 %v2814
        %v2977 = vpop.f32.mrb[0].mxu0
        %v2978 = vadd.f32 0.0, %v2977
        %v2979 = vpop.f32.mrb[0].mxu0
        %2980 = vmatprep.mubr.f32.mxu0 %v2817
        %2981 = vmatmul.mubr.f32.gmra.mrb[0].mxu0 %v2815
        %v2982 = vpop.f32.mrb[0].mxu0
        %v2983 = vadd.f32 0.0, %v2982
        %v2984 = vpop.f32.mrb[0].mxu0
        %2985 = vmatprep.mubr.f32.mxu0 %v2818
        %2986 = vmatmul.mubr.f32.gmra.mrb[0].mxu0 %v2816
        %v2987 = vpop.f32.mrb[0].mxu0
        %v2988 = vadd.f32 0.0, %v2987
        %v2989 = vpop.f32.mrb[0].mxu0
        %2990 = vmatprep.mubr.f32.mxu0 %v2819
        %2991 = vmatmul.mubr.f32.gmra.mrb[0].mxu0 %v2817
        %v2992 = vpop.f32.mrb[0].mxu0
        %v2993 = vadd.f32 0.0, %v2992
        %v2994 = vpop.f32.mrb[0].mxu0
        %2995 = vmatprep.mubr.f32.mxu0 %v2820
        %2996 = vmatmul.mubr.f32.gmra.mrb[0].mxu0 %v2818
        %v2997 = vpop.f32.mrb[0].mxu0
        %v2998 = vadd.f32 0.0, %v2997
        %v2999 = vpop.f32.mrb[0].mxu0
        %3000 = vmatprep.mubr.f32.mxu0 %v2821
        %3001 = vmatmul.mubr.f32.gmra.mrb[0].mxu0 %v2819
        %v3002 = vpop.f32.mrb[0].mxu0
        %v3003 = vadd.f32 0.0, %v3002
        %v3004 = vpop.f32.mrb[0].mxu0
        %3005 = vmatprep.mubr.f32.mxu0 %v2822
        %3006 = vmatmul.mubr.f32.gmra.mrb[0].mxu0 %v2820
        %v3007 = vpop.f32.mrb[0].mxu0
        %v3008 = vadd.f32 0.0, %v3007
        %v3009 = vpop.f32.mrb[0].mxu0
        %3010 = vmatprep.mubr.f32.mxu0 %v2823
        %3011 = vmatmul.mubr.f32.gmra.mrb[0].mxu0 %v2821
        %v3012 = vpop.f32.mrb[0].mxu0
        %v3013 = vadd.f32 0.0, %v3012
        %v3014 = vpop.f32.mrb[0].mxu0
        %3015 = vmatprep.mubr.f32.mxu0 %v2824
        %3016 = vmatmul.mubr.f32.gmra.mrb[0].mxu0 %v2822
        %v3017 = vpop.f32.mrb[0].mxu0
        %v3018 = vadd.f32 0.0, %v3017
        %v3019 = vpop.f32.mrb[0].mxu0
        %3020 = vmatprep.mubr.f32.mxu0 %v2825
        %3021 = vmatmul.mubr.f32.gmra.mrb[0].mxu0 %v2823
        %v3022 = vpop.f32.mrb[0].mxu0
        %v3023 = vadd.f32 0.0, %v3022
        %v3024 = vpop.f32.mrb[0].mxu0
        %3025 = vmatprep.mubr.f32.mxu0 %v2826
        %3026 = vmatmul.mubr.f32.gmra.mrb[0].mxu0 %v2824
        %v3027 = vpop.f32.mrb[0].mxu0
        %v3028 = vadd.f32 0.0, %v3027
        %v3029 = vpop.f32.mrb[0].mxu0
        %3030 = vmatprep.mubr.f32.mxu0 %v2827
        %3031 = vmatmul.mubr.f32.gmra.mrb[0].mxu0 %v2825
        %v3032 = vpop.f32.mrb[0].mxu0
        %v3033 = vadd.f32 0.0, %v3032
        %v3034 = vpop.f32.mrb[0].mxu0
        %3035 = vmatprep.mubr.f32.mxu0 %v2828
        %3036 = vmatmul.mubr.f32.gmra.mrb[0].mxu0 %v2826
        %v3037 = vpop.f32.mrb[0].mxu0
        %v3038 = vadd.f32 0.0, %v3037
        %v3039 = vpop.f32.mrb[0].mxu0
        %3040 = vmatprep.mubr.f32.mxu0 %v2829
        %3041 = vmatmul.mubr.f32.gmra.mrb[0].mxu0 %v2827
        %v3042 = vpop.f32.mrb[0].mxu0
        %v3043 = vadd.f32 0.0, %v3042
        %v3044 = vpop.f32.mrb[0].mxu0
        %3045 = vmatprep.mubr.f32.mxu0 %v2830
        %3046 = vmatmul.mubr.f32.gmra.mrb[0].mxu0 %v2828
        %v3047 = vpop.f32.mrb[0].mxu0
        %v3048 = vadd.f32 0.0, %v3047
        %v3049 = vpop.f32.mrb[0].mxu0
        %3050 = vmatprep.mubr.f32.mxu0 %v2831
        %3051 = vmatmul.mubr.f32.gmra.mrb[0].mxu0 %v2829
        %v3052 = vpop.f32.mrb[0].mxu0
        %v3053 = vadd.f32 0.0, %v3052
        %v3054 = vpop.f32.mrb[0].mxu0
        %3055 = vmatprep.mubr.f32.mxu0 %v2832
        %3056 = vmatmul.mubr.f32.gmra.mrb[0].mxu0 %v2830
        %v3057 = vpop.f32.mrb[0].mxu0
        %v3058 = vadd.f32 0.0, %v3057
        %v3059 = vpop.f32.mrb[0].mxu0
        %3060 = vmatprep.mubr.f32.mxu0 %v2833
        %3061 = vmatmul.mubr.f32.gmra.mrb[0].mxu0 %v2831
        %v3062 = vpop.f32.mrb[0].mxu0
        %v3063 = vadd.f32 0.0, %v3062
        %v3064 = vpop.f32.mrb[0].mxu0
        %3065 = vmatprep.mubr.f32.mxu0 %v2834
        %3066 = vmatmul.mubr.f32.gmra.mrb[0].mxu0 %v2832
        %v3067 = vpop.f32.mrb[0].mxu0
        %v3068 = vadd.f32 0.0, %v3067
        %v3069 = vpop.f32.mrb[0].mxu0
        %3070 = vmatprep.mubr.f32.mxu0 %v2835
        %3071 = vmatmul.mubr.f32.gmra.mrb[0].mxu0 %v2833
        %v3072 = vpop.f32.mrb[0].mxu0
        %v3073 = vadd.f32 0.0, %v3072
        %v3074 = vpop.f32.mrb[0].mxu0
        %3075 = vmatprep.mubr.f32.mxu0 %v2836
        %3076 = vmatmul.mubr.f32.gmra.mrb[0].mxu0 %v2834
        %v3077 = vpop.f32.mrb[0].mxu0
        %v3078 = vadd.f32 0.0, %v3077
        %v3079 = vpop.f32.mrb[0].mxu0
        %3080 = vmatprep.mubr.f32.mxu0 %v2837
        %3081 = vmatmul.mubr.f32.gmra.mrb[0].mxu0 %v2835
        %v3082 = vpop.f32.mrb[0].mxu0
        %v3083 = vadd.f32 0.0, %v3082
        %v3084 = vpop.f32.mrb[0].mxu0
        %3085 = vmatprep.mubr.f32.mxu0 %v2838
        %3086 = vmatmul.mubr.f32.gmra.mrb[0].mxu0 %v2836
        %v3087 = vpop.f32.mrb[0].mxu0
        %v3088 = vadd.f32 0.0, %v3087
        %v3089 = vpop.f32.mrb[0].mxu0
        %3090 = vmatprep.mubr.f32.mxu0 %v2839
        %3091 = vmatmul.mubr.f32.gmra.mrb[0].mxu0 %v2837
        %v3092 = vpop.f32.mrb[0].mxu0
        %v3093 = vadd.f32 0.0, %v3092
        %v3094 = vpop.f32.mrb[0].mxu0
        %3095 = vmatprep.mubr.f32.mxu0 %v2840
        %3096 = vmatmul.mubr.f32.gmra.mrb[0].mxu0 %v2838
        %v3097 = vpop.f32.mrb[0].mxu0
        %v3098 = vadd.f32 0.0, %v3097
        %v3099 = vpop.f32.mrb[0].mxu0
        %3100 = vmatprep.mubr.f32.mxu0 %v2841
        %3101 = vmatmul.mubr.f32.gmra.mrb[0].mxu0 %v2839
        %v3102 = vpop.f32.mrb[0].mxu0
        %v3103 = vadd.f32 0.0, %v3102
        %v3104 = vpop.f32.mrb[0].mxu0
        %3105 = vmatprep.mubr.f32.mxu0 %v2842
        %3106 = vmatmul.mubr.f32.gmra.mrb[0].mxu0 %v2840
        %v3107 = vpop.f32.mrb[0].mxu0
        %v3108 = vadd.f32 0.0, %v3107
        %v3109 = vpop.f32.mrb[0].mxu0
        %3110 = vmatprep.mubr.f32.mxu0 %v2843
        %3111 = vmatmul.mubr.f32.gmra.mrb[0].mxu0 %v2841
        %v3112 = vpop.f32.mrb[0].mxu0
        %v3113 = vadd.f32 0.0, %v3112
        %v3114 = vpop.f32.mrb[0].mxu0
        %3115 = vmatprep.mubr.f32.mxu0 %v2844
        %3116 = vmatmul.mubr.f32.gmra.mrb[0].mxu0 %v2842
        %v3117 = vpop.f32.mrb[0].mxu0
        %v3118 = vadd.f32 0.0, %v3117
        %v3119 = vpop.f32.mrb[0].mxu0
        %3120 = vdwg.mxu0
        %3121 = vmatprep.subr.mxu0 0.0
        %3122 = vmatpush1.msra.mxu0 %v2880
        %3123 = vmatprep.subr.mxu0 0.0
        %3124 = vmatpush1.msra.mxu0 %v2881
        %3125 = vmatprep.subr.mxu0 0.0
        %3126 = vmatpush1.msra.mxu0 %v2882
        %3127 = vmatprep.subr.mxu0 0.0
        %3128 = vmatpush1.msra.mxu0 %v2883
        %3129 = vmatprep.subr.mxu0 0.0
        %3130 = vmatpush1.msra.mxu0 %v2884
        %3131 = vmatprep.subr.mxu0 0.0
        %3132 = vmatpush1.msra.mxu0 %v2885
        %3133 = vmatprep.subr.mxu0 0.0
        %3134 = vmatpush1.msra.mxu0 %v2886
        %3135 = vmatprep.subr.mxu0 0.0
        %3136 = vmatpush1.msra.mxu0 %v2887
        %3137 = vmatprep.subr.mxu0 0.0
        %3138 = vmatpush1.msra.mxu0 %v2888
        %3139 = vmatprep.subr.mxu0 0.0
        %3140 = vmatpush1.msra.mxu0 %v2889
        %3141 = vmatprep.subr.mxu0 0.0
        %3142 = vmatpush1.msra.mxu0 %v2890
        %3143 = vmatprep.subr.mxu0 0.0
        %3144 = vmatpush1.msra.mxu0 %v2891
        %3145 = vmatprep.subr.mxu0 0.0
        %3146 = vmatpush1.msra.mxu0 %v2892
        %3147 = vmatprep.subr.mxu0 0.0
        %3148 = vmatpush1.msra.mxu0 %v2893
        %3149 = vmatprep.subr.mxu0 0.0
        %3150 = vmatpush1.msra.mxu0 %v2894
        %3151 = vmatprep.subr.mxu0 0.0
        %3152 = vmatpush1.msra.mxu0 %v2895
        %3153 = vmatprep.subr.mxu0 0.0
        %3154 = vmatpush1.msra.mxu0 0.0
        %3155 = vmatprep.subr.mxu0 0.0
        %3156 = vmatpush1.msra.mxu0 0.0
        %3157 = vmatprep.subr.mxu0 0.0
        %3158 = vmatpush1.msra.mxu0 0.0
        %3159 = vmatprep.subr.mxu0 0.0
        %3160 = vmatpush1.msra.mxu0 0.0
        %3161 = vmatprep.subr.mxu0 0.0
        %3162 = vmatpush1.msra.mxu0 0.0
        %3163 = vmatprep.subr.mxu0 0.0
        %3164 = vmatpush1.msra.mxu0 0.0
        %3165 = vmatprep.subr.mxu0 0.0
        %3166 = vmatpush1.msra.mxu0 0.0
        %3167 = vmatprep.subr.mxu0 0.0
        %3168 = vmatpush1.msra.mxu0 0.0
        %3169 = vmatprep.subr.mxu0 0.0
        %3170 = vmatpush1.msra.mxu0 0.0
        %3171 = vmatprep.subr.mxu0 0.0
        %3172 = vmatpush1.msra.mxu0 0.0
        %3173 = vmatprep.subr.mxu0 0.0
        %3174 = vmatpush1.msra.mxu0 0.0
        %3175 = vmatprep.subr.mxu0 0.0
        %3176 = vmatpush1.msra.mxu0 0.0
        %3177 = vmatprep.subr.mxu0 0.0
        %3178 = vmatpush1.msra.mxu0 0.0
        %3179 = vmatprep.subr.mxu0 0.0
        %3180 = vmatpush1.msra.mxu0 0.0
        %3181 = vmatprep.subr.mxu0 0.0
        %3182 = vmatpush1.msra.mxu0 0.0
        %3183 = vmatprep.subr.mxu0 0.0
        %3184 = vmatpush1.msra.mxu0 0.0
        %3185 = vmatprep.mubr.f32.mxu0 0.0
        %3186 = vmatmul.mubr.f32.gmra.mrb[0].mxu0 %v2815
        %v3187 = vpop.f32.mrb[0].mxu0
        %v3188 = vadd.f32 %v2963, %v3187
        %v3189 = vpop.f32.mrb[0].mxu0
        %3190 = vmatprep.mubr.f32.mxu0 0.0
        %3191 = vmatmul.mubr.f32.gmra.mrb[0].mxu0 %v2816
        %v3192 = vpop.f32.mrb[0].mxu0
        %v3193 = vadd.f32 %v2968, %v3192
        %v3194 = vpop.f32.mrb[0].mxu0
        %3195 = vmatprep.mubr.f32.mxu0 0.0
        %3196 = vmatmul.mubr.f32.gmra.mrb[0].mxu0 %v2817
        %v3197 = vpop.f32.mrb[0].mxu0
        %v3198 = vadd.f32 %v2973, %v3197
        %v3199 = vpop.f32.mrb[0].mxu0
        %3200 = vmatprep.mubr.f32.mxu0 0.0
        %3201 = vmatmul.mubr.f32.gmra.mrb[0].mxu0 %v2818
        %v3202 = vpop.f32.mrb[0].mxu0
        %v3203 = vadd.f32 %v2978, %v3202
        %v3204 = vpop.f32.mrb[0].mxu0
        %3205 = vmatprep.mubr.f32.mxu0 0.0
        %3206 = vmatmul.mubr.f32.gmra.mrb[0].mxu0 %v2819
        %v3207 = vpop.f32.mrb[0].mxu0
        %v3208 = vadd.f32 %v2983, %v3207
        %v3209 = vpop.f32.mrb[0].mxu0
        %3210 = vmatprep.mubr.f32.mxu0 0.0
        %3211 = vmatmul.mubr.f32.gmra.mrb[0].mxu0 %v2820
        %v3212 = vpop.f32.mrb[0].mxu0
        %v3213 = vadd.f32 %v2988, %v3212
        %v3214 = vpop.f32.mrb[0].mxu0
        %3215 = vmatprep.mubr.f32.mxu0 0.0
        %3216 = vmatmul.mubr.f32.gmra.mrb[0].mxu0 %v2821
        %v3217 = vpop.f32.mrb[0].mxu0
        %v3218 = vadd.f32 %v2993, %v3217
        %v3219 = vpop.f32.mrb[0].mxu0
        %3220 = vmatprep.mubr.f32.mxu0 0.0
        %3221 = vmatmul.mubr.f32.gmra.mrb[0].mxu0 %v2822
        %v3222 = vpop.f32.mrb[0].mxu0
        %v3223 = vadd.f32 %v2998, %v3222
        %v3224 = vpop.f32.mrb[0].mxu0
        %3225 = vmatprep.mubr.f32.mxu0 0.0
        %3226 = vmatmul.mubr.f32.gmra.mrb[0].mxu0 %v2823
        %v3227 = vpop.f32.mrb[0].mxu0
        %v3228 = vadd.f32 %v3003, %v3227
        %v3229 = vpop.f32.mrb[0].mxu0
        %3230 = vmatprep.mubr.f32.mxu0 0.0
        %3231 = vmatmul.mubr.f32.gmra.mrb[0].mxu0 %v2824
        %v3232 = vpop.f32.mrb[0].mxu0
        %v3233 = vadd.f32 %v3008, %v3232
        %v3234 = vpop.f32.mrb[0].mxu0
        %3235 = vmatprep.mubr.f32.mxu0 0.0
        %3236 = vmatmul.mubr.f32.gmra.mrb[0].mxu0 %v2825
        %v3237 = vpop.f32.mrb[0].mxu0
        %v3238 = vadd.f32 %v3013, %v3237
        %v3239 = vpop.f32.mrb[0].mxu0
        %3240 = vmatprep.mubr.f32.mxu0 0.0
        %3241 = vmatmul.mubr.f32.gmra.mrb[0].mxu0 %v2826
        %v3242 = vpop.f32.mrb[0].mxu0
        %v3243 = vadd.f32 %v3018, %v3242
        %v3244 = vpop.f32.mrb[0].mxu0
        %3245 = vmatprep.mubr.f32.mxu0 0.0
        %3246 = vmatmul.mubr.f32.gmra.mrb[0].mxu0 %v2827
        %v3247 = vpop.f32.mrb[0].mxu0
        %v3248 = vadd.f32 %v3023, %v3247
        %v3249 = vpop.f32.mrb[0].mxu0
        %3250 = vmatprep.mubr.f32.mxu0 0.0
        %3251 = vmatmul.mubr.f32.gmra.mrb[0].mxu0 %v2828
        %v3252 = vpop.f32.mrb[0].mxu0
        %v3253 = vadd.f32 %v3028, %v3252
        %v3254 = vpop.f32.mrb[0].mxu0
        %3255 = vmatprep.mubr.f32.mxu0 0.0
        %3256 = vmatmul.mubr.f32.gmra.mrb[0].mxu0 %v2829
        %v3257 = vpop.f32.mrb[0].mxu0
        %v3258 = vadd.f32 %v3033, %v3257
        %v3259 = vpop.f32.mrb[0].mxu0
        %3260 = vmatprep.mubr.f32.mxu0 0.0
        %3261 = vmatmul.mubr.f32.gmra.mrb[0].mxu0 %v2830
        %v3262 = vpop.f32.mrb[0].mxu0
        %v3263 = vadd.f32 %v3038, %v3262
        %v3264 = vpop.f32.mrb[0].mxu0
        %3265 = vmatprep.mubr.f32.mxu0 0.0
        %3266 = vmatmul.mubr.f32.gmra.mrb[0].mxu0 %v2831
        %v3267 = vpop.f32.mrb[0].mxu0
        %v3268 = vadd.f32 %v3043, %v3267
        %v3269 = vpop.f32.mrb[0].mxu0
        %3270 = vmatprep.mubr.f32.mxu0 0.0
        %3271 = vmatmul.mubr.f32.gmra.mrb[0].mxu0 %v2832
        %v3272 = vpop.f32.mrb[0].mxu0
        %v3273 = vadd.f32 %v3048, %v3272
        %v3274 = vpop.f32.mrb[0].mxu0
        %3275 = vmatprep.mubr.f32.mxu0 0.0
        %3276 = vmatmul.mubr.f32.gmra.mrb[0].mxu0 %v2833
        %v3277 = vpop.f32.mrb[0].mxu0
        %v3278 = vadd.f32 %v3053, %v3277
        %v3279 = vpop.f32.mrb[0].mxu0
        %3280 = vmatprep.mubr.f32.mxu0 0.0
        %3281 = vmatmul.mubr.f32.gmra.mrb[0].mxu0 %v2834
        %v3282 = vpop.f32.mrb[0].mxu0
        %v3283 = vadd.f32 %v3058, %v3282
        %v3284 = vpop.f32.mrb[0].mxu0
        %3285 = vmatprep.mubr.f32.mxu0 0.0
        %3286 = vmatmul.mubr.f32.gmra.mrb[0].mxu0 %v2835
        %v3287 = vpop.f32.mrb[0].mxu0
        %v3288 = vadd.f32 %v3063, %v3287
        %v3289 = vpop.f32.mrb[0].mxu0
        %3290 = vmatprep.mubr.f32.mxu0 0.0
        %3291 = vmatmul.mubr.f32.gmra.mrb[0].mxu0 %v2836
        %v3292 = vpop.f32.mrb[0].mxu0
        %v3293 = vadd.f32 %v3068, %v3292
        %v3294 = vpop.f32.mrb[0].mxu0
        %3295 = vmatprep.mubr.f32.mxu0 0.0
        %3296 = vmatmul.mubr.f32.gmra.mrb[0].mxu0 %v2837
        %v3297 = vpop.f32.mrb[0].mxu0
        %v3298 = vadd.f32 %v3073, %v3297
        %v3299 = vpop.f32.mrb[0].mxu0
        %3300 = vmatprep.mubr.f32.mxu0 0.0
        %3301 = vmatmul.mubr.f32.gmra.mrb[0].mxu0 %v2838
        %v3302 = vpop.f32.mrb[0].mxu0
        %v3303 = vadd.f32 %v3078, %v3302
        %v3304 = vpop.f32.mrb[0].mxu0
        %3305 = vmatprep.mubr.f32.mxu0 0.0
        %3306 = vmatmul.mubr.f32.gmra.mrb[0].mxu0 %v2839
        %v3307 = vpop.f32.mrb[0].mxu0
        %v3308 = vadd.f32 %v3083, %v3307
        %v3309 = vpop.f32.mrb[0].mxu0
        %3310 = vmatprep.mubr.f32.mxu0 0.0
        %3311 = vmatmul.mubr.f32.gmra.mrb[0].mxu0 %v2840
        %v3312 = vpop.f32.mrb[0].mxu0
        %v3313 = vadd.f32 %v3088, %v3312
        %v3314 = vpop.f32.mrb[0].mxu0
        %3315 = vmatprep.mubr.f32.mxu0 0.0
        %3316 = vmatmul.mubr.f32.gmra.mrb[0].mxu0 %v2841
        %v3317 = vpop.f32.mrb[0].mxu0
        %v3318 = vadd.f32 %v3093, %v3317
        %v3319 = vpop.f32.mrb[0].mxu0
        %3320 = vmatprep.mubr.f32.mxu0 0.0
        %3321 = vmatmul.mubr.f32.gmra.mrb[0].mxu0 %v2842
        %v3322 = vpop.f32.mrb[0].mxu0
        %v3323 = vadd.f32 %v3098, %v3322
        %v3324 = vpop.f32.mrb[0].mxu0
        %3325 = vmatprep.mubr.f32.mxu0 0.0
        %3326 = vmatmul.mubr.f32.gmra.mrb[0].mxu0 %v2843
        %v3327 = vpop.f32.mrb[0].mxu0
        %v3328 = vadd.f32 %v3103, %v3327
        %v3329 = vpop.f32.mrb[0].mxu0
        %3330 = vmatprep.mubr.f32.mxu0 0.0
        %3331 = vmatmul.mubr.f32.gmra.mrb[0].mxu0 %v2844
        %v3332 = vpop.f32.mrb[0].mxu0
        %v3333 = vadd.f32 %v3108, %v3332
        %v3334 = vpop.f32.mrb[0].mxu0
        %3335 = vmatprep.mubr.f32.mxu0 0.0
        %3336 = vmatmul.mubr.f32.gmra.mrb[0].mxu0 %v2845
        %v3337 = vpop.f32.mrb[0].mxu0
        %v3338 = vadd.f32 %v3113, %v3337
        %v3339 = vpop.f32.mrb[0].mxu0
        %3340 = vmatprep.mubr.f32.mxu0 0.0
        %3341 = vmatmul.mubr.f32.gmra.mrb[0].mxu0 %v2846
        %v3342 = vpop.f32.mrb[0].mxu0
        %v3343 = vadd.f32 %v3118, %v3342
        %v3344 = vpop.f32.mrb[0].mxu0
        %3345 = vdwg.mxu0
        %v3346 = vld [vmem:[#allocation2] sm:$0xff]
        %v3347 = vld [vmem:[#allocation2 + $0x8] sm:$0xff]
        %v3348 = vld [vmem:[#allocation2 + $0x10] sm:$0xff]
        %v3349 = vld [vmem:[#allocation2 + $0x18] sm:$0xff]
        %v3350 = vld [vmem:[#allocation2 + $0x20] sm:$0xff]
        %v3351 = vld [vmem:[#allocation2 + $0x28] sm:$0xff]
        %v3352 = vld [vmem:[#allocation2 + $0x30] sm:$0xff]
        %v3353 = vld [vmem:[#allocation2 + $0x38] sm:$0xff]
        %v3354 = vld [vmem:[#allocation2 + $0x40] sm:$0xff]
        %v3355 = vld [vmem:[#allocation2 + $0x48] sm:$0xff]
        %v3356 = vld [vmem:[#allocation2 + $0x50] sm:$0xff]
        %v3357 = vld [vmem:[#allocation2 + $0x58] sm:$0xff]
        %v3358 = vld [vmem:[#allocation2 + $0x60] sm:$0xff]
        %v3359 = vld [vmem:[#allocation2 + $0x68] sm:$0xff]
        %v3360 = vld [vmem:[#allocation2 + $0x70] sm:$0xff]
        %v3361 = vld [vmem:[#allocation2 + $0x78] sm:$0xff]
        %v3362 = vld [vmem:[#allocation2 + $0x80] sm:$0xff]
        %v3363 = vld [vmem:[#allocation2 + $0x88] sm:$0xff]
        %v3364 = vld [vmem:[#allocation2 + $0x90] sm:$0xff]
        %v3365 = vld [vmem:[#allocation2 + $0x98] sm:$0xff]
        %v3366 = vld [vmem:[#allocation2 + $0xa0] sm:$0xff]
        %v3367 = vld [vmem:[#allocation2 + $0xa8] sm:$0xff]
        %v3368 = vld [vmem:[#allocation2 + $0xb0] sm:$0xff]
        %v3369 = vld [vmem:[#allocation2 + $0xb8] sm:$0xff]
        %v3370 = vld [vmem:[#allocation2 + $0xc0] sm:$0xff]
        %v3371 = vld [vmem:[#allocation2 + $0xc8] sm:$0xff]
        %v3372 = vld [vmem:[#allocation2 + $0xd0] sm:$0xff]
        %v3373 = vld [vmem:[#allocation2 + $0xd8] sm:$0xff]
        %v3374 = vld [vmem:[#allocation2 + $0xe0] sm:$0xff]
        %v3375 = vld [vmem:[#allocation2 + $0xe8] sm:$0xff]
        %v3376 = vld [vmem:[#allocation2 + $0xf0] sm:$0xff]
        %v3377 = vld [vmem:[#allocation2 + $0xf8] sm:$0xff]
        %v3378 = vadd.f32 %v3346, %v3188
        %v3379 = vadd.f32 %v3347, %v3193
        %v3380 = vadd.f32 %v3348, %v3198
        %v3381 = vadd.f32 %v3349, %v3203
        %v3382 = vadd.f32 %v3350, %v3208
        %v3383 = vadd.f32 %v3351, %v3213
        %v3384 = vadd.f32 %v3352, %v3218
        %v3385 = vadd.f32 %v3353, %v3223
        %v3386 = vadd.f32 %v3354, %v3228
        %v3387 = vadd.f32 %v3355, %v3233
        %v3388 = vadd.f32 %v3356, %v3238
        %v3389 = vadd.f32 %v3357, %v3243
        %v3390 = vadd.f32 %v3358, %v3248
        %v3391 = vadd.f32 %v3359, %v3253
        %v3392 = vadd.f32 %v3360, %v3258
        %v3393 = vadd.f32 %v3361, %v3263
        %v3394 = vadd.f32 %v3362, %v3268
        %v3395 = vadd.f32 %v3363, %v3273
        %v3396 = vadd.f32 %v3364, %v3278
        %v3397 = vadd.f32 %v3365, %v3283
        %v3398 = vadd.f32 %v3366, %v3288
        %v3399 = vadd.f32 %v3367, %v3293
        %v3400 = vadd.f32 %v3368, %v3298
        %v3401 = vadd.f32 %v3369, %v3303
        %v3402 = vadd.f32 %v3370, %v3308
        %v3403 = vadd.f32 %v3371, %v3313
        %v3404 = vadd.f32 %v3372, %v3318
        %v3405 = vadd.f32 %v3373, %v3323
        %v3406 = vadd.f32 %v3374, %v3328
        %v3407 = vadd.f32 %v3375, %v3333
        %v3408 = vadd.f32 %v3376, %v3338
        %v3409 = vadd.f32 %v3377, %v3343
        %3410 = vst [vmem:[#allocation2] sm:$0xff] %v3378
        %3411 = vst [vmem:[#allocation2 + $0x8] sm:$0xff] %v3379
        %3412 = vst [vmem:[#allocation2 + $0x10] sm:$0xff] %v3380
        %3413 = vst [vmem:[#allocation2 + $0x18] sm:$0xff] %v3381
        %3414 = vst [vmem:[#allocation2 + $0x20] sm:$0xff] %v3382
        %3415 = vst [vmem:[#allocation2 + $0x28] sm:$0xff] %v3383
        %3416 = vst [vmem:[#allocation2 + $0x30] sm:$0xff] %v3384
        %3417 = vst [vmem:[#allocation2 + $0x38] sm:$0xff] %v3385
        %3418 = vst [vmem:[#allocation2 + $0x40] sm:$0xff] %v3386
        %3419 = vst [vmem:[#allocation2 + $0x48] sm:$0xff] %v3387
        %3420 = vst [vmem:[#allocation2 + $0x50] sm:$0xff] %v3388
        %3421 = vst [vmem:[#allocation2 + $0x58] sm:$0xff] %v3389
        %3422 = vst [vmem:[#allocation2 + $0x60] sm:$0xff] %v3390
        %3423 = vst [vmem:[#allocation2 + $0x68] sm:$0xff] %v3391
        %3424 = vst [vmem:[#allocation2 + $0x70] sm:$0xff] %v3392
        %3425 = vst [vmem:[#allocation2 + $0x78] sm:$0xff] %v3393
        %3426 = vst [vmem:[#allocation2 + $0x80] sm:$0xff] %v3394
        %3427 = vst [vmem:[#allocation2 + $0x88] sm:$0xff] %v3395
        %3428 = vst [vmem:[#allocation2 + $0x90] sm:$0xff] %v3396
        %3429 = vst [vmem:[#allocation2 + $0x98] sm:$0xff] %v3397
        %3430 = vst [vmem:[#allocation2 + $0xa0] sm:$0xff] %v3398
        %3431 = vst [vmem:[#allocation2 + $0xa8] sm:$0xff] %v3399
        %3432 = vst [vmem:[#allocation2 + $0xb0] sm:$0xff] %v3400
        %3433 = vst [vmem:[#allocation2 + $0xb8] sm:$0xff] %v3401
        %3434 = vst [vmem:[#allocation2 + $0xc0] sm:$0xff] %v3402
        %3435 = vst [vmem:[#allocation2 + $0xc8] sm:$0xff] %v3403
        %3436 = vst [vmem:[#allocation2 + $0xd0] sm:$0xff] %v3404
        %3437 = vst [vmem:[#allocation2 + $0xd8] sm:$0xff] %v3405
        %3438 = vst [vmem:[#allocation2 + $0xe0] sm:$0xff] %v3406
        %3439 = vst [vmem:[#allocation2 + $0xe8] sm:$0xff] %v3407
        %3440 = vst [vmem:[#allocation2 + $0xf0] sm:$0xff] %v3408
        %3441 = vst [vmem:[#allocation2 + $0xf8] sm:$0xff] %v3409
        %v3442 = vld [vmem:[#allocation3 + $0x2] sm:$0xff]
        %v3443 = vld [vmem:[#allocation3 + $0xa] sm:$0xff]
        %v3444 = vld [vmem:[#allocation3 + $0x1a] sm:$0xff]
        %v3445 = vld [vmem:[#allocation3 + $0x22] sm:$0xff]
        %v3446 = vld [vmem:[#allocation3 + $0x32] sm:$0xff]
        %v3447 = vld [vmem:[#allocation3 + $0x3a] sm:$0xff]
        %v3448 = vld [vmem:[#allocation3 + $0x4a] sm:$0xff]
        %v3449 = vld [vmem:[#allocation3 + $0x52] sm:$0xff]
        %v3450 = vld [vmem:[#allocation3 + $0x62] sm:$0xff]
        %v3451 = vld [vmem:[#allocation3 + $0x6a] sm:$0xff]
        %v3452 = vld [vmem:[#allocation3 + $0x7a] sm:$0xff]
        %v3453 = vld [vmem:[#allocation3 + $0x82] sm:$0xff]
        %v3454 = vld [vmem:[#allocation3 + $0x92] sm:$0xff]
        %v3455 = vld [vmem:[#allocation3 + $0x9a] sm:$0xff]
        %v3456 = vld [vmem:[#allocation3 + $0xaa] sm:$0xff]
        %v3457 = vld [vmem:[#allocation3 + $0xb2] sm:$0xff]
        %v3458 = vld [vmem:[#allocation3 + $0xc2] sm:$0xff]
        %v3459 = vld [vmem:[#allocation3 + $0xca] sm:$0xff]
        %v3460 = vld [vmem:[#allocation3 + $0xda] sm:$0xff]
        %v3461 = vld [vmem:[#allocation3 + $0xe2] sm:$0xff]
        %v3462 = vld [vmem:[#allocation3 + $0xf2] sm:$0xff]
        %v3463 = vld [vmem:[#allocation3 + $0xfa] sm:$0xff]
        %v3464 = vld [vmem:[#allocation3 + $0x10a] sm:$0xff]
        %v3465 = vld [vmem:[#allocation3 + $0x112] sm:$0xff]
        %v3466 = vld [vmem:[#allocation3 + $0x122] sm:$0xff]
        %v3467 = vld [vmem:[#allocation3 + $0x12a] sm:$0xff]
        %v3468 = vld [vmem:[#allocation3 + $0x13a] sm:$0xff]
        %v3469 = vld [vmem:[#allocation3 + $0x142] sm:$0xff]
        %v3470 = vld [vmem:[#allocation3 + $0x152] sm:$0xff]
        %v3471 = vld [vmem:[#allocation3 + $0x15a] sm:$0xff]
        %v3472 = vld [vmem:[#allocation3 + $0x16a] sm:$0xff]
        %v3473 = vld [vmem:[#allocation3 + $0x172] sm:$0xff]
        %v3474 = vld [vmem:[#allocation3 + $0x182] sm:$0xff]
        %v3475 = vld [vmem:[#allocation3 + $0x18a] sm:$0xff]
        %v3476 = vld [vmem:[#allocation3 + $0x19a] sm:$0xff]
        %v3477 = vld [vmem:[#allocation3 + $0x1a2] sm:$0xff]
        %s3478 = scalar_lea.vmem [#allocation4], 768
        %v3479 = vld [vmem:[%s3478] sm:$0xff]
        %v3480 = vld [vmem:[%s3478 + $0x8] sm:$0xff]
        %v3481 = vld [vmem:[%s3478 + $0x10] sm:$0xff]
        %v3482 = vld [vmem:[%s3478 + $0x18] sm:$0xff]
        %v3483 = vld [vmem:[%s3478 + $0x20] sm:$0xff]
        %v3484 = vld [vmem:[%s3478 + $0x28] sm:$0xff]
        %v3485 = vld [vmem:[%s3478 + $0x30] sm:$0xff]
        %v3486 = vld [vmem:[%s3478 + $0x38] sm:$0xff]
        %v3487 = vld [vmem:[%s3478 + $0x40] sm:$0xff]
        %v3488 = vld [vmem:[%s3478 + $0x48] sm:$0xff]
        %v3489 = vld [vmem:[%s3478 + $0x50] sm:$0xff]
        %v3490 = vld [vmem:[%s3478 + $0x58] sm:$0xff]
        %v3491 = vld [vmem:[%s3478 + $0x60] sm:$0xff]
        %v3492 = vld [vmem:[%s3478 + $0x68] sm:$0xff]
        %v3493 = vld [vmem:[%s3478 + $0x70] sm:$0xff]
        %v3494 = vld [vmem:[%s3478 + $0x78] sm:$0xff]
        %v3495 = vld [vmem:[%s3478 + $0x80] sm:$0xff]
        %v3496 = vld [vmem:[%s3478 + $0x88] sm:$0xff]
        %v3497 = vld [vmem:[%s3478 + $0x90] sm:$0xff]
        %v3498 = vld [vmem:[%s3478 + $0x98] sm:$0xff]
        %v3499 = vld [vmem:[%s3478 + $0xa0] sm:$0xff]
        %v3500 = vld [vmem:[%s3478 + $0xa8] sm:$0xff]
        %v3501 = vld [vmem:[%s3478 + $0xb0] sm:$0xff]
        %v3502 = vld [vmem:[%s3478 + $0xb8] sm:$0xff]
        %v3503 = vld [vmem:[%s3478 + $0xc0] sm:$0xff]
        %v3504 = vld [vmem:[%s3478 + $0xc8] sm:$0xff]
        %v3505 = vld [vmem:[%s3478 + $0xd0] sm:$0xff]
        %v3506 = vld [vmem:[%s3478 + $0xd8] sm:$0xff]
        %v3507 = vld [vmem:[%s3478 + $0xe0] sm:$0xff]
        %v3508 = vld [vmem:[%s3478 + $0xe8] sm:$0xff]
        %v3509 = vld [vmem:[%s3478 + $0xf0] sm:$0xff]
        %v3510 = vld [vmem:[%s3478 + $0xf8] sm:$0xff]
        %v3511 = vld [vmem:[%s3478 + $0x100] sm:$0xff]
        %v3512 = vld [vmem:[%s3478 + $0x108] sm:$0xff]
        %v3513 = vld [vmem:[%s3478 + $0x110] sm:$0xff]
        %v3514 = vld [vmem:[%s3478 + $0x118] sm:$0xff]
        %v3515 = vld [vmem:[%s3478 + $0x120] sm:$0xff]
        %v3516 = vld [vmem:[%s3478 + $0x128] sm:$0xff]
        %v3517 = vld [vmem:[%s3478 + $0x130] sm:$0xff]
        %v3518 = vld [vmem:[%s3478 + $0x138] sm:$0xff]
        %v3519 = vld [vmem:[%s3478 + $0x140] sm:$0xff]
        %v3520 = vld [vmem:[%s3478 + $0x148] sm:$0xff]
        %v3521 = vld [vmem:[%s3478 + $0x150] sm:$0xff]
        %v3522 = vld [vmem:[%s3478 + $0x158] sm:$0xff]
        %v3523 = vld [vmem:[%s3478 + $0x160] sm:$0xff]
        %v3524 = vld [vmem:[%s3478 + $0x168] sm:$0xff]
        %v3525 = vld [vmem:[%s3478 + $0x170] sm:$0xff]
        %v3526 = vld [vmem:[%s3478 + $0x178] sm:$0xff]
        %3527 = vmatprep.subr.mxu0 0.0
        %3528 = vmatpush1.msra.mxu0 %v3479
        %3529 = vmatprep.subr.mxu0 0.0
        %3530 = vmatpush1.msra.mxu0 %v3480
        %3531 = vmatprep.subr.mxu0 0.0
        %3532 = vmatpush1.msra.mxu0 %v3481
        %3533 = vmatprep.subr.mxu0 0.0
        %3534 = vmatpush1.msra.mxu0 %v3482
        %3535 = vmatprep.subr.mxu0 0.0
        %3536 = vmatpush1.msra.mxu0 %v3483
        %3537 = vmatprep.subr.mxu0 0.0
        %3538 = vmatpush1.msra.mxu0 %v3484
        %3539 = vmatprep.subr.mxu0 0.0
        %3540 = vmatpush1.msra.mxu0 %v3485
        %3541 = vmatprep.subr.mxu0 0.0
        %3542 = vmatpush1.msra.mxu0 %v3486
        %3543 = vmatprep.subr.mxu0 0.0
        %3544 = vmatpush1.msra.mxu0 %v3487
        %3545 = vmatprep.subr.mxu0 0.0
        %3546 = vmatpush1.msra.mxu0 %v3488
        %3547 = vmatprep.subr.mxu0 0.0
        %3548 = vmatpush1.msra.mxu0 %v3489
        %3549 = vmatprep.subr.mxu0 0.0
        %3550 = vmatpush1.msra.mxu0 %v3490
        %3551 = vmatprep.subr.mxu0 0.0
        %3552 = vmatpush1.msra.mxu0 %v3491
        %3553 = vmatprep.subr.mxu0 0.0
        %3554 = vmatpush1.msra.mxu0 %v3492
        %3555 = vmatprep.subr.mxu0 0.0
        %3556 = vmatpush1.msra.mxu0 %v3493
        %3557 = vmatprep.subr.mxu0 0.0
        %3558 = vmatpush1.msra.mxu0 %v3494
        %3559 = vmatprep.subr.mxu0 0.0
        %3560 = vmatpush1.msra.mxu0 %v3495
        %3561 = vmatprep.subr.mxu0 0.0
        %3562 = vmatpush1.msra.mxu0 %v3496
        %3563 = vmatprep.subr.mxu0 0.0
        %3564 = vmatpush1.msra.mxu0 %v3497
        %3565 = vmatprep.subr.mxu0 0.0
        %3566 = vmatpush1.msra.mxu0 %v3498
        %3567 = vmatprep.subr.mxu0 0.0
        %3568 = vmatpush1.msra.mxu0 %v3499
        %3569 = vmatprep.subr.mxu0 0.0
        %3570 = vmatpush1.msra.mxu0 %v3500
        %3571 = vmatprep.subr.mxu0 0.0
        %3572 = vmatpush1.msra.mxu0 %v3501
        %3573 = vmatprep.subr.mxu0 0.0
        %3574 = vmatpush1.msra.mxu0 %v3502
        %3575 = vmatprep.subr.mxu0 0.0
        %3576 = vmatpush1.msra.mxu0 %v3503
        %3577 = vmatprep.subr.mxu0 0.0
        %3578 = vmatpush1.msra.mxu0 %v3504
        %3579 = vmatprep.subr.mxu0 0.0
        %3580 = vmatpush1.msra.mxu0 %v3505
        %3581 = vmatprep.subr.mxu0 0.0
        %3582 = vmatpush1.msra.mxu0 %v3506
        %3583 = vmatprep.subr.mxu0 0.0
        %3584 = vmatpush1.msra.mxu0 %v3507
        %3585 = vmatprep.subr.mxu0 0.0
        %3586 = vmatpush1.msra.mxu0 %v3508
        %3587 = vmatprep.subr.mxu0 0.0
        %3588 = vmatpush1.msra.mxu0 %v3509
        %3589 = vmatprep.subr.mxu0 0.0
        %3590 = vmatpush1.msra.mxu0 %v3510
        %3591 = vmatprep.mubr.f32.mxu0 %v3444
        %3592 = vmatmul.mubr.f32.gmra.mrb[0].mxu0 %v3442
        %v3593 = vpop.f32.mrb[0].mxu0
        %v3594 = vadd.f32 0.0, %v3593
        %v3595 = vpop.f32.mrb[0].mxu0
        %3596 = vmatprep.mubr.f32.mxu0 %v3445
        %3597 = vmatmul.mubr.f32.gmra.mrb[0].mxu0 %v3443
        %v3598 = vpop.f32.mrb[0].mxu0
        %v3599 = vadd.f32 0.0, %v3598
        %v3600 = vpop.f32.mrb[0].mxu0
        %3601 = vmatprep.mubr.f32.mxu0 %v3446
        %3602 = vmatmul.mubr.f32.gmra.mrb[0].mxu0 %v3444
        %v3603 = vpop.f32.mrb[0].mxu0
        %v3604 = vadd.f32 0.0, %v3603
        %v3605 = vpop.f32.mrb[0].mxu0
        %3606 = vmatprep.mubr.f32.mxu0 %v3447
        %3607 = vmatmul.mubr.f32.gmra.mrb[0].mxu0 %v3445
        %v3608 = vpop.f32.mrb[0].mxu0
        %v3609 = vadd.f32 0.0, %v3608
        %v3610 = vpop.f32.mrb[0].mxu0
        %3611 = vmatprep.mubr.f32.mxu0 %v3448
        %3612 = vmatmul.mubr.f32.gmra.mrb[0].mxu0 %v3446
        %v3613 = vpop.f32.mrb[0].mxu0
        %v3614 = vadd.f32 0.0, %v3613
        %v3615 = vpop.f32.mrb[0].mxu0
        %3616 = vmatprep.mubr.f32.mxu0 %v3449
        %3617 = vmatmul.mubr.f32.gmra.mrb[0].mxu0 %v3447
        %v3618 = vpop.f32.mrb[0].mxu0
        %v3619 = vadd.f32 0.0, %v3618
        %v3620 = vpop.f32.mrb[0].mxu0
        %3621 = vmatprep.mubr.f32.mxu0 %v3450
        %3622 = vmatmul.mubr.f32.gmra.mrb[0].mxu0 %v3448
        %v3623 = vpop.f32.mrb[0].mxu0
        %v3624 = vadd.f32 0.0, %v3623
        %v3625 = vpop.f32.mrb[0].mxu0
        %3626 = vmatprep.mubr.f32.mxu0 %v3451
        %3627 = vmatmul.mubr.f32.gmra.mrb[0].mxu0 %v3449
        %v3628 = vpop.f32.mrb[0].mxu0
        %v3629 = vadd.f32 0.0, %v3628
        %v3630 = vpop.f32.mrb[0].mxu0
        %3631 = vmatprep.mubr.f32.mxu0 %v3452
        %3632 = vmatmul.mubr.f32.gmra.mrb[0].mxu0 %v3450
        %v3633 = vpop.f32.mrb[0].mxu0
        %v3634 = vadd.f32 0.0, %v3633
        %v3635 = vpop.f32.mrb[0].mxu0
        %3636 = vmatprep.mubr.f32.mxu0 %v3453
        %3637 = vmatmul.mubr.f32.gmra.mrb[0].mxu0 %v3451
        %v3638 = vpop.f32.mrb[0].mxu0
        %v3639 = vadd.f32 0.0, %v3638
        %v3640 = vpop.f32.mrb[0].mxu0
        %3641 = vmatprep.mubr.f32.mxu0 %v3454
        %3642 = vmatmul.mubr.f32.gmra.mrb[0].mxu0 %v3452
        %v3643 = vpop.f32.mrb[0].mxu0
        %v3644 = vadd.f32 0.0, %v3643
        %v3645 = vpop.f32.mrb[0].mxu0
        %3646 = vmatprep.mubr.f32.mxu0 %v3455
        %3647 = vmatmul.mubr.f32.gmra.mrb[0].mxu0 %v3453
        %v3648 = vpop.f32.mrb[0].mxu0
        %v3649 = vadd.f32 0.0, %v3648
        %v3650 = vpop.f32.mrb[0].mxu0
        %3651 = vmatprep.mubr.f32.mxu0 %v3456
        %3652 = vmatmul.mubr.f32.gmra.mrb[0].mxu0 %v3454
        %v3653 = vpop.f32.mrb[0].mxu0
        %v3654 = vadd.f32 0.0, %v3653
        %v3655 = vpop.f32.mrb[0].mxu0
        %3656 = vmatprep.mubr.f32.mxu0 %v3457
        %3657 = vmatmul.mubr.f32.gmra.mrb[0].mxu0 %v3455
        %v3658 = vpop.f32.mrb[0].mxu0
        %v3659 = vadd.f32 0.0, %v3658
        %v3660 = vpop.f32.mrb[0].mxu0
        %3661 = vmatprep.mubr.f32.mxu0 %v3458
        %3662 = vmatmul.mubr.f32.gmra.mrb[0].mxu0 %v3456
        %v3663 = vpop.f32.mrb[0].mxu0
        %v3664 = vadd.f32 0.0, %v3663
        %v3665 = vpop.f32.mrb[0].mxu0
        %3666 = vmatprep.mubr.f32.mxu0 %v3459
        %3667 = vmatmul.mubr.f32.gmra.mrb[0].mxu0 %v3457
        %v3668 = vpop.f32.mrb[0].mxu0
        %v3669 = vadd.f32 0.0, %v3668
        %v3670 = vpop.f32.mrb[0].mxu0
        %3671 = vmatprep.mubr.f32.mxu0 %v3460
        %3672 = vmatmul.mubr.f32.gmra.mrb[0].mxu0 %v3458
        %v3673 = vpop.f32.mrb[0].mxu0
        %v3674 = vadd.f32 0.0, %v3673
        %v3675 = vpop.f32.mrb[0].mxu0
        %3676 = vmatprep.mubr.f32.mxu0 %v3461
        %3677 = vmatmul.mubr.f32.gmra.mrb[0].mxu0 %v3459
        %v3678 = vpop.f32.mrb[0].mxu0
        %v3679 = vadd.f32 0.0, %v3678
        %v3680 = vpop.f32.mrb[0].mxu0
        %3681 = vmatprep.mubr.f32.mxu0 %v3462
        %3682 = vmatmul.mubr.f32.gmra.mrb[0].mxu0 %v3460
        %v3683 = vpop.f32.mrb[0].mxu0
        %v3684 = vadd.f32 0.0, %v3683
        %v3685 = vpop.f32.mrb[0].mxu0
        %3686 = vmatprep.mubr.f32.mxu0 %v3463
        %3687 = vmatmul.mubr.f32.gmra.mrb[0].mxu0 %v3461
        %v3688 = vpop.f32.mrb[0].mxu0
        %v3689 = vadd.f32 0.0, %v3688
        %v3690 = vpop.f32.mrb[0].mxu0
        %3691 = vmatprep.mubr.f32.mxu0 %v3464
        %3692 = vmatmul.mubr.f32.gmra.mrb[0].mxu0 %v3462
        %v3693 = vpop.f32.mrb[0].mxu0
        %v3694 = vadd.f32 0.0, %v3693
        %v3695 = vpop.f32.mrb[0].mxu0
        %3696 = vmatprep.mubr.f32.mxu0 %v3465
        %3697 = vmatmul.mubr.f32.gmra.mrb[0].mxu0 %v3463
        %v3698 = vpop.f32.mrb[0].mxu0
        %v3699 = vadd.f32 0.0, %v3698
        %v3700 = vpop.f32.mrb[0].mxu0
        %3701 = vmatprep.mubr.f32.mxu0 %v3466
        %3702 = vmatmul.mubr.f32.gmra.mrb[0].mxu0 %v3464
        %v3703 = vpop.f32.mrb[0].mxu0
        %v3704 = vadd.f32 0.0, %v3703
        %v3705 = vpop.f32.mrb[0].mxu0
        %3706 = vmatprep.mubr.f32.mxu0 %v3467
        %3707 = vmatmul.mubr.f32.gmra.mrb[0].mxu0 %v3465
        %v3708 = vpop.f32.mrb[0].mxu0
        %v3709 = vadd.f32 0.0, %v3708
        %v3710 = vpop.f32.mrb[0].mxu0
        %3711 = vmatprep.mubr.f32.mxu0 %v3468
        %3712 = vmatmul.mubr.f32.gmra.mrb[0].mxu0 %v3466
        %v3713 = vpop.f32.mrb[0].mxu0
        %v3714 = vadd.f32 0.0, %v3713
        %v3715 = vpop.f32.mrb[0].mxu0
        %3716 = vmatprep.mubr.f32.mxu0 %v3469
        %3717 = vmatmul.mubr.f32.gmra.mrb[0].mxu0 %v3467
        %v3718 = vpop.f32.mrb[0].mxu0
        %v3719 = vadd.f32 0.0, %v3718
        %v3720 = vpop.f32.mrb[0].mxu0
        %3721 = vmatprep.mubr.f32.mxu0 %v3470
        %3722 = vmatmul.mubr.f32.gmra.mrb[0].mxu0 %v3468
        %v3723 = vpop.f32.mrb[0].mxu0
        %v3724 = vadd.f32 0.0, %v3723
        %v3725 = vpop.f32.mrb[0].mxu0
        %3726 = vmatprep.mubr.f32.mxu0 %v3471
        %3727 = vmatmul.mubr.f32.gmra.mrb[0].mxu0 %v3469
        %v3728 = vpop.f32.mrb[0].mxu0
        %v3729 = vadd.f32 0.0, %v3728
        %v3730 = vpop.f32.mrb[0].mxu0
        %3731 = vmatprep.mubr.f32.mxu0 %v3472
        %3732 = vmatmul.mubr.f32.gmra.mrb[0].mxu0 %v3470
        %v3733 = vpop.f32.mrb[0].mxu0
        %v3734 = vadd.f32 0.0, %v3733
        %v3735 = vpop.f32.mrb[0].mxu0
        %3736 = vmatprep.mubr.f32.mxu0 %v3473
        %3737 = vmatmul.mubr.f32.gmra.mrb[0].mxu0 %v3471
        %v3738 = vpop.f32.mrb[0].mxu0
        %v3739 = vadd.f32 0.0, %v3738
        %v3740 = vpop.f32.mrb[0].mxu0
        %3741 = vmatprep.mubr.f32.mxu0 %v3474
        %3742 = vmatmul.mubr.f32.gmra.mrb[0].mxu0 %v3472
        %v3743 = vpop.f32.mrb[0].mxu0
        %v3744 = vadd.f32 0.0, %v3743
        %v3745 = vpop.f32.mrb[0].mxu0
        %3746 = vmatprep.mubr.f32.mxu0 %v3475
        %3747 = vmatmul.mubr.f32.gmra.mrb[0].mxu0 %v3473
        %v3748 = vpop.f32.mrb[0].mxu0
        %v3749 = vadd.f32 0.0, %v3748
        %v3750 = vpop.f32.mrb[0].mxu0
        %3751 = vdwg.mxu0
        %3752 = vmatprep.subr.mxu0 0.0
        %3753 = vmatpush1.msra.mxu0 %v3511
        %3754 = vmatprep.subr.mxu0 0.0
        %3755 = vmatpush1.msra.mxu0 %v3512
        %3756 = vmatprep.subr.mxu0 0.0
        %3757 = vmatpush1.msra.mxu0 %v3513
        %3758 = vmatprep.subr.mxu0 0.0
        %3759 = vmatpush1.msra.mxu0 %v3514
        %3760 = vmatprep.subr.mxu0 0.0
        %3761 = vmatpush1.msra.mxu0 %v3515
        %3762 = vmatprep.subr.mxu0 0.0
        %3763 = vmatpush1.msra.mxu0 %v3516
        %3764 = vmatprep.subr.mxu0 0.0
        %3765 = vmatpush1.msra.mxu0 %v3517
        %3766 = vmatprep.subr.mxu0 0.0
        %3767 = vmatpush1.msra.mxu0 %v3518
        %3768 = vmatprep.subr.mxu0 0.0
        %3769 = vmatpush1.msra.mxu0 %v3519
        %3770 = vmatprep.subr.mxu0 0.0
        %3771 = vmatpush1.msra.mxu0 %v3520
        %3772 = vmatprep.subr.mxu0 0.0
        %3773 = vmatpush1.msra.mxu0 %v3521
        %3774 = vmatprep.subr.mxu0 0.0
        %3775 = vmatpush1.msra.mxu0 %v3522
        %3776 = vmatprep.subr.mxu0 0.0
        %3777 = vmatpush1.msra.mxu0 %v3523
        %3778 = vmatprep.subr.mxu0 0.0
        %3779 = vmatpush1.msra.mxu0 %v3524
        %3780 = vmatprep.subr.mxu0 0.0
        %3781 = vmatpush1.msra.mxu0 %v3525
        %3782 = vmatprep.subr.mxu0 0.0
        %3783 = vmatpush1.msra.mxu0 %v3526
        %3784 = vmatprep.subr.mxu0 0.0
        %3785 = vmatpush1.msra.mxu0 0.0
        %3786 = vmatprep.subr.mxu0 0.0
        %3787 = vmatpush1.msra.mxu0 0.0
        %3788 = vmatprep.subr.mxu0 0.0
        %3789 = vmatpush1.msra.mxu0 0.0
        %3790 = vmatprep.subr.mxu0 0.0
        %3791 = vmatpush1.msra.mxu0 0.0
        %3792 = vmatprep.subr.mxu0 0.0
        %3793 = vmatpush1.msra.mxu0 0.0
        %3794 = vmatprep.subr.mxu0 0.0
        %3795 = vmatpush1.msra.mxu0 0.0
        %3796 = vmatprep.subr.mxu0 0.0
        %3797 = vmatpush1.msra.mxu0 0.0
        %3798 = vmatprep.subr.mxu0 0.0
        %3799 = vmatpush1.msra.mxu0 0.0
        %3800 = vmatprep.subr.mxu0 0.0
        %3801 = vmatpush1.msra.mxu0 0.0
        %3802 = vmatprep.subr.mxu0 0.0
        %3803 = vmatpush1.msra.mxu0 0.0
        %3804 = vmatprep.subr.mxu0 0.0
        %3805 = vmatpush1.msra.mxu0 0.0
        %3806 = vmatprep.subr.mxu0 0.0
        %3807 = vmatpush1.msra.mxu0 0.0
        %3808 = vmatprep.subr.mxu0 0.0
        %3809 = vmatpush1.msra.mxu0 0.0
        %3810 = vmatprep.subr.mxu0 0.0
        %3811 = vmatpush1.msra.mxu0 0.0
        %3812 = vmatprep.subr.mxu0 0.0
        %3813 = vmatpush1.msra.mxu0 0.0
        %3814 = vmatprep.subr.mxu0 0.0
        %3815 = vmatpush1.msra.mxu0 0.0
        %3816 = vmatprep.mubr.f32.mxu0 0.0
        %3817 = vmatmul.mubr.f32.gmra.mrb[0].mxu0 %v3446
        %v3818 = vpop.f32.mrb[0].mxu0
        %v3819 = vadd.f32 %v3594, %v3818
        %v3820 = vpop.f32.mrb[0].mxu0
        %3821 = vmatprep.mubr.f32.mxu0 0.0
        %3822 = vmatmul.mubr.f32.gmra.mrb[0].mxu0 %v3447
        %v3823 = vpop.f32.mrb[0].mxu0
        %v3824 = vadd.f32 %v3599, %v3823
        %v3825 = vpop.f32.mrb[0].mxu0
        %3826 = vmatprep.mubr.f32.mxu0 0.0
        %3827 = vmatmul.mubr.f32.gmra.mrb[0].mxu0 %v3448
        %v3828 = vpop.f32.mrb[0].mxu0
        %v3829 = vadd.f32 %v3604, %v3828
        %v3830 = vpop.f32.mrb[0].mxu0
        %3831 = vmatprep.mubr.f32.mxu0 0.0
        %3832 = vmatmul.mubr.f32.gmra.mrb[0].mxu0 %v3449
        %v3833 = vpop.f32.mrb[0].mxu0
        %v3834 = vadd.f32 %v3609, %v3833
        %v3835 = vpop.f32.mrb[0].mxu0
        %3836 = vmatprep.mubr.f32.mxu0 0.0
        %3837 = vmatmul.mubr.f32.gmra.mrb[0].mxu0 %v3450
        %v3838 = vpop.f32.mrb[0].mxu0
        %v3839 = vadd.f32 %v3614, %v3838
        %v3840 = vpop.f32.mrb[0].mxu0
        %3841 = vmatprep.mubr.f32.mxu0 0.0
        %3842 = vmatmul.mubr.f32.gmra.mrb[0].mxu0 %v3451
        %v3843 = vpop.f32.mrb[0].mxu0
        %v3844 = vadd.f32 %v3619, %v3843
        %v3845 = vpop.f32.mrb[0].mxu0
        %3846 = vmatprep.mubr.f32.mxu0 0.0
        %3847 = vmatmul.mubr.f32.gmra.mrb[0].mxu0 %v3452
        %v3848 = vpop.f32.mrb[0].mxu0
        %v3849 = vadd.f32 %v3624, %v3848
        %v3850 = vpop.f32.mrb[0].mxu0
        %3851 = vmatprep.mubr.f32.mxu0 0.0
        %3852 = vmatmul.mubr.f32.gmra.mrb[0].mxu0 %v3453
        %v3853 = vpop.f32.mrb[0].mxu0
        %v3854 = vadd.f32 %v3629, %v3853
        %v3855 = vpop.f32.mrb[0].mxu0
        %3856 = vmatprep.mubr.f32.mxu0 0.0
        %3857 = vmatmul.mubr.f32.gmra.mrb[0].mxu0 %v3454
        %v3858 = vpop.f32.mrb[0].mxu0
        %v3859 = vadd.f32 %v3634, %v3858
        %v3860 = vpop.f32.mrb[0].mxu0
        %3861 = vmatprep.mubr.f32.mxu0 0.0
        %3862 = vmatmul.mubr.f32.gmra.mrb[0].mxu0 %v3455
        %v3863 = vpop.f32.mrb[0].mxu0
        %v3864 = vadd.f32 %v3639, %v3863
        %v3865 = vpop.f32.mrb[0].mxu0
        %3866 = vmatprep.mubr.f32.mxu0 0.0
        %3867 = vmatmul.mubr.f32.gmra.mrb[0].mxu0 %v3456
        %v3868 = vpop.f32.mrb[0].mxu0
        %v3869 = vadd.f32 %v3644, %v3868
        %v3870 = vpop.f32.mrb[0].mxu0
        %3871 = vmatprep.mubr.f32.mxu0 0.0
        %3872 = vmatmul.mubr.f32.gmra.mrb[0].mxu0 %v3457
        %v3873 = vpop.f32.mrb[0].mxu0
        %v3874 = vadd.f32 %v3649, %v3873
        %v3875 = vpop.f32.mrb[0].mxu0
        %3876 = vmatprep.mubr.f32.mxu0 0.0
        %3877 = vmatmul.mubr.f32.gmra.mrb[0].mxu0 %v3458
        %v3878 = vpop.f32.mrb[0].mxu0
        %v3879 = vadd.f32 %v3654, %v3878
        %v3880 = vpop.f32.mrb[0].mxu0
        %3881 = vmatprep.mubr.f32.mxu0 0.0
        %3882 = vmatmul.mubr.f32.gmra.mrb[0].mxu0 %v3459
        %v3883 = vpop.f32.mrb[0].mxu0
        %v3884 = vadd.f32 %v3659, %v3883
        %v3885 = vpop.f32.mrb[0].mxu0
        %3886 = vmatprep.mubr.f32.mxu0 0.0
        %3887 = vmatmul.mubr.f32.gmra.mrb[0].mxu0 %v3460
        %v3888 = vpop.f32.mrb[0].mxu0
        %v3889 = vadd.f32 %v3664, %v3888
        %v3890 = vpop.f32.mrb[0].mxu0
        %3891 = vmatprep.mubr.f32.mxu0 0.0
        %3892 = vmatmul.mubr.f32.gmra.mrb[0].mxu0 %v3461
        %v3893 = vpop.f32.mrb[0].mxu0
        %v3894 = vadd.f32 %v3669, %v3893
        %v3895 = vpop.f32.mrb[0].mxu0
        %3896 = vmatprep.mubr.f32.mxu0 0.0
        %3897 = vmatmul.mubr.f32.gmra.mrb[0].mxu0 %v3462
        %v3898 = vpop.f32.mrb[0].mxu0
        %v3899 = vadd.f32 %v3674, %v3898
        %v3900 = vpop.f32.mrb[0].mxu0
        %3901 = vmatprep.mubr.f32.mxu0 0.0
        %3902 = vmatmul.mubr.f32.gmra.mrb[0].mxu0 %v3463
        %v3903 = vpop.f32.mrb[0].mxu0
        %v3904 = vadd.f32 %v3679, %v3903
        %v3905 = vpop.f32.mrb[0].mxu0
        %3906 = vmatprep.mubr.f32.mxu0 0.0
        %3907 = vmatmul.mubr.f32.gmra.mrb[0].mxu0 %v3464
        %v3908 = vpop.f32.mrb[0].mxu0
        %v3909 = vadd.f32 %v3684, %v3908
        %v3910 = vpop.f32.mrb[0].mxu0
        %3911 = vmatprep.mubr.f32.mxu0 0.0
        %3912 = vmatmul.mubr.f32.gmra.mrb[0].mxu0 %v3465
        %v3913 = vpop.f32.mrb[0].mxu0
        %v3914 = vadd.f32 %v3689, %v3913
        %v3915 = vpop.f32.mrb[0].mxu0
        %3916 = vmatprep.mubr.f32.mxu0 0.0
        %3917 = vmatmul.mubr.f32.gmra.mrb[0].mxu0 %v3466
        %v3918 = vpop.f32.mrb[0].mxu0
        %v3919 = vadd.f32 %v3694, %v3918
        %v3920 = vpop.f32.mrb[0].mxu0
        %3921 = vmatprep.mubr.f32.mxu0 0.0
        %3922 = vmatmul.mubr.f32.gmra.mrb[0].mxu0 %v3467
        %v3923 = vpop.f32.mrb[0].mxu0
        %v3924 = vadd.f32 %v3699, %v3923
        %v3925 = vpop.f32.mrb[0].mxu0
        %3926 = vmatprep.mubr.f32.mxu0 0.0
        %3927 = vmatmul.mubr.f32.gmra.mrb[0].mxu0 %v3468
        %v3928 = vpop.f32.mrb[0].mxu0
        %v3929 = vadd.f32 %v3704, %v3928
        %v3930 = vpop.f32.mrb[0].mxu0
        %3931 = vmatprep.mubr.f32.mxu0 0.0
        %3932 = vmatmul.mubr.f32.gmra.mrb[0].mxu0 %v3469
        %v3933 = vpop.f32.mrb[0].mxu0
        %v3934 = vadd.f32 %v3709, %v3933
        %v3935 = vpop.f32.mrb[0].mxu0
        %3936 = vmatprep.mubr.f32.mxu0 0.0
        %3937 = vmatmul.mubr.f32.gmra.mrb[0].mxu0 %v3470
        %v3938 = vpop.f32.mrb[0].mxu0
        %v3939 = vadd.f32 %v3714, %v3938
        %v3940 = vpop.f32.mrb[0].mxu0
        %3941 = vmatprep.mubr.f32.mxu0 0.0
        %3942 = vmatmul.mubr.f32.gmra.mrb[0].mxu0 %v3471
        %v3943 = vpop.f32.mrb[0].mxu0
        %v3944 = vadd.f32 %v3719, %v3943
        %v3945 = vpop.f32.mrb[0].mxu0
        %3946 = vmatprep.mubr.f32.mxu0 0.0
        %3947 = vmatmul.mubr.f32.gmra.mrb[0].mxu0 %v3472
        %v3948 = vpop.f32.mrb[0].mxu0
        %v3949 = vadd.f32 %v3724, %v3948
        %v3950 = vpop.f32.mrb[0].mxu0
        %3951 = vmatprep.mubr.f32.mxu0 0.0
        %3952 = vmatmul.mubr.f32.gmra.mrb[0].mxu0 %v3473
        %v3953 = vpop.f32.mrb[0].mxu0
        %v3954 = vadd.f32 %v3729, %v3953
        %v3955 = vpop.f32.mrb[0].mxu0
        %3956 = vmatprep.mubr.f32.mxu0 0.0
        %3957 = vmatmul.mubr.f32.gmra.mrb[0].mxu0 %v3474
        %v3958 = vpop.f32.mrb[0].mxu0
        %v3959 = vadd.f32 %v3734, %v3958
        %v3960 = vpop.f32.mrb[0].mxu0
        %3961 = vmatprep.mubr.f32.mxu0 0.0
        %3962 = vmatmul.mubr.f32.gmra.mrb[0].mxu0 %v3475
        %v3963 = vpop.f32.mrb[0].mxu0
        %v3964 = vadd.f32 %v3739, %v3963
        %v3965 = vpop.f32.mrb[0].mxu0
        %3966 = vmatprep.mubr.f32.mxu0 0.0
        %3967 = vmatmul.mubr.f32.gmra.mrb[0].mxu0 %v3476
        %v3968 = vpop.f32.mrb[0].mxu0
        %v3969 = vadd.f32 %v3744, %v3968
        %v3970 = vpop.f32.mrb[0].mxu0
        %3971 = vmatprep.mubr.f32.mxu0 0.0
        %3972 = vmatmul.mubr.f32.gmra.mrb[0].mxu0 %v3477
        %v3973 = vpop.f32.mrb[0].mxu0
        %v3974 = vadd.f32 %v3749, %v3973
        %v3975 = vpop.f32.mrb[0].mxu0
        %3976 = vdwg.mxu0
        %v3977 = vld [vmem:[#allocation2] sm:$0xff]
        %v3978 = vld [vmem:[#allocation2 + $0x8] sm:$0xff]
        %v3979 = vld [vmem:[#allocation2 + $0x10] sm:$0xff]
        %v3980 = vld [vmem:[#allocation2 + $0x18] sm:$0xff]
        %v3981 = vld [vmem:[#allocation2 + $0x20] sm:$0xff]
        %v3982 = vld [vmem:[#allocation2 + $0x28] sm:$0xff]
        %v3983 = vld [vmem:[#allocation2 + $0x30] sm:$0xff]
        %v3984 = vld [vmem:[#allocation2 + $0x38] sm:$0xff]
        %v3985 = vld [vmem:[#allocation2 + $0x40] sm:$0xff]
        %v3986 = vld [vmem:[#allocation2 + $0x48] sm:$0xff]
        %v3987 = vld [vmem:[#allocation2 + $0x50] sm:$0xff]
        %v3988 = vld [vmem:[#allocation2 + $0x58] sm:$0xff]
        %v3989 = vld [vmem:[#allocation2 + $0x60] sm:$0xff]
        %v3990 = vld [vmem:[#allocation2 + $0x68] sm:$0xff]
        %v3991 = vld [vmem:[#allocation2 + $0x70] sm:$0xff]
        %v3992 = vld [vmem:[#allocation2 + $0x78] sm:$0xff]
        %v3993 = vld [vmem:[#allocation2 + $0x80] sm:$0xff]
        %v3994 = vld [vmem:[#allocation2 + $0x88] sm:$0xff]
        %v3995 = vld [vmem:[#allocation2 + $0x90] sm:$0xff]
        %v3996 = vld [vmem:[#allocation2 + $0x98] sm:$0xff]
        %v3997 = vld [vmem:[#allocation2 + $0xa0] sm:$0xff]
        %v3998 = vld [vmem:[#allocation2 + $0xa8] sm:$0xff]
        %v3999 = vld [vmem:[#allocation2 + $0xb0] sm:$0xff]
        %v4000 = vld [vmem:[#allocation2 + $0xb8] sm:$0xff]
        %v4001 = vld [vmem:[#allocation2 + $0xc0] sm:$0xff]
        %v4002 = vld [vmem:[#allocation2 + $0xc8] sm:$0xff]
        %v4003 = vld [vmem:[#allocation2 + $0xd0] sm:$0xff]
        %v4004 = vld [vmem:[#allocation2 + $0xd8] sm:$0xff]
        %v4005 = vld [vmem:[#allocation2 + $0xe0] sm:$0xff]
        %v4006 = vld [vmem:[#allocation2 + $0xe8] sm:$0xff]
        %v4007 = vld [vmem:[#allocation2 + $0xf0] sm:$0xff]
        %v4008 = vld [vmem:[#allocation2 + $0xf8] sm:$0xff]
        %v4009 = vadd.f32 %v3977, %v3819
        %v4010 = vadd.f32 %v3978, %v3824
        %v4011 = vadd.f32 %v3979, %v3829
        %v4012 = vadd.f32 %v3980, %v3834
        %v4013 = vadd.f32 %v3981, %v3839
        %v4014 = vadd.f32 %v3982, %v3844
        %v4015 = vadd.f32 %v3983, %v3849
        %v4016 = vadd.f32 %v3984, %v3854
        %v4017 = vadd.f32 %v3985, %v3859
        %v4018 = vadd.f32 %v3986, %v3864
        %v4019 = vadd.f32 %v3987, %v3869
        %v4020 = vadd.f32 %v3988, %v3874
        %v4021 = vadd.f32 %v3989, %v3879
        %v4022 = vadd.f32 %v3990, %v3884
        %v4023 = vadd.f32 %v3991, %v3889
        %v4024 = vadd.f32 %v3992, %v3894
        %v4025 = vadd.f32 %v3993, %v3899
        %v4026 = vadd.f32 %v3994, %v3904
        %v4027 = vadd.f32 %v3995, %v3909
        %v4028 = vadd.f32 %v3996, %v3914
        %v4029 = vadd.f32 %v3997, %v3919
        %v4030 = vadd.f32 %v3998, %v3924
        %v4031 = vadd.f32 %v3999, %v3929
        %v4032 = vadd.f32 %v4000, %v3934
        %v4033 = vadd.f32 %v4001, %v3939
        %v4034 = vadd.f32 %v4002, %v3944
        %v4035 = vadd.f32 %v4003, %v3949
        %v4036 = vadd.f32 %v4004, %v3954
        %v4037 = vadd.f32 %v4005, %v3959
        %v4038 = vadd.f32 %v4006, %v3964
        %v4039 = vadd.f32 %v4007, %v3969
        %v4040 = vadd.f32 %v4008, %v3974
        %4041 = vst [vmem:[#allocation2] sm:$0xff] %v4009
        %4042 = vst [vmem:[#allocation2 + $0x8] sm:$0xff] %v4010
        %4043 = vst [vmem:[#allocation2 + $0x10] sm:$0xff] %v4011
        %4044 = vst [vmem:[#allocation2 + $0x18] sm:$0xff] %v4012
        %4045 = vst [vmem:[#allocation2 + $0x20] sm:$0xff] %v4013
        %4046 = vst [vmem:[#allocation2 + $0x28] sm:$0xff] %v4014
        %4047 = vst [vmem:[#allocation2 + $0x30] sm:$0xff] %v4015
        %4048 = vst [vmem:[#allocation2 + $0x38] sm:$0xff] %v4016
        %4049 = vst [vmem:[#allocation2 + $0x40] sm:$0xff] %v4017
        %4050 = vst [vmem:[#allocation2 + $0x48] sm:$0xff] %v4018
        %4051 = vst [vmem:[#allocation2 + $0x50] sm:$0xff] %v4019
        %4052 = vst [vmem:[#allocation2 + $0x58] sm:$0xff] %v4020
        %4053 = vst [vmem:[#allocation2 + $0x60] sm:$0xff] %v4021
        %4054 = vst [vmem:[#allocation2 + $0x68] sm:$0xff] %v4022
        %4055 = vst [vmem:[#allocation2 + $0x70] sm:$0xff] %v4023
        %4056 = vst [vmem:[#allocation2 + $0x78] sm:$0xff] %v4024
        %4057 = vst [vmem:[#allocation2 + $0x80] sm:$0xff] %v4025
        %4058 = vst [vmem:[#allocation2 + $0x88] sm:$0xff] %v4026
        %4059 = vst [vmem:[#allocation2 + $0x90] sm:$0xff] %v4027
        %4060 = vst [vmem:[#allocation2 + $0x98] sm:$0xff] %v4028
        %4061 = vst [vmem:[#allocation2 + $0xa0] sm:$0xff] %v4029
        %4062 = vst [vmem:[#allocation2 + $0xa8] sm:$0xff] %v4030
        %4063 = vst [vmem:[#allocation2 + $0xb0] sm:$0xff] %v4031
        %4064 = vst [vmem:[#allocation2 + $0xb8] sm:$0xff] %v4032
        %4065 = vst [vmem:[#allocation2 + $0xc0] sm:$0xff] %v4033
        %4066 = vst [vmem:[#allocation2 + $0xc8] sm:$0xff] %v4034
        %4067 = vst [vmem:[#allocation2 + $0xd0] sm:$0xff] %v4035
        %4068 = vst [vmem:[#allocation2 + $0xd8] sm:$0xff] %v4036
        %4069 = vst [vmem:[#allocation2 + $0xe0] sm:$0xff] %v4037
        %4070 = vst [vmem:[#allocation2 + $0xe8] sm:$0xff] %v4038
        %4071 = vst [vmem:[#allocation2 + $0xf0] sm:$0xff] %v4039
        %4072 = vst [vmem:[#allocation2 + $0xf8] sm:$0xff] %v4040
        %v4073 = vld [vmem:[#allocation2] sm:$0xff]
        %v4074 = vld [vmem:[#allocation2 + $0x8] sm:$0xff]
        %v4075 = vld [vmem:[#allocation2 + $0x10] sm:$0xff]
        %v4076 = vld [vmem:[#allocation2 + $0x18] sm:$0xff]
        %v4077 = vld [vmem:[#allocation2 + $0x20] sm:$0xff]
        %v4078 = vld [vmem:[#allocation2 + $0x28] sm:$0xff]
        %v4079 = vld [vmem:[#allocation2 + $0x30] sm:$0xff]
        %v4080 = vld [vmem:[#allocation2 + $0x38] sm:$0xff]
        %v4081 = vld [vmem:[#allocation2 + $0x40] sm:$0xff]
        %v4082 = vld [vmem:[#allocation2 + $0x48] sm:$0xff]
        %v4083 = vld [vmem:[#allocation2 + $0x50] sm:$0xff]
        %v4084 = vld [vmem:[#allocation2 + $0x58] sm:$0xff]
        %v4085 = vld [vmem:[#allocation2 + $0x60] sm:$0xff]
        %v4086 = vld [vmem:[#allocation2 + $0x68] sm:$0xff]
        %v4087 = vld [vmem:[#allocation2 + $0x70] sm:$0xff]
        %v4088 = vld [vmem:[#allocation2 + $0x78] sm:$0xff]
        %v4089 = vld [vmem:[#allocation2 + $0x80] sm:$0xff]
        %v4090 = vld [vmem:[#allocation2 + $0x88] sm:$0xff]
        %v4091 = vld [vmem:[#allocation2 + $0x90] sm:$0xff]
        %v4092 = vld [vmem:[#allocation2 + $0x98] sm:$0xff]
        %v4093 = vld [vmem:[#allocation2 + $0xa0] sm:$0xff]
        %v4094 = vld [vmem:[#allocation2 + $0xa8] sm:$0xff]
        %v4095 = vld [vmem:[#allocation2 + $0xb0] sm:$0xff]
        %v4096 = vld [vmem:[#allocation2 + $0xb8] sm:$0xff]
        %v4097 = vld [vmem:[#allocation2 + $0xc0] sm:$0xff]
        %v4098 = vld [vmem:[#allocation2 + $0xc8] sm:$0xff]
        %v4099 = vld [vmem:[#allocation2 + $0xd0] sm:$0xff]
        %v4100 = vld [vmem:[#allocation2 + $0xd8] sm:$0xff]
        %v4101 = vld [vmem:[#allocation2 + $0xe0] sm:$0xff]
        %v4102 = vld [vmem:[#allocation2 + $0xe8] sm:$0xff]
        %v4103 = vld [vmem:[#allocation2 + $0xf0] sm:$0xff]
        %v4104 = vld [vmem:[#allocation2 + $0xf8] sm:$0xff]
        %v4105 = vld [vmem:[%s4] sm:$0x1]
        %v4107 = vlaneseq
        %v4108 = vshrl.u32 %v4107, 7
        %v4109 = vsub.s32 0, %v4108
        %v4110 = vrot.slane %v4105, %v4109
        %v4112 = vadd.f32 %v4073, %v4110
        %v4113 = vadd.f32 %v4074, %v4110
        %v4114 = vadd.f32 %v4075, %v4110
        %v4115 = vadd.f32 %v4076, %v4110
        %v4116 = vadd.f32 %v4077, %v4110
        %v4117 = vadd.f32 %v4078, %v4110
        %v4118 = vadd.f32 %v4079, %v4110
        %v4119 = vadd.f32 %v4080, %v4110
        %v4120 = vadd.f32 %v4081, %v4110
        %v4121 = vadd.f32 %v4082, %v4110
        %v4122 = vadd.f32 %v4083, %v4110
        %v4123 = vadd.f32 %v4084, %v4110
        %v4124 = vadd.f32 %v4085, %v4110
        %v4125 = vadd.f32 %v4086, %v4110
        %v4126 = vadd.f32 %v4087, %v4110
        %v4127 = vadd.f32 %v4088, %v4110
        %v4128 = vadd.f32 %v4089, %v4110
        %v4129 = vadd.f32 %v4090, %v4110
        %v4130 = vadd.f32 %v4091, %v4110
        %v4131 = vadd.f32 %v4092, %v4110
        %v4132 = vadd.f32 %v4093, %v4110
        %v4133 = vadd.f32 %v4094, %v4110
        %v4134 = vadd.f32 %v4095, %v4110
        %v4135 = vadd.f32 %v4096, %v4110
        %v4136 = vadd.f32 %v4097, %v4110
        %v4137 = vadd.f32 %v4098, %v4110
        %v4138 = vadd.f32 %v4099, %v4110
        %v4139 = vadd.f32 %v4100, %v4110
        %v4140 = vadd.f32 %v4101, %v4110
        %v4141 = vadd.f32 %v4102, %v4110
        %v4142 = vadd.f32 %v4103, %v4110
        %v4143 = vadd.f32 %v4104, %v4110
        %v4144 = vadd.f32 %v4112, %v806
        %v4145 = vadd.f32 %v4113, %v807
        %v4146 = vadd.f32 %v4114, %v808
        %v4147 = vadd.f32 %v4115, %v809
        %v4148 = vadd.f32 %v4116, %v810
        %v4149 = vadd.f32 %v4117, %v811
        %v4150 = vadd.f32 %v4118, %v812
        %v4151 = vadd.f32 %v4119, %v813
        %v4152 = vadd.f32 %v4120, %v814
        %v4153 = vadd.f32 %v4121, %v815
        %v4154 = vadd.f32 %v4122, %v816
        %v4155 = vadd.f32 %v4123, %v817
        %v4156 = vadd.f32 %v4124, %v818
        %v4157 = vadd.f32 %v4125, %v819
        %v4158 = vadd.f32 %v4126, %v820
        %v4159 = vadd.f32 %v4127, %v821
        %v4160 = vadd.f32 %v4128, %v822
        %v4161 = vadd.f32 %v4129, %v823
        %v4162 = vadd.f32 %v4130, %v824
        %v4163 = vadd.f32 %v4131, %v825
        %v4164 = vadd.f32 %v4132, %v826
        %v4165 = vadd.f32 %v4133, %v827
        %v4166 = vadd.f32 %v4134, %v828
        %v4167 = vadd.f32 %v4135, %v829
        %v4168 = vadd.f32 %v4136, %v830
        %v4169 = vadd.f32 %v4137, %v831
        %v4170 = vadd.f32 %v4138, %v832
        %v4171 = vadd.f32 %v4139, %v833
        %v4172 = vadd.f32 %v4140, %v834
        %v4173 = vadd.f32 %v4141, %v835
        %v4174 = vadd.f32 %v4142, %v836
        %v4175 = vadd.f32 %v4143, %v837
        %v4176 = vmax.f32 %v4144, 0.0
        %v4177 = vmax.f32 %v4145, 0.0
        %v4178 = vmax.f32 %v4146, 0.0
        %v4179 = vmax.f32 %v4147, 0.0
        %v4180 = vmax.f32 %v4148, 0.0
        %v4181 = vmax.f32 %v4149, 0.0
        %v4182 = vmax.f32 %v4150, 0.0
        %v4183 = vmax.f32 %v4151, 0.0
        %v4184 = vmax.f32 %v4152, 0.0
        %v4185 = vmax.f32 %v4153, 0.0
        %v4186 = vmax.f32 %v4154, 0.0
        %v4187 = vmax.f32 %v4155, 0.0
        %v4188 = vmax.f32 %v4156, 0.0
        %v4189 = vmax.f32 %v4157, 0.0
        %v4190 = vmax.f32 %v4158, 0.0
        %v4191 = vmax.f32 %v4159, 0.0
        %v4192 = vmax.f32 %v4160, 0.0
        %v4193 = vmax.f32 %v4161, 0.0
        %v4194 = vmax.f32 %v4162, 0.0
        %v4195 = vmax.f32 %v4163, 0.0
        %v4196 = vmax.f32 %v4164, 0.0
        %v4197 = vmax.f32 %v4165, 0.0
        %v4198 = vmax.f32 %v4166, 0.0
        %v4199 = vmax.f32 %v4167, 0.0
        %v4200 = vmax.f32 %v4168, 0.0
        %v4201 = vmax.f32 %v4169, 0.0
        %v4202 = vmax.f32 %v4170, 0.0
        %v4203 = vmax.f32 %v4171, 0.0
        %v4204 = vmax.f32 %v4172, 0.0
        %v4205 = vmax.f32 %v4173, 0.0
        %v4206 = vmax.f32 %v4174, 0.0
        %v4207 = vmax.f32 %v4175, 0.0
        %4208 = vst [vmem:[%s232] sm:$0xff] %v4176
        %4209 = vst [vmem:[%s232 + $0x8] sm:$0xff] %v4177
        %4210 = vst [vmem:[%s232 + $0x10] sm:$0xff] %v4178
        %4211 = vst [vmem:[%s232 + $0x18] sm:$0xff] %v4179
        %4212 = vst [vmem:[%s232 + $0x20] sm:$0xff] %v4180
        %4213 = vst [vmem:[%s232 + $0x28] sm:$0xff] %v4181
        %4214 = vst [vmem:[%s232 + $0x30] sm:$0xff] %v4182
        %4215 = vst [vmem:[%s232 + $0x38] sm:$0xff] %v4183
        %4216 = vst [vmem:[%s232 + $0x40] sm:$0xff] %v4184
        %4217 = vst [vmem:[%s232 + $0x48] sm:$0xff] %v4185
        %4218 = vst [vmem:[%s232 + $0x50] sm:$0xff] %v4186
        %4219 = vst [vmem:[%s232 + $0x58] sm:$0xff] %v4187
        %4220 = vst [vmem:[%s232 + $0x60] sm:$0xff] %v4188
        %4221 = vst [vmem:[%s232 + $0x68] sm:$0xff] %v4189
        %4222 = vst [vmem:[%s232 + $0x70] sm:$0xff] %v4190
        %4223 = vst [vmem:[%s232 + $0x78] sm:$0xff] %v4191
        %4224 = vst [vmem:[%s232 + $0x80] sm:$0xff] %v4192
        %4225 = vst [vmem:[%s232 + $0x88] sm:$0xff] %v4193
        %4226 = vst [vmem:[%s232 + $0x90] sm:$0xff] %v4194
        %4227 = vst [vmem:[%s232 + $0x98] sm:$0xff] %v4195
        %4228 = vst [vmem:[%s232 + $0xa0] sm:$0xff] %v4196
        %4229 = vst [vmem:[%s232 + $0xa8] sm:$0xff] %v4197
        %4230 = vst [vmem:[%s232 + $0xb0] sm:$0xff] %v4198
        %4231 = vst [vmem:[%s232 + $0xb8] sm:$0xff] %v4199
        %4232 = vst [vmem:[%s232 + $0xc0] sm:$0xff] %v4200
        %4233 = vst [vmem:[%s232 + $0xc8] sm:$0xff] %v4201
        %4234 = vst [vmem:[%s232 + $0xd0] sm:$0xff] %v4202
        %4235 = vst [vmem:[%s232 + $0xd8] sm:$0xff] %v4203
        %4236 = vst [vmem:[%s232 + $0xe0] sm:$0xff] %v4204
        %4237 = vst [vmem:[%s232 + $0xe8] sm:$0xff] %v4205
        %4238 = vst [vmem:[%s232 + $0xf0] sm:$0xff] %v4206
        %4239 = vst [vmem:[%s232 + $0xf8] sm:$0xff] %v4207
        %s4240 = sand.u32 %s138, 1
        %s4241 = scalar_lea.sflag [#allocation6], %s4240
        %s4242 = sand.u32 %s138, 1
        %s4243 = smul.addr %s4242, 256
        %s4244 = scalar_lea.vmem [#allocation7], %s4243
        // Predicated region
        $region45: #{tpu_custom_call.1} parent=39 // pred_check
          %p4245 = pneg %p148
        $region46: #{tpu_custom_call.1} parent=39 // pred_check_branch
          %4247 = sbr.rel (%p4245) target = $region48
        $region47: #{tpu_custom_call.1} parent=39 // pred_region
          %s4249 = ssub.s32 4096, 4096
          %4250 = vsyncadd %s4241, %s4249
          %s4251 = smul.addr %s20, 32
          %s4252 = smul.addr %s4251, 128
          %s4253 = scalar_lea.hbm %s5, %s4252
          %s4254 = sshll.u32 %s4244, 4
          %s4255 = int_to_ptr.vmem [resolvable:$true] %s4254
          %4260 = dma.vmem_to_hbm [thread:$0]  %s4255, 4096, %s4253, %s4241, 128, 128, 8
        $region48: #{tpu_custom_call.1} parent=39 // pred_fallthru
          _
      $region40: #{tpu_custom_call.1} parent=5 // pred_fallthru
        _
      %p4261 = scmp.le.s32.totalorder 2, %s15
      // Predicated region
      $region49: #{tpu_custom_call.1} parent=5 // pred_check
        %p4262 = pneg %p4261
      $region50: #{tpu_custom_call.1} parent=5 // pred_check_branch
        %4264 = sbr.rel (%p4262) target = $region52
      $region51: #{tpu_custom_call.1} parent=5 // pred_region
        %s4265 = ssub.s32 %s15, 2
        // Predicated region
        $region53: #{tpu_custom_call.1} parent=51 // pred_check
          %p4266 = pneg %p154
        $region54: #{tpu_custom_call.1} parent=51 // pred_check_branch
          %4268 = sbr.rel (%p4266) target = $region56
        $region55: #{tpu_custom_call.1} parent=51 // pred_region
          %s4269 = sand.u32 %s139, 1
          %s4270 = scalar_lea.sflag [#allocation6], %s4269
          %s4271 = sand.u32 %s139, 1
          %s4272 = smul.addr %s4271, 256
          %s4273 = scalar_lea.vmem [#allocation7], %s4272
          %4274 = dma.done %s4270, 4096
        $region56: #{tpu_custom_call.1} parent=51 // pred_fallthru
          _
      $region52: #{tpu_custom_call.1} parent=5 // pred_fallthru
        _
    $region6: #{tpu_custom_call.1} parent=1 // loop_footer
      %s19 = sadd.s32 1, %s15
    $region7: #{tpu_custom_call.1} parent=1 // loop_footer_branch
      %14 = sbr.rel target = $region3
    $region8: #{tpu_custom_call.1} parent=1 // loop_exit
      _
    %4275 = vsyncpa [#allocation5], 1
    %s4276 = scalar_lea.sflag [#allocation5], 1
    %4277 = vsyncpa %s4276, 1
    %4278 = vsyncpa [#allocation6], 1
    %s4279 = scalar_lea.sflag [#allocation6], 1
    %4280 = vsyncpa %s4279, 1

</llo_original>
